<compile_context>
chip_gen: v6e
topology: v6e:2x2x1
jax: 0.10.0
libtpu: 0.0.40
codegen_flags: <defaults>
</compile_context>

<pallas_src>
import functools

import jax
import jax.numpy as jnp
from jax.experimental import pallas as pl
from jax.experimental.pallas import tpu as pltpu


# Rows of the packed per-channel vector slab ([VEC_ROWS, width], f32).
VEC_ROWS = 16
R_B1, R_S1, R_T1, R_B2, R_S2, R_T2 = 0, 1, 2, 3, 4, 5
R_BC1, R_BC2 = 6, 7
R_BM1, R_SM, R_TM, R_WM2, R_BM2 = 8, 9, 10, 11, 12


# ------------------------------- kernels ------------------------------------

def node_mlp_kernel(x_ref, w1_ref, w2_ref, wc1_ref, vec_ref, z_ref):
    """mlp_first (Linear->BN->ReLU->Linear->BN->ReLU) fused with z1 = h0 @ Wc1."""
    f32, bf16 = jnp.float32, jnp.bfloat16
    vec = vec_ref[...]
    h = jnp.dot(x_ref[...], w1_ref[...], preferred_element_type=f32) + vec[R_B1][None, :]
    h = jnp.maximum(h * vec[R_S1][None, :] + vec[R_T1][None, :], 0.0)
    h = jnp.dot(h.astype(bf16), w2_ref[...], preferred_element_type=f32) + vec[R_B2][None, :]
    h = jnp.maximum(h * vec[R_S2][None, :] + vec[R_T2][None, :], 0.0)
    # bf16 output feeds the bandwidth-bound aggregation; accumulation stays f32.
    z_ref[...] = jnp.dot(h.astype(bf16), wc1_ref[...],
                         preferred_element_type=f32).astype(bf16)


def agg_project_kernel(adj_ref, z_ref, wc_ref, vec_ref, out_ref):
    """h1 = relu(Â[tile,:] @ z1 + bc1) in one K=N pass; out = (h1 @ Wc2) in bf16."""
    f32, bf16 = jnp.float32, jnp.bfloat16
    vec = vec_ref[...]
    acc = jnp.dot(adj_ref[...], z_ref[...], preferred_element_type=f32)    # [tm, W] f32
    h = jnp.maximum(acc + vec[R_BC1][None, :], 0.0)
    out_ref[...] = jnp.dot(h.astype(bf16), wc_ref[...],
                           preferred_element_type=f32).astype(bf16)


def agg_pool_head_kernel(adj_ref, z_ref, wm1_ref, vec_ref, out_ref, *, nodes_per_graph):
    """h2 = relu(Â[tile,:] @ z2 + bc2); fused global_max_pool + head mlp."""
    f32, bf16 = jnp.float32, jnp.bfloat16
    vec = vec_ref[...]
    acc = jnp.dot(adj_ref[...], z_ref[...], preferred_element_type=f32)    # [tm, W] f32
    # relu(conv) followed by the extra F.relu in forward (a no-op after relu).
    h = jnp.maximum(acc + vec[R_BC2][None, :], 0.0)
    tm, w = h.shape
    p = nodes_per_graph
    # global_max_pool over contiguous fixed-size graphs: one segmented reduce.
    pooled = h.reshape(tm // p, p, w).max(axis=1)                          # [tm//p, W]
    # head mlp: Linear->BN->ReLU->Linear(W//2, 1); padded channels stay 0.
    y = jnp.dot(pooled.astype(bf16), wm1_ref[...],
                preferred_element_type=f32) + vec[R_BM1][None, :]
    y = jnp.maximum(y * vec[R_SM][None, :] + vec[R_TM][None, :], 0.0)
    # out_features=1 Linear as a VPU reduction; lane-dense [tm//p, W] output slab.
    score = jnp.sum(y * vec[R_WM2][None, :], axis=-1, keepdims=True)       # [tm//p, 1]
    out_ref[...] = score + vec[R_BM2][None, :]


# ------------------------------- wrapper -------------------------------------

def gcn_forward(x_pad, adj, packed, *, nodes_per_graph, tm=256):
    """Fused GCN forward.  Returns [G] (one score per graph)."""
    w1p, w2, wc1, wc2, wm1p, vec = packed
    n, f_pad = x_pad.shape
    width = w2.shape[0]
    p = nodes_per_graph
    g = n // p

    assert n % tm == 0, "node count must be a multiple of the row tile"
    assert tm % p == 0 and (tm // p) % 8 == 0, "row tile must cover >=8 whole graphs"
    assert width % 128 == 0 and f_pad % 128 == 0

    const = lambda *_: (0, 0)
    row = lambda i: (i, 0)
    par = pltpu.CompilerParams(dimension_semantics=("parallel",))

    # ---- 1. mlp_first + Wc1 projection (row-parallel over nodes) -------------
    z1 = pl.pallas_call(
        node_mlp_kernel,
        out_shape=jax.ShapeDtypeStruct((n, width), jnp.bfloat16),
        grid=(n // tm,),
        in_specs=[
            pl.BlockSpec((tm, f_pad), row),
            pl.BlockSpec((f_pad, width), const),
            pl.BlockSpec((width, width), const),
            pl.BlockSpec((width, width), const),
            pl.BlockSpec((VEC_ROWS, width), const),
        ],
        out_specs=pl.BlockSpec((tm, width), row),
        compiler_params=par,
    )(x_pad, w1p, w2, wc1, vec)

    # adj row tile is (tm, N): the whole K=N contraction in one MXU pass, no
    # accumulator scratch, no reduction grid axis.  VMEM footprint < 1 MB.
    adj_spec = pl.BlockSpec((tm, n), row)
    z_spec = pl.BlockSpec((n, width), const)

    # ---- 2. conv1: h1 = relu(Â z1 + bc1), fused with z2 = h1 @ Wc2 -----------
    z2 = pl.pallas_call(
        agg_project_kernel,
        out_shape=jax.ShapeDtypeStruct((n, width), jnp.bfloat16),
        grid=(n // tm,),
        in_specs=[adj_spec, z_spec,
                  pl.BlockSpec((width, width), const),
                  pl.BlockSpec((VEC_ROWS, width), const)],
        out_specs=pl.BlockSpec((tm, width), row),
        compiler_params=par,
        cost_estimate=pl.CostEstimate(
            flops=2 * n * n * width + 2 * n * width * width,
            transcendentals=0,
            bytes_accessed=(n * n * 2 + (n // tm) * n * width * 2
                            + width * width * 2 + VEC_ROWS * width * 4
                            + n * width * 2)),
    )(adj, z1, wc2, vec)

    # ---- 3. conv2 + global_max_pool + head mlp (fused epilogue) ---------------
    out = pl.pallas_call(
        functools.partial(agg_pool_head_kernel, nodes_per_graph=p),
        out_shape=jax.ShapeDtypeStruct((g, width), jnp.float32),
        grid=(n // tm,),
        in_specs=[adj_spec, z_spec,
                  pl.BlockSpec((width, width), const),
                  pl.BlockSpec((VEC_ROWS, width), const)],
        out_specs=pl.BlockSpec((tm // p, width), row),
        compiler_params=par,
        cost_estimate=pl.CostEstimate(
            flops=2 * n * n * width + 2 * g * width * width,
            transcendentals=0,
            bytes_accessed=(n * n * 2 + (n // tm) * n * width * 2
                            + width * width * 2 + VEC_ROWS * width * 4
                            + g * width * 4)),
    )(adj, z2, wm1p, vec)
    return out[:, 0]


# ------------------------------ plain-JAX glue -------------------------------

def build_norm_adj(edge_index, num_nodes):
    """Dense Â = D^-1/2 (A + I) D^-1/2, row = destination node, stored bf16.

    (For large N, store 0/1 (A+I) in int8 / fp8 and fold D^-1/2 into per-row /
    per-column scales to halve the dominant HBM stream; at N=512 adj is 512 KB
    so bf16 is fine.)
    """
    src, dst = edge_index[0], edge_index[1]
    loop = jnp.arange(num_nodes, dtype=edge_index.dtype)
    src = jnp.concatenate([src, loop])
    dst = jnp.concatenate([dst, loop])
    a = jnp.zeros((num_nodes, num_nodes), jnp.float32).at[dst, src].set(1.0)
    deg = a.sum(axis=1)
    dinv = jax.lax.rsqrt(jnp.maximum(deg, 1.0))
    return (a * dinv[:, None] * dinv[None, :]).astype(jnp.bfloat16)


def fold_bn(gamma, beta, mean, var, eps=1e-5):
    scale = gamma / jnp.sqrt(var + eps)
    shift = beta - mean * scale
    return scale, shift


def init_params(key, num_node_features, width):
    ks = jax.random.split(key, 9)
    half = width // 2

    def lin(k, fin, fout):
        kw, kb = jax.random.split(k)
        bound = 1.0 / jnp.sqrt(fin)
        w = jax.random.uniform(kw, (fin, fout), jnp.float32, -bound, bound)
        b = jax.random.uniform(kb, (fout,), jnp.float32, -bound, bound)
        return w, b

    def bn(k, f):
        k1, k2, k3, k4 = jax.random.split(k, 4)
        gamma = 1.0 + 0.1 * jax.random.normal(k1, (f,), jnp.float32)
        beta = 0.1 * jax.random.normal(k2, (f,), jnp.float32)
        mean = 0.1 * jax.random.normal(k3, (f,), jnp.float32)
        var = 0.5 + jnp.abs(jax.random.normal(k4, (f,), jnp.float32))
        return fold_bn(gamma, beta, mean, var)

    w1, b1 = lin(ks[0], num_node_features, width)
    s1, t1 = bn(ks[1], width)
    w2, b2 = lin(ks[2], width, width)
    s2, t2 = bn(ks[3], width)
    wc1, bc1 = lin(ks[4], width, width)     # GCNConv lin weight + post-aggregation bias
    wc2, bc2 = lin(ks[5], width, width)
    wm1, bm1 = lin(ks[6], width, half)
    sm, tmb = bn(ks[7], half)
    wm2, bm2 = lin(ks[8], half, 1)
    return (w1, b1, s1, t1, w2, b2, s2, t2,
            wc1, bc1, wc2, bc2, wm1, bm1, sm, tmb, wm2, bm2)


def pack_params(raw, num_node_features, width, f_pad=128):
    """Pad/pack raw params: pad K=8 first Linear to a 128-lane contraction, pad the
    width//2 head to full width (padded channels stay 0 through ReLU), pack all
    per-channel vectors into one [VEC_ROWS, width] f32 slab, all matmul weights bf16."""
    (w1, b1, s1, t1, w2, b2, s2, t2,
     wc1, bc1, wc2, bc2, wm1, bm1, sm, tmb, wm2, bm2) = raw
    half = width // 2
    bf16 = jnp.bfloat16

    w1p = jnp.zeros((f_pad, width), jnp.float32).at[:num_node_features].set(w1)
    wm1p = jnp.zeros((width, width), jnp.float32).at[:, :half].set(wm1)

    def padv(v):
        return jnp.zeros((width,), jnp.float32).at[:v.shape[0]].set(v)

    vec = jnp.zeros((VEC_ROWS, width), jnp.float32)
    for r, v in ((R_B1, b1), (R_S1, s1), (R_T1, t1),
                 (R_B2, b2), (R_S2, s2), (R_T2, t2),
                 (R_BC1, bc1), (R_BC2, bc2),
                 (R_BM1, padv(bm1)), (R_SM, padv(sm)), (R_TM, padv(tmb)),
                 (R_WM2, padv(wm2[:, 0])),
                 (R_BM2, jnp.full((width,), bm2[0]))):
        vec = vec.at[r].set(v)

    return (w1p.astype(bf16), w2.astype(bf16),
            wc1.astype(bf16), wc2.astype(bf16),
            wm1p.astype(bf16), vec)


def reference_forward(x_pad, adj, packed, nodes_per_graph):
    """Plain-JAX mirror of the kernel math (same bf16 casts, f32 accumulation)."""
    w1p, w2, wc1, wc2, wm1p, vec = packed
    f32, bf16 = jnp.float32, jnp.bfloat16
    h = jnp.dot(x_pad, w1p, preferred_element_type=f32) + vec[R_B1]
    h = jnp.maximum(h * vec[R_S1] + vec[R_T1], 0.0)
    h = jnp.dot(h.astype(bf16), w2, preferred_element_type=f32) + vec[R_B2]
    h = jnp.maximum(h * vec[R_S2] + vec[R_T2], 0.0)
    z = jnp.dot(h.astype(bf16), wc1, preferred_element_type=f32).astype(bf16)
    h = jnp.maximum(jnp.dot(adj, z, preferred_element_type=f32) + vec[R_BC1], 0.0)
    z = jnp.dot(h.astype(bf16), wc2, preferred_element_type=f32).astype(bf16)
    h = jnp.maximum(jnp.dot(adj, z, preferred_element_type=f32) + vec[R_BC2], 0.0)
    h = jnp.maximum(h, 0.0)
    g = h.shape[0] // nodes_per_graph
    pooled = h.reshape(g, nodes_per_graph, h.shape[1]).max(axis=1)
    y = jnp.dot(pooled.astype(bf16), wm1p, preferred_element_type=f32) + vec[R_BM1]
    y = jnp.maximum(y * vec[R_SM] + vec[R_TM], 0.0)
    return jnp.sum(y * vec[R_WM2], axis=-1) + vec[R_BM2, 0]


if __name__ == "__main__":
    NUM_NODE_FEATURES = 8
    WIDTH = 128                  # module default
    NODES_PER_GRAPH = 32
    NUM_GRAPHS = 16
    N = NUM_GRAPHS * NODES_PER_GRAPH        # 512 nodes
    F_PAD = 128                             # pad the K=8 contraction to a full MXU pass

    key = jax.random.PRNGKey(0)
    kx, kp = jax.random.split(key)

    # node features, zero-padded on the feature axis (lane-dense input tile), bf16.
    x = jax.random.normal(kx, (N, NUM_NODE_FEATURES), jnp.float32)
    x_pad = jnp.zeros((N, F_PAD), jnp.float32).at[:, :NUM_NODE_FEATURES].set(x)
    x_pad = x_pad.astype(jnp.bfloat16)

    # undirected ring inside each graph; `batch` is sorted/contiguous with a fixed
    # nodes-per-graph, which the fused pooling relies on.
    srcs, dsts = [], []
    for gph in range(NUM_GRAPHS):
        base = gph * NODES_PER_GRAPH
        for i in range(NODES_PER_GRAPH):
            a = base + i
            b = base + (i + 1) % NODES_PER_GRAPH
            srcs += [a, b]
            dsts += [b, a]
    edge_index = jnp.array([srcs, dsts], dtype=jnp.int32)          # [2, E]
    batch = jnp.repeat(jnp.arange(NUM_GRAPHS, dtype=jnp.int32), NODES_PER_GRAPH)
    # TODO(synk): edge_attr is read in the PyTorch forward but never used, and self.cheb
    # is never called, so both are omitted; ragged graph sizes would need a
    # scalar-prefetched segment-offset pooling path instead of the fixed-size one.

    adj = build_norm_adj(edge_index, N)                            # [N, N] bf16
    raw = init_params(kp, NUM_NODE_FEATURES, WIDTH)
    packed = pack_params(raw, NUM_NODE_FEATURES, WIDTH, F_PAD)

    fwd = jax.jit(functools.partial(gcn_forward,
                                    nodes_per_graph=NODES_PER_GRAPH,
                                    tm=256))
    out = jax.block_until_ready(fwd(x_pad, adj, packed))

    ref = reference_forward(x_pad, adj, packed, NODES_PER_GRAPH)
    assert out.shape == (NUM_GRAPHS,)
    assert jnp.allclose(out, ref, rtol=2e-3, atol=2e-3), (out, ref)

    print("KERNEL_OK")
</pallas_src>

<mosaic_0001>
module attributes {stable_mosaic.version = 11 : i64} {
  func.func @agg_project_kernel(%arg0: i32, %arg1: memref<256x512xbf16, #tpu.memory_space<vmem>>, %arg2: memref<512x128xbf16, #tpu.memory_space<vmem>>, %arg3: memref<128x128xbf16, #tpu.memory_space<vmem>>, %arg4: memref<16x128xf32, #tpu.memory_space<vmem>>, %arg5: memref<256x128xbf16, #tpu.memory_space<vmem>>) attributes {dimension_semantics = [#tpu.dimension_semantics<parallel>], iteration_bounds = array<i64: 2>, scalar_prefetch = 0 : i64, scratch_operands = 0 : i64, tpu.core_type = #tpu.core_type<tc>, window_params = [{transform_indices = @transform_0, window_bounds = array<i64: 256, 512>}, {pipeline_mode = #tpu.pipeline_mode<synchronous>, transform_indices = @transform_1, window_bounds = array<i64: 512, 128>}, {pipeline_mode = #tpu.pipeline_mode<synchronous>, transform_indices = @transform_2, window_bounds = array<i64: 128, 128>}, {pipeline_mode = #tpu.pipeline_mode<synchronous>, transform_indices = @transform_3, window_bounds = array<i64: 16, 128>}, {transform_indices = @transform_4, window_bounds = array<i64: 256, 128>}]} {
    %c0 = arith.constant 0 : index
    %c0_0 = arith.constant 0 : index
    %0 = vector.load %arg4[%c0, %c0_0] : memref<16x128xf32, #tpu.memory_space<vmem>>, vector<16x128xf32>
    %c0_1 = arith.constant 0 : index
    %c0_2 = arith.constant 0 : index
    %1 = vector.load %arg1[%c0_1, %c0_2] : memref<256x512xbf16, #tpu.memory_space<vmem>>, vector<256x512xbf16>
    %c0_3 = arith.constant 0 : index
    %c0_4 = arith.constant 0 : index
    %2 = vector.load %arg2[%c0_3, %c0_4] : memref<512x128xbf16, #tpu.memory_space<vmem>>, vector<512x128xbf16>
    %cst = arith.constant dense<0.000000e+00> : vector<256x128xf32>
    %3 = tpu.matmul %1, %2, %cst {dimension_numbers = #tpu.dot_dimension_numbers<[1], [0], [0], [1], [0, 0, 1, 1], [], []>} : vector<256x512xbf16>, vector<512x128xbf16>, vector<256x128xf32> -> vector<256x128xf32>
    %4 = vector.extract_strided_slice %0 {offsets = [6, 0], sizes = [1, 128], strides = [1, 1]} : vector<16x128xf32> to vector<1x128xf32>
    %5 = vector.shape_cast %4 : vector<1x128xf32> to vector<128xf32>
    %6 = vector.shape_cast %5 : vector<128xf32> to vector<1x128xf32>
    %7 = vector.broadcast %6 : vector<1x128xf32> to vector<256x128xf32>
    %8 = arith.addf %3, %7 : vector<256x128xf32>
    %cst_5 = arith.constant 0.000000e+00 : f32
    %9 = vector.broadcast %cst_5 : f32 to vector<256x128xf32>
    %10 = arith.maximumf %8, %9 : vector<256x128xf32>
    %11 = arith.truncf %10 : vector<256x128xf32> to vector<256x128xbf16>
    %c0_6 = arith.constant 0 : index
    %c0_7 = arith.constant 0 : index
    %12 = vector.load %arg3[%c0_6, %c0_7] : memref<128x128xbf16, #tpu.memory_space<vmem>>, vector<128x128xbf16>
    %cst_8 = arith.constant dense<0.000000e+00> : vector<256x128xf32>
    %13 = tpu.matmul %11, %12, %cst_8 {dimension_numbers = #tpu.dot_dimension_numbers<[1], [0], [0], [1], [0, 0, 1, 1], [], []>} : vector<256x128xbf16>, vector<128x128xbf16>, vector<256x128xf32> -> vector<256x128xf32>
    %14 = arith.truncf %13 : vector<256x128xf32> to vector<256x128xbf16>
    %c0_9 = arith.constant 0 : index
    %c0_10 = arith.constant 0 : index
    %15 = vector.load %arg5[%c0_9, %c0_10] : memref<256x128xbf16, #tpu.memory_space<vmem>>, vector<256x128xbf16>
    tpu.vector_store %arg5[%c0_9, %c0_10], %14 {strides = array<i32>} : memref<256x128xbf16, #tpu.memory_space<vmem>>, vector<256x128xbf16>,
    return
  }
  func.func @transform_0(%arg0: i32) -> (i32, i32) {
    %c0_i32 = arith.constant 0 : i32
    %c0_i32_0 = arith.constant 0 : i32
    return %arg0, %c0_i32 : i32, i32
  }
  func.func @transform_1(%arg0: i32) -> (i32, i32) {
    %c0_i32 = arith.constant 0 : i32
    %c0_i32_0 = arith.constant 0 : i32
    %c0_i32_1 = arith.constant 0 : i32
    return %c0_i32, %c0_i32_0 : i32, i32
  }
  func.func @transform_2(%arg0: i32) -> (i32, i32) {
    %c0_i32 = arith.constant 0 : i32
    %c0_i32_0 = arith.constant 0 : i32
    %c0_i32_1 = arith.constant 0 : i32
    return %c0_i32, %c0_i32_0 : i32, i32
  }
  func.func @transform_3(%arg0: i32) -> (i32, i32) {
    %c0_i32 = arith.constant 0 : i32
    %c0_i32_0 = arith.constant 0 : i32
    %c0_i32_1 = arith.constant 0 : i32
    return %c0_i32, %c0_i32_0 : i32, i32
  }
  func.func @transform_4(%arg0: i32) -> (i32, i32) {
    %c0_i32 = arith.constant 0 : i32
    %c0_i32_0 = arith.constant 0 : i32
    return %arg0, %c0_i32 : i32, i32
  }
}

module attributes {stable_mosaic.version = 11 : i64} {
  func.func @agg_pool_head_kernel(%arg0: i32, %arg1: memref<256x512xbf16, #tpu.memory_space<vmem>>, %arg2: memref<512x128xbf16, #tpu.memory_space<vmem>>, %arg3: memref<128x128xbf16, #tpu.memory_space<vmem>>, %arg4: memref<16x128xf32, #tpu.memory_space<vmem>>, %arg5: memref<8x128xf32, #tpu.memory_space<vmem>>) attributes {dimension_semantics = [#tpu.dimension_semantics<parallel>], iteration_bounds = array<i64: 2>, scalar_prefetch = 0 : i64, scratch_operands = 0 : i64, tpu.core_type = #tpu.core_type<tc>, window_params = [{transform_indices = @transform_0, window_bounds = array<i64: 256, 512>}, {pipeline_mode = #tpu.pipeline_mode<synchronous>, transform_indices = @transform_1, window_bounds = array<i64: 512, 128>}, {pipeline_mode = #tpu.pipeline_mode<synchronous>, transform_indices = @transform_2, window_bounds = array<i64: 128, 128>}, {pipeline_mode = #tpu.pipeline_mode<synchronous>, transform_indices = @transform_3, window_bounds = array<i64: 16, 128>}, {transform_indices = @transform_4, window_bounds = array<i64: 8, 128>}]} {
    %c0 = arith.constant 0 : index
    %c0_0 = arith.constant 0 : index
    %0 = vector.load %arg4[%c0, %c0_0] : memref<16x128xf32, #tpu.memory_space<vmem>>, vector<16x128xf32>
    %c0_1 = arith.constant 0 : index
    %c0_2 = arith.constant 0 : index
    %1 = vector.load %arg1[%c0_1, %c0_2] : memref<256x512xbf16, #tpu.memory_space<vmem>>, vector<256x512xbf16>
    %c0_3 = arith.constant 0 : index
    %c0_4 = arith.constant 0 : index
    %2 = vector.load %arg2[%c0_3, %c0_4] : memref<512x128xbf16, #tpu.memory_space<vmem>>, vector<512x128xbf16>
    %cst = arith.constant dense<0.000000e+00> : vector<256x128xf32>
    %3 = tpu.matmul %1, %2, %cst {dimension_numbers = #tpu.dot_dimension_numbers<[1], [0], [0], [1], [0, 0, 1, 1], [], []>} : vector<256x512xbf16>, vector<512x128xbf16>, vector<256x128xf32> -> vector<256x128xf32>
    %4 = vector.extract_strided_slice %0 {offsets = [7, 0], sizes = [1, 128], strides = [1, 1]} : vector<16x128xf32> to vector<1x128xf32>
    %5 = vector.shape_cast %4 : vector<1x128xf32> to vector<128xf32>
    %6 = vector.shape_cast %5 : vector<128xf32> to vector<1x128xf32>
    %7 = vector.broadcast %6 : vector<1x128xf32> to vector<256x128xf32>
    %8 = arith.addf %3, %7 : vector<256x128xf32>
    %cst_5 = arith.constant 0.000000e+00 : f32
    %9 = vector.broadcast %cst_5 : f32 to vector<256x128xf32>
    %10 = arith.maximumf %8, %9 : vector<256x128xf32>
    %11 = vector.shape_cast %10 : vector<256x128xf32> to vector<8x32x128xf32>
    %cst_6 = arith.constant dense<0xFF800000> : vector<8x128xf32>
    %12 = vector.multi_reduction <maximumf>, %11, %cst_6 [1] : vector<8x32x128xf32> to vector<8x128xf32>
    %13 = arith.truncf %12 : vector<8x128xf32> to vector<8x128xbf16>
    %c0_7 = arith.constant 0 : index
    %c0_8 = arith.constant 0 : index
    %14 = vector.load %arg3[%c0_7, %c0_8] : memref<128x128xbf16, #tpu.memory_space<vmem>>, vector<128x128xbf16>
    %cst_9 = arith.constant dense<0.000000e+00> : vector<8x128xf32>
    %15 = tpu.matmul %13, %14, %cst_9 {dimension_numbers = #tpu.dot_dimension_numbers<[1], [0], [0], [1], [0, 0, 1, 1], [], []>} : vector<8x128xbf16>, vector<128x128xbf16>, vector<8x128xf32> -> vector<8x128xf32>
    %16 = vector.extract_strided_slice %0 {offsets = [8, 0], sizes = [1, 128], strides = [1, 1]} : vector<16x128xf32> to vector<1x128xf32>
    %17 = vector.shape_cast %16 : vector<1x128xf32> to vector<128xf32>
    %18 = vector.shape_cast %17 : vector<128xf32> to vector<1x128xf32>
    %19 = vector.broadcast %18 : vector<1x128xf32> to vector<8x128xf32>
    %20 = arith.addf %15, %19 : vector<8x128xf32>
    %21 = vector.extract_strided_slice %0 {offsets = [9, 0], sizes = [1, 128], strides = [1, 1]} : vector<16x128xf32> to vector<1x128xf32>
    %22 = vector.shape_cast %21 : vector<1x128xf32> to vector<128xf32>
    %23 = vector.shape_cast %22 : vector<128xf32> to vector<1x128xf32>
    %24 = vector.broadcast %23 : vector<1x128xf32> to vector<8x128xf32>
    %25 = arith.mulf %20, %24 : vector<8x128xf32>
    %26 = vector.extract_strided_slice %0 {offsets = [10, 0], sizes = [1, 128], strides = [1, 1]} : vector<16x128xf32> to vector<1x128xf32>
    %27 = vector.shape_cast %26 : vector<1x128xf32> to vector<128xf32>
    %28 = vector.shape_cast %27 : vector<128xf32> to vector<1x128xf32>
    %29 = vector.broadcast %28 : vector<1x128xf32> to vector<8x128xf32>
    %30 = arith.addf %25, %29 : vector<8x128xf32>
    %cst_10 = arith.constant 0.000000e+00 : f32
    %31 = vector.broadcast %cst_10 : f32 to vector<8x128xf32>
    %32 = arith.maximumf %30, %31 : vector<8x128xf32>
    %33 = vector.extract_strided_slice %0 {offsets = [11, 0], sizes = [1, 128], strides = [1, 1]} : vector<16x128xf32> to vector<1x128xf32>
    %34 = vector.shape_cast %33 : vector<1x128xf32> to vector<128xf32>
    %35 = vector.shape_cast %34 : vector<128xf32> to vector<1x128xf32>
    %36 = vector.broadcast %35 : vector<1x128xf32> to vector<8x128xf32>
    %37 = arith.mulf %32, %36 : vector<8x128xf32>
    %cst_11 = arith.constant dense<0.000000e+00> : vector<8xf32>
    %38 = vector.multi_reduction <add>, %37, %cst_11 [1] : vector<8x128xf32> to vector<8xf32>
    %39 = vector.shape_cast %38 : vector<8xf32> to vector<8x1xf32>
    %40 = vector.extract_strided_slice %0 {offsets = [12, 0], sizes = [1, 128], strides = [1, 1]} : vector<16x128xf32> to vector<1x128xf32>
    %41 = vector.shape_cast %40 : vector<1x128xf32> to vector<128xf32>
    %42 = vector.shape_cast %41 : vector<128xf32> to vector<1x128xf32>
    %43 = vector.broadcast %39 : vector<8x1xf32> to vector<8x128xf32>
    %44 = vector.broadcast %42 : vector<1x128xf32> to vector<8x128xf32>
    %45 = arith.addf %43, %44 : vector<8x128xf32>
    %c0_12 = arith.constant 0 : index
    %c0_13 = arith.constant 0 : index
    %46 = vector.load %arg5[%c0_12, %c0_13] : memref<8x128xf32, #tpu.memory_space<vmem>>, vector<8x128xf32>
    tpu.vector_store %arg5[%c0_12, %c0_13], %45 {strides = array<i32>} : memref<8x128xf32, #tpu.memory_space<vmem>>, vector<8x128xf32>,
    return
  }
  func.func @transform_0(%arg0: i32) -> (i32, i32) {
    %c0_i32 = arith.constant 0 : i32
    %c0_i32_0 = arith.constant 0 : i32
    return %arg0, %c0_i32 : i32, i32
  }
  func.func @transform_1(%arg0: i32) -> (i32, i32) {
    %c0_i32 = arith.constant 0 : i32
    %c0_i32_0 = arith.constant 0 : i32
    %c0_i32_1 = arith.constant 0 : i32
    return %c0_i32, %c0_i32_0 : i32, i32
  }
  func.func @transform_2(%arg0: i32) -> (i32, i32) {
    %c0_i32 = arith.constant 0 : i32
    %c0_i32_0 = arith.constant 0 : i32
    %c0_i32_1 = arith.constant 0 : i32
    return %c0_i32, %c0_i32_0 : i32, i32
  }
  func.func @transform_3(%arg0: i32) -> (i32, i32) {
    %c0_i32 = arith.constant 0 : i32
    %c0_i32_0 = arith.constant 0 : i32
    %c0_i32_1 = arith.constant 0 : i32
    return %c0_i32, %c0_i32_0 : i32, i32
  }
  func.func @transform_4(%arg0: i32) -> (i32, i32) {
    %c0_i32 = arith.constant 0 : i32
    %c0_i32_0 = arith.constant 0 : i32
    return %arg0, %c0_i32 : i32, i32
  }
}

module attributes {stable_mosaic.version = 11 : i64} {
  func.func @node_mlp_kernel(%arg0: i32, %arg1: memref<256x128xbf16, #tpu.memory_space<vmem>>, %arg2: memref<128x128xbf16, #tpu.memory_space<vmem>>, %arg3: memref<128x128xbf16, #tpu.memory_space<vmem>>, %arg4: memref<128x128xbf16, #tpu.memory_space<vmem>>, %arg5: memref<16x128xf32, #tpu.memory_space<vmem>>, %arg6: memref<256x128xbf16, #tpu.memory_space<vmem>>) attributes {dimension_semantics = [#tpu.dimension_semantics<parallel>], iteration_bounds = array<i64: 2>, scalar_prefetch = 0 : i64, scratch_operands = 0 : i64, tpu.core_type = #tpu.core_type<tc>, window_params = [{transform_indices = @transform_0, window_bounds = array<i64: 256, 128>}, {pipeline_mode = #tpu.pipeline_mode<synchronous>, transform_indices = @transform_1, window_bounds = array<i64: 128, 128>}, {pipeline_mode = #tpu.pipeline_mode<synchronous>, transform_indices = @transform_2, window_bounds = array<i64: 128, 128>}, {pipeline_mode = #tpu.pipeline_mode<synchronous>, transform_indices = @transform_3, window_bounds = array<i64: 128, 128>}, {pipeline_mode = #tpu.pipeline_mode<synchronous>, transform_indices = @transform_4, window_bounds = array<i64: 16, 128>}, {transform_indices = @transform_5, window_bounds = array<i64: 256, 128>}]} {
    %c0 = arith.constant 0 : index
    %c0_0 = arith.constant 0 : index
    %0 = vector.load %arg5[%c0, %c0_0] : memref<16x128xf32, #tpu.memory_space<vmem>>, vector<16x128xf32>
    %c0_1 = arith.constant 0 : index
    %c0_2 = arith.constant 0 : index
    %1 = vector.load %arg1[%c0_1, %c0_2] : memref<256x128xbf16, #tpu.memory_space<vmem>>, vector<256x128xbf16>
    %c0_3 = arith.constant 0 : index
    %c0_4 = arith.constant 0 : index
    %2 = vector.load %arg2[%c0_3, %c0_4] : memref<128x128xbf16, #tpu.memory_space<vmem>>, vector<128x128xbf16>
    %cst = arith.constant dense<0.000000e+00> : vector<256x128xf32>
    %3 = tpu.matmul %1, %2, %cst {dimension_numbers = #tpu.dot_dimension_numbers<[1], [0], [0], [1], [0, 0, 1, 1], [], []>} : vector<256x128xbf16>, vector<128x128xbf16>, vector<256x128xf32> -> vector<256x128xf32>
    %4 = vector.extract_strided_slice %0 {offsets = [0, 0], sizes = [1, 128], strides = [1, 1]} : vector<16x128xf32> to vector<1x128xf32>
    %5 = vector.shape_cast %4 : vector<1x128xf32> to vector<128xf32>
    %6 = vector.shape_cast %5 : vector<128xf32> to vector<1x128xf32>
    %7 = vector.broadcast %6 : vector<1x128xf32> to vector<256x128xf32>
    %8 = arith.addf %3, %7 : vector<256x128xf32>
    %9 = vector.extract_strided_slice %0 {offsets = [1, 0], sizes = [1, 128], strides = [1, 1]} : vector<16x128xf32> to vector<1x128xf32>
    %10 = vector.shape_cast %9 : vector<1x128xf32> to vector<128xf32>
    %11 = vector.shape_cast %10 : vector<128xf32> to vector<1x128xf32>
    %12 = vector.broadcast %11 : vector<1x128xf32> to vector<256x128xf32>
    %13 = arith.mulf %8, %12 : vector<256x128xf32>
    %14 = vector.extract_strided_slice %0 {offsets = [2, 0], sizes = [1, 128], strides = [1, 1]} : vector<16x128xf32> to vector<1x128xf32>
    %15 = vector.shape_cast %14 : vector<1x128xf32> to vector<128xf32>
    %16 = vector.shape_cast %15 : vector<128xf32> to vector<1x128xf32>
    %17 = vector.broadcast %16 : vector<1x128xf32> to vector<256x128xf32>
    %18 = arith.addf %13, %17 : vector<256x128xf32>
    %cst_5 = arith.constant 0.000000e+00 : f32
    %19 = vector.broadcast %cst_5 : f32 to vector<256x128xf32>
    %20 = arith.maximumf %18, %19 : vector<256x128xf32>
    %21 = arith.truncf %20 : vector<256x128xf32> to vector<256x128xbf16>
    %c0_6 = arith.constant 0 : index
    %c0_7 = arith.constant 0 : index
    %22 = vector.load %arg3[%c0_6, %c0_7] : memref<128x128xbf16, #tpu.memory_space<vmem>>, vector<128x128xbf16>
    %cst_8 = arith.constant dense<0.000000e+00> : vector<256x128xf32>
    %23 = tpu.matmul %21, %22, %cst_8 {dimension_numbers = #tpu.dot_dimension_numbers<[1], [0], [0], [1], [0, 0, 1, 1], [], []>} : vector<256x128xbf16>, vector<128x128xbf16>, vector<256x128xf32> -> vector<256x128xf32>
    %24 = vector.extract_strided_slice %0 {offsets = [3, 0], sizes = [1, 128], strides = [1, 1]} : vector<16x128xf32> to vector<1x128xf32>
    %25 = vector.shape_cast %24 : vector<1x128xf32> to vector<128xf32>
    %26 = vector.shape_cast %25 : vector<128xf32> to vector<1x128xf32>
    %27 = vector.broadcast %26 : vector<1x128xf32> to vector<256x128xf32>
    %28 = arith.addf %23, %27 : vector<256x128xf32>
    %29 = vector.extract_strided_slice %0 {offsets = [4, 0], sizes = [1, 128], strides = [1, 1]} : vector<16x128xf32> to vector<1x128xf32>
    %30 = vector.shape_cast %29 : vector<1x128xf32> to vector<128xf32>
    %31 = vector.shape_cast %30 : vector<128xf32> to vector<1x128xf32>
    %32 = vector.broadcast %31 : vector<1x128xf32> to vector<256x128xf32>
    %33 = arith.mulf %28, %32 : vector<256x128xf32>
    %34 = vector.extract_strided_slice %0 {offsets = [5, 0], sizes = [1, 128], strides = [1, 1]} : vector<16x128xf32> to vector<1x128xf32>
    %35 = vector.shape_cast %34 : vector<1x128xf32> to vector<128xf32>
    %36 = vector.shape_cast %35 : vector<128xf32> to vector<1x128xf32>
    %37 = vector.broadcast %36 : vector<1x128xf32> to vector<256x128xf32>
    %38 = arith.addf %33, %37 : vector<256x128xf32>
    %cst_9 = arith.constant 0.000000e+00 : f32
    %39 = vector.broadcast %cst_9 : f32 to vector<256x128xf32>
    %40 = arith.maximumf %38, %39 : vector<256x128xf32>
    %41 = arith.truncf %40 : vector<256x128xf32> to vector<256x128xbf16>
    %c0_10 = arith.constant 0 : index
    %c0_11 = arith.constant 0 : index
    %42 = vector.load %arg4[%c0_10, %c0_11] : memref<128x128xbf16, #tpu.memory_space<vmem>>, vector<128x128xbf16>
    %cst_12 = arith.constant dense<0.000000e+00> : vector<256x128xf32>
    %43 = tpu.matmul %41, %42, %cst_12 {dimension_numbers = #tpu.dot_dimension_numbers<[1], [0], [0], [1], [0, 0, 1, 1], [], []>} : vector<256x128xbf16>, vector<128x128xbf16>, vector<256x128xf32> -> vector<256x128xf32>
    %44 = arith.truncf %43 : vector<256x128xf32> to vector<256x128xbf16>
    %c0_13 = arith.constant 0 : index
    %c0_14 = arith.constant 0 : index
    %45 = vector.load %arg6[%c0_13, %c0_14] : memref<256x128xbf16, #tpu.memory_space<vmem>>, vector<256x128xbf16>
    tpu.vector_store %arg6[%c0_13, %c0_14], %44 {strides = array<i32>} : memref<256x128xbf16, #tpu.memory_space<vmem>>, vector<256x128xbf16>,
    return
  }
  func.func @transform_0(%arg0: i32) -> (i32, i32) {
    %c0_i32 = arith.constant 0 : i32
    %c0_i32_0 = arith.constant 0 : i32
    return %arg0, %c0_i32 : i32, i32
  }
  func.func @transform_1(%arg0: i32) -> (i32, i32) {
    %c0_i32 = arith.constant 0 : i32
    %c0_i32_0 = arith.constant 0 : i32
    %c0_i32_1 = arith.constant 0 : i32
    return %c0_i32, %c0_i32_0 : i32, i32
  }
  func.func @transform_2(%arg0: i32) -> (i32, i32) {
    %c0_i32 = arith.constant 0 : i32
    %c0_i32_0 = arith.constant 0 : i32
    %c0_i32_1 = arith.constant 0 : i32
    return %c0_i32, %c0_i32_0 : i32, i32
  }
  func.func @transform_3(%arg0: i32) -> (i32, i32) {
    %c0_i32 = arith.constant 0 : i32
    %c0_i32_0 = arith.constant 0 : i32
    %c0_i32_1 = arith.constant 0 : i32
    return %c0_i32, %c0_i32_0 : i32, i32
  }
  func.func @transform_4(%arg0: i32) -> (i32, i32) {
    %c0_i32 = arith.constant 0 : i32
    %c0_i32_0 = arith.constant 0 : i32
    %c0_i32_1 = arith.constant 0 : i32
    return %c0_i32, %c0_i32_0 : i32, i32
  }
  func.func @transform_5(%arg0: i32) -> (i32, i32) {
    %c0_i32 = arith.constant 0 : i32
    %c0_i32_0 = arith.constant 0 : i32
    return %arg0, %c0_i32 : i32, i32
  }
}

</mosaic_0001>

<llo_original>
// kernel: gcn_forward.3
$region0: #{gcn_forward.3}
  #allocation0 [shape = 'u32[]', space=smem, size = 0x4, offset = 0x4, fixed_abs, tag = 'smem constant byte address 0x4 - core index']
  #allocation1 [shape = 'u32[144,128]{1,0:T(1,128)}', space=vmem, size = 0x12000, scoped, tag = 'internal scratch']
  %s0 = inlined_call_operand.hbm [shape: bf16[512,128], index: 0, kind: input, shape index: {}]
  %s1 = inlined_call_operand.hbm [shape: bf16[128,128], index: 1, kind: input, shape index: {}]
  %s2 = inlined_call_operand.hbm [shape: bf16[128,128], index: 2, kind: input, shape index: {}]
  %s3 = inlined_call_operand.hbm [shape: bf16[128,128], index: 3, kind: input, shape index: {}]
  %s4 = inlined_call_operand.hbm [shape: f32[16,128], index: 4, kind: input, shape index: {}]
  %s5 = inlined_call_operand.vmem [shape: bf16[512,128], index: 5, kind: output, shape index: {}]
  %s6 = sld [smem:[#allocation0]]
  $region73: #{gcn_forward.3} parent=0
    _
  %s8 = ssub.s32 1, %s6
  %s9 = scalar_select 0, %s8, %s6
  $region1: #{gcn_forward.3} parent=0
    #allocation2 [shape = 'u8[131072]{0}', space=vmem, size = 0x20000, scoped, tag = 'input window, operand 0']
    #allocation3 [shape = 's32[2]{0}', space=sflag, size = 0x8, scoped, tag = 'scoped memory for gcn_forward.3']
    #allocation4 [shape = 'u8[32768]{0}', space=vmem, size = 0x8000, scoped, tag = 'input window, operand 1, single buffered']
    #allocation5 [shape = 's32[1]{0}', space=sflag, size = 0x4, scoped, tag = 'scoped memory for gcn_forward.3']
    #allocation6 [shape = 'u8[32768]{0}', space=vmem, size = 0x8000, scoped, tag = 'input window, operand 2, single buffered']
    #allocation7 [shape = 'u8[32768]{0}', space=vmem, size = 0x8000, scoped, tag = 'input window, operand 3, single buffered']
    #allocation8 [shape = 's32[1]{0}', space=sflag, size = 0x4, scoped, tag = 'scoped memory for gcn_forward.3']
    #allocation9 [shape = 'u8[8192]{0}', space=vmem, size = 0x2000, scoped, tag = 'input window, operand 4, single buffered']
    %10 = vsyncpa [#allocation3], 0
    %s11 = scalar_lea.sflag [#allocation3], 1
    %12 = vsyncpa %s11, 0
    %13 = vsyncpa [#allocation5], 0
    %14 = vsyncpa [#allocation8], 0
    loop: start=0, step=1, limit=4
    $region2: #{gcn_forward.3} parent=1 // loop_pre_header
      _
    $region3: #{gcn_forward.3} parent=1 // loop_header
      %s16 = sphi 0, %s20
      %p17 = scmp.ge.s32.totalorder %s16, 4
      %s26 = sphi 0, %s28
      %s29 = sphi 0, %s26
      %s30 = sphi 0, %s29
      %s46 = sphi 0, %s30
      %s50 = sphi 0, %s50
      %s52 = sphi 0, %s50
      %s53 = sphi 0, %s52
      %s67 = sphi 0, %s53
      %s71 = sphi 0, %s71
      %s73 = sphi 0, %s71
      %s74 = sphi 0, %s73
      %s88 = sphi 0, %s74
      %s92 = sphi 0, %s92
      %s94 = sphi 0, %s92
      %s95 = sphi 0, %s94
      %s109 = sphi 0, %s95
      %s113 = sphi 0, %s113
      %s115 = sphi 0, %s113
      %s116 = sphi 0, %s115
      %s130 = sphi 0, %s116
      %s136 = sphi 0, %s138
      %s139 = sphi 0, %s136
      %s140 = sphi 0, %s139
      %s156 = sphi 0, %s140
    $region4: #{gcn_forward.3} parent=1 // loop_header_branch
      %19 = sbr.rel (%p17) target = $region8
    $region5: #{gcn_forward.3} parent=1 // loop_body
      %s21 = ssub.s32 %s16, 1
      %s22 = ssub.s32 %s16, 2
      %s23 = sadd.s32 %s16, 1
      %s24 = ssub.s32 %s16, %s23
      %p25 = scmp.eq.s32.totalorder %s24, 0
      %s27 = sadd.s32 %s26, 1
      %s28 = scalar_select %p25, %s26, %s27
      %p31 = pneg %p25
      %p32 = scmp.eq.s32.totalorder %s16, 1
      %p33 = por %p31, %p32
      %p34 = scmp.ne.s32.totalorder %s26, %s29
      %p35 = scmp.eq.s32.totalorder %s16, 0
      %p36 = por %p34, %p35
      %p37 = scmp.ne.s32.totalorder %s26, %s29
      %p38 = scmp.eq.s32.totalorder %s21, 1
      %p39 = por %p37, %p38
      %p40 = scmp.ne.s32.totalorder %s29, %s30
      %p41 = scmp.eq.s32.totalorder %s21, 0
      %p42 = por %p40, %p41
      %p43 = scmp.ne.s32.totalorder %s29, %s30
      %p44 = scmp.eq.s32.totalorder %s22, 1
      %p45 = por %p43, %p44
      %p47 = scmp.ne.s32.totalorder %s30, %s46
      %p48 = scmp.eq.s32.totalorder %s22, 0
      %p49 = por %p47, %p48
      %s51 = sadd.s32 %s50, 1
      %p54 = scmp.eq.s32.totalorder %s16, 1
      %p55 = scmp.ne.s32.totalorder %s50, %s52
      %p56 = scmp.eq.s32.totalorder %s16, 0
      %p57 = por %p55, %p56
      %p58 = scmp.ne.s32.totalorder %s50, %s52
      %p59 = scmp.eq.s32.totalorder %s21, 1
      %p60 = por %p58, %p59
      %p61 = scmp.ne.s32.totalorder %s52, %s53
      %p62 = scmp.eq.s32.totalorder %s21, 0
      %p63 = por %p61, %p62
      %p64 = scmp.ne.s32.totalorder %s52, %s53
      %p65 = scmp.eq.s32.totalorder %s22, 1
      %p66 = por %p64, %p65
      %p68 = scmp.ne.s32.totalorder %s53, %s67
      %p69 = scmp.eq.s32.totalorder %s22, 0
      %p70 = por %p68, %p69
      %s72 = sadd.s32 %s71, 1
      %p75 = scmp.eq.s32.totalorder %s16, 1
      %p76 = scmp.ne.s32.totalorder %s71, %s73
      %p77 = scmp.eq.s32.totalorder %s16, 0
      %p78 = por %p76, %p77
      %p79 = scmp.ne.s32.totalorder %s71, %s73
      %p80 = scmp.eq.s32.totalorder %s21, 1
      %p81 = por %p79, %p80
      %p82 = scmp.ne.s32.totalorder %s73, %s74
      %p83 = scmp.eq.s32.totalorder %s21, 0
      %p84 = por %p82, %p83
      %p85 = scmp.ne.s32.totalorder %s73, %s74
      %p86 = scmp.eq.s32.totalorder %s22, 1
      %p87 = por %p85, %p86
      %p89 = scmp.ne.s32.totalorder %s74, %s88
      %p90 = scmp.eq.s32.totalorder %s22, 0
      %p91 = por %p89, %p90
      %s93 = sadd.s32 %s92, 1
      %p96 = scmp.eq.s32.totalorder %s16, 1
      %p97 = scmp.ne.s32.totalorder %s92, %s94
      %p98 = scmp.eq.s32.totalorder %s16, 0
      %p99 = por %p97, %p98
      %p100 = scmp.ne.s32.totalorder %s92, %s94
      %p101 = scmp.eq.s32.totalorder %s21, 1
      %p102 = por %p100, %p101
      %p103 = scmp.ne.s32.totalorder %s94, %s95
      %p104 = scmp.eq.s32.totalorder %s21, 0
      %p105 = por %p103, %p104
      %p106 = scmp.ne.s32.totalorder %s94, %s95
      %p107 = scmp.eq.s32.totalorder %s22, 1
      %p108 = por %p106, %p107
      %p110 = scmp.ne.s32.totalorder %s95, %s109
      %p111 = scmp.eq.s32.totalorder %s22, 0
      %p112 = por %p110, %p111
      %s114 = sadd.s32 %s113, 1
      %p117 = scmp.eq.s32.totalorder %s16, 1
      %p118 = scmp.ne.s32.totalorder %s113, %s115
      %p119 = scmp.eq.s32.totalorder %s16, 0
      %p120 = por %p118, %p119
      %p121 = scmp.ne.s32.totalorder %s113, %s115
      %p122 = scmp.eq.s32.totalorder %s21, 1
      %p123 = por %p121, %p122
      %p124 = scmp.ne.s32.totalorder %s115, %s116
      %p125 = scmp.eq.s32.totalorder %s21, 0
      %p126 = por %p124, %p125
      %p127 = scmp.ne.s32.totalorder %s115, %s116
      %p128 = scmp.eq.s32.totalorder %s22, 1
      %p129 = por %p127, %p128
      %p131 = scmp.ne.s32.totalorder %s116, %s130
      %p132 = scmp.eq.s32.totalorder %s22, 0
      %p133 = por %p131, %p132
      %s134 = ssub.s32 %s16, %s23
      %p135 = scmp.eq.s32.totalorder %s134, 0
      %s137 = sadd.s32 %s136, 1
      %s138 = scalar_select %p135, %s136, %s137
      %p141 = pneg %p135
      %p142 = scmp.eq.s32.totalorder %s16, 1
      %p143 = por %p141, %p142
      %p144 = scmp.ne.s32.totalorder %s136, %s139
      %p145 = scmp.eq.s32.totalorder %s16, 0
      %p146 = por %p144, %p145
      %p147 = scmp.ne.s32.totalorder %s136, %s139
      %p148 = scmp.eq.s32.totalorder %s21, 1
      %p149 = por %p147, %p148
      %p150 = scmp.ne.s32.totalorder %s139, %s140
      %p151 = scmp.eq.s32.totalorder %s21, 0
      %p152 = por %p150, %p151
      %p153 = scmp.ne.s32.totalorder %s139, %s140
      %p154 = scmp.eq.s32.totalorder %s22, 1
      %p155 = por %p153, %p154
      %p157 = scmp.ne.s32.totalorder %s140, %s156
      %p158 = scmp.eq.s32.totalorder %s22, 0
      %p159 = por %p157, %p158
      %p160 = scmp.le.s32.totalorder 1, %s16
      %p161 = scmp.lt.s32.totalorder %s16, 3
      %p162 = pnand %p160, %p161
      %p163 = pneg %p162
      // Predicated region
      $region9: #{gcn_forward.3} parent=5 // pred_check
        _
      $region10: #{gcn_forward.3} parent=5 // pred_check_branch
        %165 = sbr.rel (%p162) target = $region12
      $region11: #{gcn_forward.3} parent=5 // pred_region
        %s166 = ssub.s32 %s16, 1
        // Predicated region
        $region13: #{gcn_forward.3} parent=11 // pred_check
          %p167 = pneg %p63
        $region14: #{gcn_forward.3} parent=11 // pred_check_branch
          %169 = sbr.rel (%p167) target = $region16
        $region15: #{gcn_forward.3} parent=11 // pred_region
          %s171 = ssub.s32 1024, 1024
          %172 = vsyncadd [#allocation5], %s171
          %s173 = sshll.u32 [#allocation4], 4
          %s174 = int_to_ptr.vmem [resolvable:$true] %s173
          %179 = dma.hbm_to_vmem [thread:$0]  %s1, 1024, %s174, [#allocation5], 64, 64, 4
        $region16: #{gcn_forward.3} parent=11 // pred_fallthru
          _
        // Predicated region
        $region17: #{gcn_forward.3} parent=11 // pred_check
          %p180 = pneg %p84
        $region18: #{gcn_forward.3} parent=11 // pred_check_branch
          %182 = sbr.rel (%p180) target = $region20
        $region19: #{gcn_forward.3} parent=11 // pred_region
          %s184 = ssub.s32 1024, 1024
          %185 = vsyncadd [#allocation5], %s184
          %s186 = sshll.u32 [#allocation6], 4
          %s187 = int_to_ptr.vmem [resolvable:$true] %s186
          %192 = dma.hbm_to_vmem [thread:$0]  %s2, 1024, %s187, [#allocation5], 64, 64, 4
        $region20: #{gcn_forward.3} parent=11 // pred_fallthru
          _
        // Predicated region
        $region21: #{gcn_forward.3} parent=11 // pred_check
          %p193 = pneg %p105
        $region22: #{gcn_forward.3} parent=11 // pred_check_branch
          %195 = sbr.rel (%p193) target = $region24
        $region23: #{gcn_forward.3} parent=11 // pred_region
          %s197 = ssub.s32 1024, 1024
          %198 = vsyncadd [#allocation8], %s197
          %s199 = sshll.u32 [#allocation7], 4
          %s200 = int_to_ptr.vmem [resolvable:$true] %s199
          %205 = dma.hbm_to_vmem [thread:$0]  %s3, 1024, %s200, [#allocation8], 64, 64, 4
        $region24: #{gcn_forward.3} parent=11 // pred_fallthru
          _
        // Predicated region
        $region25: #{gcn_forward.3} parent=11 // pred_check
          %p206 = pneg %p126
        $region26: #{gcn_forward.3} parent=11 // pred_check_branch
          %208 = sbr.rel (%p206) target = $region28
        $region27: #{gcn_forward.3} parent=11 // pred_region
          %s210 = ssub.s32 256, 256
          %211 = vsyncadd [#allocation8], %s210
          %s212 = sshll.u32 [#allocation9], 4
          %s213 = int_to_ptr.vmem [resolvable:$true] %s212
          %218 = dma.hbm_to_vmem [thread:$0]  %s4, 256, %s213, [#allocation8], 128, 128, 8
        $region28: #{gcn_forward.3} parent=11 // pred_fallthru
          _
      $region12: #{gcn_forward.3} parent=5 // pred_fallthru
        _
      %p219 = scmp.lt.s32.totalorder %s16, 2
      // Predicated region
      $region29: #{gcn_forward.3} parent=5 // pred_check
        %p220 = pneg %p219
      $region30: #{gcn_forward.3} parent=5 // pred_check_branch
        %222 = sbr.rel (%p220) target = $region32
      $region31: #{gcn_forward.3} parent=5 // pred_region
        // Predicated region
        $region33: #{gcn_forward.3} parent=31 // pred_check
          %p223 = pneg %p36
        $region34: #{gcn_forward.3} parent=31 // pred_check_branch
          %225 = sbr.rel (%p223) target = $region36
        $region35: #{gcn_forward.3} parent=31 // pred_region
          %s226 = sand.u32 %s26, 1
          %s227 = scalar_lea.sflag [#allocation3], %s226
          %s228 = sand.u32 %s26, 1
          %s229 = smul.addr %s228, 128
          %s230 = scalar_lea.vmem [#allocation2], %s229
          %s231 = smul.u32 32, %s16
          %s233 = ssub.s32 2048, 2048
          %234 = vsyncadd %s227, %s233
          %s235 = smul.addr %s231, 64
          %s236 = scalar_lea.hbm %s0, %s235
          %s237 = sshll.u32 %s230, 4
          %s238 = int_to_ptr.vmem [resolvable:$true] %s237
          %243 = dma.hbm_to_vmem [thread:$0]  %s236, 2048, %s238, %s227, 64, 64, 4
        $region36: #{gcn_forward.3} parent=31 // pred_fallthru
          _
      $region32: #{gcn_forward.3} parent=5 // pred_fallthru
        _
      %p244 = scmp.le.s32.totalorder 1, %s16
      %p245 = scmp.lt.s32.totalorder %s16, 3
      %p246 = pnand %p244, %p245
      %p247 = pneg %p246
      // Predicated region
      $region37: #{gcn_forward.3} parent=5 // pred_check
        _
      $region38: #{gcn_forward.3} parent=5 // pred_check_branch
        %249 = sbr.rel (%p246) target = $region40
      $region39: #{gcn_forward.3} parent=5 // pred_region
        %s250 = ssub.s32 %s16, 1
        %s251 = sand.u32 %s29, 1
        %s252 = scalar_lea.sflag [#allocation3], %s251
        %s253 = sand.u32 %s29, 1
        %s254 = smul.addr %s253, 128
        %s255 = scalar_lea.vmem [#allocation2], %s254
        // Predicated region
        $region41: #{gcn_forward.3} parent=39 // pred_check
          %p256 = pneg %p42
        $region42: #{gcn_forward.3} parent=39 // pred_check_branch
          %258 = sbr.rel (%p256) target = $region44
        $region43: #{gcn_forward.3} parent=39 // pred_region
          %259 = dma.done %s252, 2048
        $region44: #{gcn_forward.3} parent=39 // pred_fallthru
          _
        // Predicated region
        $region45: #{gcn_forward.3} parent=39 // pred_check
          %p260 = pneg %p63
        $region46: #{gcn_forward.3} parent=39 // pred_check_branch
          %262 = sbr.rel (%p260) target = $region48
        $region47: #{gcn_forward.3} parent=39 // pred_region
          %263 = dma.done [#allocation5], 1024
        $region48: #{gcn_forward.3} parent=39 // pred_fallthru
          _
        // Predicated region
        $region49: #{gcn_forward.3} parent=39 // pred_check
          %p264 = pneg %p84
        $region50: #{gcn_forward.3} parent=39 // pred_check_branch
          %266 = sbr.rel (%p264) target = $region52
        $region51: #{gcn_forward.3} parent=39 // pred_region
          %267 = dma.done [#allocation5], 1024
        $region52: #{gcn_forward.3} parent=39 // pred_fallthru
          _
        // Predicated region
        $region53: #{gcn_forward.3} parent=39 // pred_check
          %p268 = pneg %p105
        $region54: #{gcn_forward.3} parent=39 // pred_check_branch
          %270 = sbr.rel (%p268) target = $region56
        $region55: #{gcn_forward.3} parent=39 // pred_region
          %271 = dma.done [#allocation8], 1024
        $region56: #{gcn_forward.3} parent=39 // pred_fallthru
          _
        // Predicated region
        $region57: #{gcn_forward.3} parent=39 // pred_check
          %p272 = pneg %p126
        $region58: #{gcn_forward.3} parent=39 // pred_check_branch
          %274 = sbr.rel (%p272) target = $region60
        $region59: #{gcn_forward.3} parent=39 // pred_region
          %275 = dma.done [#allocation8], 256
        $region60: #{gcn_forward.3} parent=39 // pred_fallthru
          _
        %s276 = sand.u32 %s29, 1
        %s277 = scalar_lea.sflag [#allocation3], %s276
        %s278 = sand.u32 %s29, 1
        %s279 = smul.addr %s278, 128
        %s280 = scalar_lea.vmem [#allocation2], %s279
        %p281 = pneg %p42
        %p282 = pneg %p39
        %p283 = pneg %p63
        %p284 = pneg %p60
        %p285 = pneg %p84
        %p286 = pneg %p81
        %p287 = pneg %p105
        %p288 = pneg %p102
        %p289 = pneg %p126
        %p290 = pneg %p123
        %p291 = pneg %p152
        %p292 = pneg %p149
        %s293 = smul.u32 32, %s21
        %p294 = scmp.lt.s32.totalorder %s293, 63
        %s295 = scalar_select %p294, %s293, 63
        %s296 = smul.addr %s295, 4
        %s297 = scalar_lea.vmem %s5, %s296
        %s298 = smul.u32 32, %s21
        %s299 = smul.u32 32, %s21
        %p300 = scmp.lt.s32.totalorder %s299, 63
        %s301 = scalar_select %p300, %s299, 63
        %s302 = smul.addr %s301, 4
        %s303 = scalar_lea.vmem %s5, %s302
        %s304 = smul.u32 32, %s21
        %v306 = vld [vmem:[#allocation9] sm:$0xff]
        %v307 = vld [vmem:[%s255] sm:$0xf]
        %v308 = vld [vmem:[%s255 + $0x4] sm:$0xf]
        %v309 = vld [vmem:[%s255 + $0x8] sm:$0xf]
        %v310 = vld [vmem:[%s255 + $0xc] sm:$0xf]
        %v311 = vld [vmem:[%s255 + $0x10] sm:$0xf]
        %v312 = vld [vmem:[%s255 + $0x14] sm:$0xf]
        %v313 = vld [vmem:[%s255 + $0x18] sm:$0xf]
        %v314 = vld [vmem:[%s255 + $0x1c] sm:$0xf]
        %v315 = vld [vmem:[%s255 + $0x20] sm:$0xf]
        %v316 = vld [vmem:[%s255 + $0x24] sm:$0xf]
        %v317 = vld [vmem:[%s255 + $0x28] sm:$0xf]
        %v318 = vld [vmem:[%s255 + $0x2c] sm:$0xf]
        %v319 = vld [vmem:[%s255 + $0x30] sm:$0xf]
        %v320 = vld [vmem:[%s255 + $0x34] sm:$0xf]
        %v321 = vld [vmem:[%s255 + $0x38] sm:$0xf]
        %v322 = vld [vmem:[%s255 + $0x3c] sm:$0xf]
        %v323 = vld [vmem:[%s255 + $0x40] sm:$0xf]
        %v324 = vld [vmem:[%s255 + $0x44] sm:$0xf]
        %v325 = vld [vmem:[%s255 + $0x48] sm:$0xf]
        %v326 = vld [vmem:[%s255 + $0x4c] sm:$0xf]
        %v327 = vld [vmem:[%s255 + $0x50] sm:$0xf]
        %v328 = vld [vmem:[%s255 + $0x54] sm:$0xf]
        %v329 = vld [vmem:[%s255 + $0x58] sm:$0xf]
        %v330 = vld [vmem:[%s255 + $0x5c] sm:$0xf]
        %v331 = vld [vmem:[%s255 + $0x60] sm:$0xf]
        %v332 = vld [vmem:[%s255 + $0x64] sm:$0xf]
        %v333 = vld [vmem:[%s255 + $0x68] sm:$0xf]
        %v334 = vld [vmem:[%s255 + $0x6c] sm:$0xf]
        %v335 = vld [vmem:[%s255 + $0x70] sm:$0xf]
        %v336 = vld [vmem:[%s255 + $0x74] sm:$0xf]
        %v337 = vld [vmem:[%s255 + $0x78] sm:$0xf]
        %v338 = vld [vmem:[%s255 + $0x7c] sm:$0xf]
        %v339 = vld [vmem:[#allocation4] sm:$0xf]
        %v340 = vld [vmem:[#allocation4 + $0x4] sm:$0xf]
        %v341 = vld [vmem:[#allocation4 + $0x8] sm:$0xf]
        %v342 = vld [vmem:[#allocation4 + $0xc] sm:$0xf]
        %v343 = vld [vmem:[#allocation4 + $0x10] sm:$0xf]
        %v344 = vld [vmem:[#allocation4 + $0x14] sm:$0xf]
        %v345 = vld [vmem:[#allocation4 + $0x18] sm:$0xf]
        %v346 = vld [vmem:[#allocation4 + $0x1c] sm:$0xf]
        %v347 = vld [vmem:[#allocation4 + $0x20] sm:$0xf]
        %v348 = vld [vmem:[#allocation4 + $0x24] sm:$0xf]
        %v349 = vld [vmem:[#allocation4 + $0x28] sm:$0xf]
        %v350 = vld [vmem:[#allocation4 + $0x2c] sm:$0xf]
        %v351 = vld [vmem:[#allocation4 + $0x30] sm:$0xf]
        %v352 = vld [vmem:[#allocation4 + $0x34] sm:$0xf]
        %v353 = vld [vmem:[#allocation4 + $0x38] sm:$0xf]
        %v354 = vld [vmem:[#allocation4 + $0x3c] sm:$0xf]
        %v355 = vlaneseq
        %v356 = vshrl.u32 %v355, 7
        %v357 = vsub.s32 0, %v356
        %v358 = vrot.slane %v306, %v357
        %v391 = vunpack.c.l.b16 %v307
        %v392 = vunpack.c.l.b16 %v308
        %v393 = vunpack.c.l.b16 %v309
        %v394 = vunpack.c.l.b16 %v310
        %v395 = vunpack.c.l.b16 %v311
        %v396 = vunpack.c.l.b16 %v312
        %v397 = vunpack.c.l.b16 %v313
        %v398 = vunpack.c.l.b16 %v314
        %v399 = vunpack.c.l.b16 %v315
        %v400 = vunpack.c.l.b16 %v316
        %v401 = vunpack.c.l.b16 %v317
        %v402 = vunpack.c.l.b16 %v318
        %v403 = vunpack.c.l.b16 %v319
        %v404 = vunpack.c.l.b16 %v320
        %v405 = vunpack.c.l.b16 %v321
        %v406 = vunpack.c.l.b16 %v322
        %v407 = vunpack.c.l.b16 %v323
        %v408 = vunpack.c.l.b16 %v324
        %v409 = vunpack.c.l.b16 %v325
        %v410 = vunpack.c.l.b16 %v326
        %v411 = vunpack.c.l.b16 %v327
        %v412 = vunpack.c.l.b16 %v328
        %v413 = vunpack.c.l.b16 %v329
        %v414 = vunpack.c.l.b16 %v330
        %v415 = vunpack.c.l.b16 %v331
        %v416 = vunpack.c.l.b16 %v332
        %v417 = vunpack.c.l.b16 %v333
        %v418 = vunpack.c.l.b16 %v334
        %v419 = vunpack.c.l.b16 %v335
        %v420 = vunpack.c.l.b16 %v336
        %v421 = vunpack.c.l.b16 %v337
        %v422 = vunpack.c.l.b16 %v338
        %v423 = vpack.c.b16 %v392, %v391
        %v424 = vpack.c.b16 %v394, %v393
        %v425 = vpack.c.b16 %v396, %v395
        %v426 = vpack.c.b16 %v398, %v397
        %v427 = vpack.c.b16 %v400, %v399
        %v428 = vpack.c.b16 %v402, %v401
        %v429 = vpack.c.b16 %v404, %v403
        %v430 = vpack.c.b16 %v406, %v405
        %v431 = vpack.c.b16 %v408, %v407
        %v432 = vpack.c.b16 %v410, %v409
        %v433 = vpack.c.b16 %v412, %v411
        %v434 = vpack.c.b16 %v414, %v413
        %v435 = vpack.c.b16 %v416, %v415
        %v436 = vpack.c.b16 %v418, %v417
        %v437 = vpack.c.b16 %v420, %v419
        %v438 = vpack.c.b16 %v422, %v421
        %v471 = vunpack.c.l.b16 %v339
        %v472 = vunpack.c.l.b16 %v340
        %v473 = vunpack.c.l.b16 %v341
        %v474 = vunpack.c.l.b16 %v342
        %v475 = vunpack.c.l.b16 %v343
        %v476 = vunpack.c.l.b16 %v344
        %v477 = vunpack.c.l.b16 %v345
        %v478 = vunpack.c.l.b16 %v346
        %v479 = vunpack.c.l.b16 %v347
        %v480 = vunpack.c.l.b16 %v348
        %v481 = vunpack.c.l.b16 %v349
        %v482 = vunpack.c.l.b16 %v350
        %v483 = vunpack.c.l.b16 %v351
        %v484 = vunpack.c.l.b16 %v352
        %v485 = vunpack.c.l.b16 %v353
        %v486 = vunpack.c.l.b16 %v354
        %v487 = vpack.c.b16 %v472, %v471
        %v488 = vpack.c.b16 %v474, %v473
        %v489 = vpack.c.b16 %v476, %v475
        %v490 = vpack.c.b16 %v478, %v477
        %v491 = vpack.c.b16 %v480, %v479
        %v492 = vpack.c.b16 %v482, %v481
        %v493 = vpack.c.b16 %v484, %v483
        %v494 = vpack.c.b16 %v486, %v485
        %503 = vmatprep.subr.bf16.mxu0 0
        %504 = vmatpush1.bf16.msra.mxu0 %v494
        %505 = vmatprep.subr.bf16.mxu0 0
        %506 = vmatpush1.bf16.msra.mxu0 %v493
        %507 = vmatprep.subr.bf16.mxu0 0
        %508 = vmatpush1.bf16.msra.mxu0 %v492
        %509 = vmatprep.subr.bf16.mxu0 0
        %510 = vmatpush1.bf16.msra.mxu0 %v491
        %511 = vmatprep.subr.bf16.mxu0 0
        %512 = vmatpush1.bf16.msra.mxu0 %v490
        %513 = vmatprep.subr.bf16.mxu0 0
        %514 = vmatpush1.bf16.msra.mxu0 %v489
        %515 = vmatprep.subr.bf16.mxu0 0
        %516 = vmatpush1.bf16.msra.mxu0 %v488
        %517 = vmatprep.subr.bf16.mxu0 0
        %518 = vmatpush1.bf16.msra.mxu0 %v487
        %519 = vmatprep.subr.bf16.mxu0 0
        %520 = vmatpush2.bf16.msra.mxu0 0
        %521 = vmatprep.subr.bf16.mxu0 0
        %522 = vmatpush2.bf16.msra.mxu0 0
        %523 = vmatprep.subr.bf16.mxu0 0
        %524 = vmatpush2.bf16.msra.mxu0 0
        %525 = vmatprep.subr.bf16.mxu0 0
        %526 = vmatpush2.bf16.msra.mxu0 0
        %527 = vmatprep.subr.bf16.mxu0 0
        %528 = vmatpush2.bf16.msra.mxu0 0
        %529 = vmatprep.subr.bf16.mxu0 0
        %530 = vmatpush2.bf16.msra.mxu0 0
        %531 = vmatprep.subr.bf16.mxu0 0
        %532 = vmatpush2.bf16.msra.mxu0 0
        %533 = vmatprep.subr.bf16.mxu0 0
        %534 = vmatpush2.bf16.msra.mxu0 0
        %535 = vmatprep.mubr.bf16.mxu0 0
        %536 = vmatmul.mubr.bf16.gmra.mxu0 %v423
        %v537 = vpop.f32.mrf.mxu0
        %v538 = vadd.f32 %v358, %v537
        %v539 = vpop.f32.mrf.mxu0
        %v540 = vpop.f32.mrf.mxu0
        %v541 = vadd.f32 %v358, %v540
        %v542 = vpop.f32.mrf.mxu0
        %543 = vmatprep.mubr.bf16.mxu0 0
        %544 = vmatmul.mubr.bf16.gmra.mxu0 %v424
        %v545 = vpop.f32.mrf.mxu0
        %v546 = vadd.f32 %v358, %v545
        %v547 = vpop.f32.mrf.mxu0
        %v548 = vpop.f32.mrf.mxu0
        %v549 = vadd.f32 %v358, %v548
        %v550 = vpop.f32.mrf.mxu0
        %551 = vmatprep.mubr.bf16.mxu0 0
        %552 = vmatmul.mubr.bf16.gmra.mxu0 %v425
        %v553 = vpop.f32.mrf.mxu0
        %v554 = vadd.f32 %v358, %v553
        %v555 = vpop.f32.mrf.mxu0
        %v556 = vpop.f32.mrf.mxu0
        %v557 = vadd.f32 %v358, %v556
        %v558 = vpop.f32.mrf.mxu0
        %559 = vmatprep.mubr.bf16.mxu0 0
        %560 = vmatmul.mubr.bf16.gmra.mxu0 %v426
        %v561 = vpop.f32.mrf.mxu0
        %v562 = vadd.f32 %v358, %v561
        %v563 = vpop.f32.mrf.mxu0
        %v564 = vpop.f32.mrf.mxu0
        %v565 = vadd.f32 %v358, %v564
        %v566 = vpop.f32.mrf.mxu0
        %567 = vmatprep.mubr.bf16.mxu0 0
        %568 = vmatmul.mubr.bf16.gmra.mxu0 %v427
        %v569 = vpop.f32.mrf.mxu0
        %v570 = vadd.f32 %v358, %v569
        %v571 = vpop.f32.mrf.mxu0
        %v572 = vpop.f32.mrf.mxu0
        %v573 = vadd.f32 %v358, %v572
        %v574 = vpop.f32.mrf.mxu0
        %575 = vmatprep.mubr.bf16.mxu0 0
        %576 = vmatmul.mubr.bf16.gmra.mxu0 %v428
        %v577 = vpop.f32.mrf.mxu0
        %v578 = vadd.f32 %v358, %v577
        %v579 = vpop.f32.mrf.mxu0
        %v580 = vpop.f32.mrf.mxu0
        %v581 = vadd.f32 %v358, %v580
        %v582 = vpop.f32.mrf.mxu0
        %583 = vmatprep.mubr.bf16.mxu0 0
        %584 = vmatmul.mubr.bf16.gmra.mxu0 %v429
        %v585 = vpop.f32.mrf.mxu0
        %v586 = vadd.f32 %v358, %v585
        %v587 = vpop.f32.mrf.mxu0
        %v588 = vpop.f32.mrf.mxu0
        %v589 = vadd.f32 %v358, %v588
        %v590 = vpop.f32.mrf.mxu0
        %591 = vmatprep.mubr.bf16.mxu0 0
        %592 = vmatmul.mubr.bf16.gmra.mxu0 %v430
        %v593 = vpop.f32.mrf.mxu0
        %v594 = vadd.f32 %v358, %v593
        %v595 = vpop.f32.mrf.mxu0
        %v596 = vpop.f32.mrf.mxu0
        %v597 = vadd.f32 %v358, %v596
        %v598 = vpop.f32.mrf.mxu0
        %599 = vmatprep.mubr.bf16.mxu0 0
        %600 = vmatmul.mubr.bf16.gmra.mxu0 %v431
        %v601 = vpop.f32.mrf.mxu0
        %v602 = vadd.f32 %v358, %v601
        %v603 = vpop.f32.mrf.mxu0
        %v604 = vpop.f32.mrf.mxu0
        %v605 = vadd.f32 %v358, %v604
        %v606 = vpop.f32.mrf.mxu0
        %607 = vmatprep.mubr.bf16.mxu0 0
        %608 = vmatmul.mubr.bf16.gmra.mxu0 %v432
        %v609 = vpop.f32.mrf.mxu0
        %v610 = vadd.f32 %v358, %v609
        %v611 = vpop.f32.mrf.mxu0
        %v612 = vpop.f32.mrf.mxu0
        %v613 = vadd.f32 %v358, %v612
        %v614 = vpop.f32.mrf.mxu0
        %615 = vmatprep.mubr.bf16.mxu0 0
        %616 = vmatmul.mubr.bf16.gmra.mxu0 %v433
        %v617 = vpop.f32.mrf.mxu0
        %v618 = vadd.f32 %v358, %v617
        %v619 = vpop.f32.mrf.mxu0
        %v620 = vpop.f32.mrf.mxu0
        %v621 = vadd.f32 %v358, %v620
        %v622 = vpop.f32.mrf.mxu0
        %623 = vmatprep.mubr.bf16.mxu0 0
        %624 = vmatmul.mubr.bf16.gmra.mxu0 %v434
        %v625 = vpop.f32.mrf.mxu0
        %v626 = vadd.f32 %v358, %v625
        %v627 = vpop.f32.mrf.mxu0
        %v628 = vpop.f32.mrf.mxu0
        %v629 = vadd.f32 %v358, %v628
        %v630 = vpop.f32.mrf.mxu0
        %631 = vmatprep.mubr.bf16.mxu0 0
        %632 = vmatmul.mubr.bf16.gmra.mxu0 %v435
        %v633 = vpop.f32.mrf.mxu0
        %v634 = vadd.f32 %v358, %v633
        %v635 = vpop.f32.mrf.mxu0
        %v636 = vpop.f32.mrf.mxu0
        %v637 = vadd.f32 %v358, %v636
        %v638 = vpop.f32.mrf.mxu0
        %639 = vmatprep.mubr.bf16.mxu0 0
        %640 = vmatmul.mubr.bf16.gmra.mxu0 %v436
        %v641 = vpop.f32.mrf.mxu0
        %v642 = vadd.f32 %v358, %v641
        %v643 = vpop.f32.mrf.mxu0
        %v644 = vpop.f32.mrf.mxu0
        %v645 = vadd.f32 %v358, %v644
        %v646 = vpop.f32.mrf.mxu0
        %647 = vmatprep.mubr.bf16.mxu0 0
        %648 = vmatmul.mubr.bf16.gmra.mxu0 %v437
        %v649 = vpop.f32.mrf.mxu0
        %v650 = vadd.f32 %v358, %v649
        %v651 = vpop.f32.mrf.mxu0
        %v652 = vpop.f32.mrf.mxu0
        %v653 = vadd.f32 %v358, %v652
        %v654 = vpop.f32.mrf.mxu0
        %655 = vmatprep.mubr.bf16.mxu0 0
        %656 = vmatmul.mubr.bf16.gmra.mxu0 %v438
        %v657 = vpop.f32.mrf.mxu0
        %v658 = vadd.f32 %v358, %v657
        %v659 = vpop.f32.mrf.mxu0
        %v660 = vpop.f32.mrf.mxu0
        %v661 = vadd.f32 %v358, %v660
        %v662 = vpop.f32.mrf.mxu0
        %663 = vdwg.mxu0
        %v664 = vlaneseq
        %v665 = vshrl.u32 %v664, 7
        %v666 = vsub.s32 1, %v665
        %v667 = vrot.slane %v306, %v666
        %v668 = vmul.f32 %v538, %v667
        %v669 = vmul.f32 %v541, %v667
        %v670 = vmul.f32 %v546, %v667
        %v671 = vmul.f32 %v549, %v667
        %v672 = vmul.f32 %v554, %v667
        %v673 = vmul.f32 %v557, %v667
        %v674 = vmul.f32 %v562, %v667
        %v675 = vmul.f32 %v565, %v667
        %v676 = vmul.f32 %v570, %v667
        %v677 = vmul.f32 %v573, %v667
        %v678 = vmul.f32 %v578, %v667
        %v679 = vmul.f32 %v581, %v667
        %v680 = vmul.f32 %v586, %v667
        %v681 = vmul.f32 %v589, %v667
        %v682 = vmul.f32 %v594, %v667
        %v683 = vmul.f32 %v597, %v667
        %v684 = vmul.f32 %v602, %v667
        %v685 = vmul.f32 %v605, %v667
        %v686 = vmul.f32 %v610, %v667
        %v687 = vmul.f32 %v613, %v667
        %v688 = vmul.f32 %v618, %v667
        %v689 = vmul.f32 %v621, %v667
        %v690 = vmul.f32 %v626, %v667
        %v691 = vmul.f32 %v629, %v667
        %v692 = vmul.f32 %v634, %v667
        %v693 = vmul.f32 %v637, %v667
        %v694 = vmul.f32 %v642, %v667
        %v695 = vmul.f32 %v645, %v667
        %v696 = vmul.f32 %v650, %v667
        %v697 = vmul.f32 %v653, %v667
        %v698 = vmul.f32 %v658, %v667
        %v699 = vmul.f32 %v661, %v667
        %v700 = vlaneseq
        %v701 = vshrl.u32 %v700, 7
        %v702 = vsub.s32 2, %v701
        %v703 = vrot.slane %v306, %v702
        %v704 = vadd.f32 %v668, %v703
        %v705 = vadd.f32 %v669, %v703
        %v706 = vadd.f32 %v670, %v703
        %v707 = vadd.f32 %v671, %v703
        %v708 = vadd.f32 %v672, %v703
        %v709 = vadd.f32 %v673, %v703
        %v710 = vadd.f32 %v674, %v703
        %v711 = vadd.f32 %v675, %v703
        %v712 = vadd.f32 %v676, %v703
        %v713 = vadd.f32 %v677, %v703
        %v714 = vadd.f32 %v678, %v703
        %v715 = vadd.f32 %v679, %v703
        %v716 = vadd.f32 %v680, %v703
        %v717 = vadd.f32 %v681, %v703
        %v718 = vadd.f32 %v682, %v703
        %v719 = vadd.f32 %v683, %v703
        %v720 = vadd.f32 %v684, %v703
        %v721 = vadd.f32 %v685, %v703
        %v722 = vadd.f32 %v686, %v703
        %v723 = vadd.f32 %v687, %v703
        %v724 = vadd.f32 %v688, %v703
        %v725 = vadd.f32 %v689, %v703
        %v726 = vadd.f32 %v690, %v703
        %v727 = vadd.f32 %v691, %v703
        %v728 = vadd.f32 %v692, %v703
        %v729 = vadd.f32 %v693, %v703
        %v730 = vadd.f32 %v694, %v703
        %v731 = vadd.f32 %v695, %v703
        %v732 = vadd.f32 %v696, %v703
        %v733 = vadd.f32 %v697, %v703
        %v734 = vadd.f32 %v698, %v703
        %v735 = vadd.f32 %v699, %v703
        %v736 = vmax.f32 %v704, 0.0
        %v737 = vmax.f32 %v705, 0.0
        %v738 = vmax.f32 %v706, 0.0
        %v739 = vmax.f32 %v707, 0.0
        %v740 = vmax.f32 %v708, 0.0
        %v741 = vmax.f32 %v709, 0.0
        %v742 = vmax.f32 %v710, 0.0
        %v743 = vmax.f32 %v711, 0.0
        %v744 = vmax.f32 %v712, 0.0
        %v745 = vmax.f32 %v713, 0.0
        %v746 = vmax.f32 %v714, 0.0
        %v747 = vmax.f32 %v715, 0.0
        %v748 = vmax.f32 %v716, 0.0
        %v749 = vmax.f32 %v717, 0.0
        %v750 = vmax.f32 %v718, 0.0
        %v751 = vmax.f32 %v719, 0.0
        %v752 = vmax.f32 %v720, 0.0
        %v753 = vmax.f32 %v721, 0.0
        %v754 = vmax.f32 %v722, 0.0
        %v755 = vmax.f32 %v723, 0.0
        %v756 = vmax.f32 %v724, 0.0
        %v757 = vmax.f32 %v725, 0.0
        %v758 = vmax.f32 %v726, 0.0
        %v759 = vmax.f32 %v727, 0.0
        %v760 = vmax.f32 %v728, 0.0
        %v761 = vmax.f32 %v729, 0.0
        %v762 = vmax.f32 %v730, 0.0
        %v763 = vmax.f32 %v731, 0.0
        %v764 = vmax.f32 %v732, 0.0
        %v765 = vmax.f32 %v733, 0.0
        %v766 = vmax.f32 %v734, 0.0
        %v767 = vmax.f32 %v735, 0.0
        %v768 = vpack.c.bf16 %v737, %v736
        %v769 = vpack.c.bf16 %v739, %v738
        %v770 = vpack.c.bf16 %v741, %v740
        %v771 = vpack.c.bf16 %v743, %v742
        %v772 = vpack.c.bf16 %v745, %v744
        %v773 = vpack.c.bf16 %v747, %v746
        %v774 = vpack.c.bf16 %v749, %v748
        %v775 = vpack.c.bf16 %v751, %v750
        %v776 = vpack.c.bf16 %v753, %v752
        %v777 = vpack.c.bf16 %v755, %v754
        %v778 = vpack.c.bf16 %v757, %v756
        %v779 = vpack.c.bf16 %v759, %v758
        %v780 = vpack.c.bf16 %v761, %v760
        %v781 = vpack.c.bf16 %v763, %v762
        %v782 = vpack.c.bf16 %v765, %v764
        %v783 = vpack.c.bf16 %v767, %v766
        %v784 = vld [vmem:[#allocation6] sm:$0xf]
        %v785 = vld [vmem:[#allocation6 + $0x4] sm:$0xf]
        %v786 = vld [vmem:[#allocation6 + $0x8] sm:$0xf]
        %v787 = vld [vmem:[#allocation6 + $0xc] sm:$0xf]
        %v788 = vld [vmem:[#allocation6 + $0x10] sm:$0xf]
        %v789 = vld [vmem:[#allocation6 + $0x14] sm:$0xf]
        %v790 = vld [vmem:[#allocation6 + $0x18] sm:$0xf]
        %v791 = vld [vmem:[#allocation6 + $0x1c] sm:$0xf]
        %v792 = vld [vmem:[#allocation6 + $0x20] sm:$0xf]
        %v793 = vld [vmem:[#allocation6 + $0x24] sm:$0xf]
        %v794 = vld [vmem:[#allocation6 + $0x28] sm:$0xf]
        %v795 = vld [vmem:[#allocation6 + $0x2c] sm:$0xf]
        %v796 = vld [vmem:[#allocation6 + $0x30] sm:$0xf]
        %v797 = vld [vmem:[#allocation6 + $0x34] sm:$0xf]
        %v798 = vld [vmem:[#allocation6 + $0x38] sm:$0xf]
        %v799 = vld [vmem:[#allocation6 + $0x3c] sm:$0xf]
        %v800 = vlaneseq
        %v801 = vshrl.u32 %v800, 7
        %v802 = vsub.s32 3, %v801
        %v803 = vrot.slane %v306, %v802
        %v820 = vunpack.c.l.b16 %v784
        %v821 = vunpack.c.l.b16 %v785
        %v822 = vunpack.c.l.b16 %v786
        %v823 = vunpack.c.l.b16 %v787
        %v824 = vunpack.c.l.b16 %v788
        %v825 = vunpack.c.l.b16 %v789
        %v826 = vunpack.c.l.b16 %v790
        %v827 = vunpack.c.l.b16 %v791
        %v828 = vunpack.c.l.b16 %v792
        %v829 = vunpack.c.l.b16 %v793
        %v830 = vunpack.c.l.b16 %v794
        %v831 = vunpack.c.l.b16 %v795
        %v832 = vunpack.c.l.b16 %v796
        %v833 = vunpack.c.l.b16 %v797
        %v834 = vunpack.c.l.b16 %v798
        %v835 = vunpack.c.l.b16 %v799
        %v836 = vpack.c.b16 %v821, %v820
        %v837 = vpack.c.b16 %v823, %v822
        %v838 = vpack.c.b16 %v825, %v824
        %v839 = vpack.c.b16 %v827, %v826
        %v840 = vpack.c.b16 %v829, %v828
        %v841 = vpack.c.b16 %v831, %v830
        %v842 = vpack.c.b16 %v833, %v832
        %v843 = vpack.c.b16 %v835, %v834
        %852 = vmatprep.subr.bf16.mxu0 0
        %853 = vmatpush1.bf16.msra.mxu0 %v843
        %854 = vmatprep.subr.bf16.mxu0 0
        %855 = vmatpush1.bf16.msra.mxu0 %v842
        %856 = vmatprep.subr.bf16.mxu0 0
        %857 = vmatpush1.bf16.msra.mxu0 %v841
        %858 = vmatprep.subr.bf16.mxu0 0
        %859 = vmatpush1.bf16.msra.mxu0 %v840
        %860 = vmatprep.subr.bf16.mxu0 0
        %861 = vmatpush1.bf16.msra.mxu0 %v839
        %862 = vmatprep.subr.bf16.mxu0 0
        %863 = vmatpush1.bf16.msra.mxu0 %v838
        %864 = vmatprep.subr.bf16.mxu0 0
        %865 = vmatpush1.bf16.msra.mxu0 %v837
        %866 = vmatprep.subr.bf16.mxu0 0
        %867 = vmatpush1.bf16.msra.mxu0 %v836
        %868 = vmatprep.subr.bf16.mxu0 0
        %869 = vmatpush2.bf16.msra.mxu0 0
        %870 = vmatprep.subr.bf16.mxu0 0
        %871 = vmatpush2.bf16.msra.mxu0 0
        %872 = vmatprep.subr.bf16.mxu0 0
        %873 = vmatpush2.bf16.msra.mxu0 0
        %874 = vmatprep.subr.bf16.mxu0 0
        %875 = vmatpush2.bf16.msra.mxu0 0
        %876 = vmatprep.subr.bf16.mxu0 0
        %877 = vmatpush2.bf16.msra.mxu0 0
        %878 = vmatprep.subr.bf16.mxu0 0
        %879 = vmatpush2.bf16.msra.mxu0 0
        %880 = vmatprep.subr.bf16.mxu0 0
        %881 = vmatpush2.bf16.msra.mxu0 0
        %882 = vmatprep.subr.bf16.mxu0 0
        %883 = vmatpush2.bf16.msra.mxu0 0
        %884 = vmatprep.mubr.bf16.mxu0 0
        %885 = vmatmul.mubr.bf16.gmra.mxu0 %v768
        %v886 = vpop.f32.mrf.mxu0
        %v887 = vadd.f32 %v803, %v886
        %v888 = vpop.f32.mrf.mxu0
        %v889 = vpop.f32.mrf.mxu0
        %v890 = vadd.f32 %v803, %v889
        %v891 = vpop.f32.mrf.mxu0
        %892 = vmatprep.mubr.bf16.mxu0 0
        %893 = vmatmul.mubr.bf16.gmra.mxu0 %v769
        %v894 = vpop.f32.mrf.mxu0
        %v895 = vadd.f32 %v803, %v894
        %v896 = vpop.f32.mrf.mxu0
        %v897 = vpop.f32.mrf.mxu0
        %v898 = vadd.f32 %v803, %v897
        %v899 = vpop.f32.mrf.mxu0
        %900 = vmatprep.mubr.bf16.mxu0 0
        %901 = vmatmul.mubr.bf16.gmra.mxu0 %v770
        %v902 = vpop.f32.mrf.mxu0
        %v903 = vadd.f32 %v803, %v902
        %v904 = vpop.f32.mrf.mxu0
        %v905 = vpop.f32.mrf.mxu0
        %v906 = vadd.f32 %v803, %v905
        %v907 = vpop.f32.mrf.mxu0
        %908 = vmatprep.mubr.bf16.mxu0 0
        %909 = vmatmul.mubr.bf16.gmra.mxu0 %v771
        %v910 = vpop.f32.mrf.mxu0
        %v911 = vadd.f32 %v803, %v910
        %v912 = vpop.f32.mrf.mxu0
        %v913 = vpop.f32.mrf.mxu0
        %v914 = vadd.f32 %v803, %v913
        %v915 = vpop.f32.mrf.mxu0
        %916 = vmatprep.mubr.bf16.mxu0 0
        %917 = vmatmul.mubr.bf16.gmra.mxu0 %v772
        %v918 = vpop.f32.mrf.mxu0
        %v919 = vadd.f32 %v803, %v918
        %v920 = vpop.f32.mrf.mxu0
        %v921 = vpop.f32.mrf.mxu0
        %v922 = vadd.f32 %v803, %v921
        %v923 = vpop.f32.mrf.mxu0
        %924 = vmatprep.mubr.bf16.mxu0 0
        %925 = vmatmul.mubr.bf16.gmra.mxu0 %v773
        %v926 = vpop.f32.mrf.mxu0
        %v927 = vadd.f32 %v803, %v926
        %v928 = vpop.f32.mrf.mxu0
        %v929 = vpop.f32.mrf.mxu0
        %v930 = vadd.f32 %v803, %v929
        %v931 = vpop.f32.mrf.mxu0
        %932 = vmatprep.mubr.bf16.mxu0 0
        %933 = vmatmul.mubr.bf16.gmra.mxu0 %v774
        %v934 = vpop.f32.mrf.mxu0
        %v935 = vadd.f32 %v803, %v934
        %v936 = vpop.f32.mrf.mxu0
        %v937 = vpop.f32.mrf.mxu0
        %v938 = vadd.f32 %v803, %v937
        %v939 = vpop.f32.mrf.mxu0
        %940 = vmatprep.mubr.bf16.mxu0 0
        %941 = vmatmul.mubr.bf16.gmra.mxu0 %v775
        %v942 = vpop.f32.mrf.mxu0
        %v943 = vadd.f32 %v803, %v942
        %v944 = vpop.f32.mrf.mxu0
        %v945 = vpop.f32.mrf.mxu0
        %v946 = vadd.f32 %v803, %v945
        %v947 = vpop.f32.mrf.mxu0
        %948 = vmatprep.mubr.bf16.mxu0 0
        %949 = vmatmul.mubr.bf16.gmra.mxu0 %v776
        %v950 = vpop.f32.mrf.mxu0
        %v951 = vadd.f32 %v803, %v950
        %v952 = vpop.f32.mrf.mxu0
        %v953 = vpop.f32.mrf.mxu0
        %v954 = vadd.f32 %v803, %v953
        %v955 = vpop.f32.mrf.mxu0
        %956 = vmatprep.mubr.bf16.mxu0 0
        %957 = vmatmul.mubr.bf16.gmra.mxu0 %v777
        %v958 = vpop.f32.mrf.mxu0
        %v959 = vadd.f32 %v803, %v958
        %v960 = vpop.f32.mrf.mxu0
        %v961 = vpop.f32.mrf.mxu0
        %v962 = vadd.f32 %v803, %v961
        %v963 = vpop.f32.mrf.mxu0
        %964 = vmatprep.mubr.bf16.mxu0 0
        %965 = vmatmul.mubr.bf16.gmra.mxu0 %v778
        %v966 = vpop.f32.mrf.mxu0
        %v967 = vadd.f32 %v803, %v966
        %v968 = vpop.f32.mrf.mxu0
        %v969 = vpop.f32.mrf.mxu0
        %v970 = vadd.f32 %v803, %v969
        %v971 = vpop.f32.mrf.mxu0
        %972 = vmatprep.mubr.bf16.mxu0 0
        %973 = vmatmul.mubr.bf16.gmra.mxu0 %v779
        %v974 = vpop.f32.mrf.mxu0
        %v975 = vadd.f32 %v803, %v974
        %v976 = vpop.f32.mrf.mxu0
        %v977 = vpop.f32.mrf.mxu0
        %v978 = vadd.f32 %v803, %v977
        %v979 = vpop.f32.mrf.mxu0
        %980 = vmatprep.mubr.bf16.mxu0 0
        %981 = vmatmul.mubr.bf16.gmra.mxu0 %v780
        %v982 = vpop.f32.mrf.mxu0
        %v983 = vadd.f32 %v803, %v982
        %v984 = vpop.f32.mrf.mxu0
        %v985 = vpop.f32.mrf.mxu0
        %v986 = vadd.f32 %v803, %v985
        %v987 = vpop.f32.mrf.mxu0
        %988 = vmatprep.mubr.bf16.mxu0 0
        %989 = vmatmul.mubr.bf16.gmra.mxu0 %v781
        %v990 = vpop.f32.mrf.mxu0
        %v991 = vadd.f32 %v803, %v990
        %v992 = vpop.f32.mrf.mxu0
        %v993 = vpop.f32.mrf.mxu0
        %v994 = vadd.f32 %v803, %v993
        %v995 = vpop.f32.mrf.mxu0
        %996 = vmatprep.mubr.bf16.mxu0 0
        %997 = vmatmul.mubr.bf16.gmra.mxu0 %v782
        %v998 = vpop.f32.mrf.mxu0
        %v999 = vadd.f32 %v803, %v998
        %v1000 = vpop.f32.mrf.mxu0
        %v1001 = vpop.f32.mrf.mxu0
        %v1002 = vadd.f32 %v803, %v1001
        %v1003 = vpop.f32.mrf.mxu0
        %1004 = vmatprep.mubr.bf16.mxu0 0
        %1005 = vmatmul.mubr.bf16.gmra.mxu0 %v783
        %v1006 = vpop.f32.mrf.mxu0
        %v1007 = vadd.f32 %v803, %v1006
        %v1008 = vpop.f32.mrf.mxu0
        %v1009 = vpop.f32.mrf.mxu0
        %v1010 = vadd.f32 %v803, %v1009
        %v1011 = vpop.f32.mrf.mxu0
        %1012 = vdwg.mxu0
        %v1013 = vlaneseq
        %v1014 = vshrl.u32 %v1013, 7
        %v1015 = vsub.s32 4, %v1014
        %v1016 = vrot.slane %v306, %v1015
        %v1017 = vmul.f32 %v887, %v1016
        %v1018 = vmul.f32 %v890, %v1016
        %v1019 = vmul.f32 %v895, %v1016
        %v1020 = vmul.f32 %v898, %v1016
        %v1021 = vmul.f32 %v903, %v1016
        %v1022 = vmul.f32 %v906, %v1016
        %v1023 = vmul.f32 %v911, %v1016
        %v1024 = vmul.f32 %v914, %v1016
        %v1025 = vmul.f32 %v919, %v1016
        %v1026 = vmul.f32 %v922, %v1016
        %v1027 = vmul.f32 %v927, %v1016
        %v1028 = vmul.f32 %v930, %v1016
        %v1029 = vmul.f32 %v935, %v1016
        %v1030 = vmul.f32 %v938, %v1016
        %v1031 = vmul.f32 %v943, %v1016
        %v1032 = vmul.f32 %v946, %v1016
        %v1033 = vmul.f32 %v951, %v1016
        %v1034 = vmul.f32 %v954, %v1016
        %v1035 = vmul.f32 %v959, %v1016
        %v1036 = vmul.f32 %v962, %v1016
        %v1037 = vmul.f32 %v967, %v1016
        %v1038 = vmul.f32 %v970, %v1016
        %v1039 = vmul.f32 %v975, %v1016
        %v1040 = vmul.f32 %v978, %v1016
        %v1041 = vmul.f32 %v983, %v1016
        %v1042 = vmul.f32 %v986, %v1016
        %v1043 = vmul.f32 %v991, %v1016
        %v1044 = vmul.f32 %v994, %v1016
        %v1045 = vmul.f32 %v999, %v1016
        %v1046 = vmul.f32 %v1002, %v1016
        %v1047 = vmul.f32 %v1007, %v1016
        %v1048 = vmul.f32 %v1010, %v1016
        %v1049 = vlaneseq
        %v1050 = vshrl.u32 %v1049, 7
        %v1051 = vsub.s32 5, %v1050
        %v1052 = vrot.slane %v306, %v1051
        %v1053 = vadd.f32 %v1017, %v1052
        %v1054 = vadd.f32 %v1018, %v1052
        %v1055 = vadd.f32 %v1019, %v1052
        %v1056 = vadd.f32 %v1020, %v1052
        %v1057 = vadd.f32 %v1021, %v1052
        %v1058 = vadd.f32 %v1022, %v1052
        %v1059 = vadd.f32 %v1023, %v1052
        %v1060 = vadd.f32 %v1024, %v1052
        %v1061 = vadd.f32 %v1025, %v1052
        %v1062 = vadd.f32 %v1026, %v1052
        %v1063 = vadd.f32 %v1027, %v1052
        %v1064 = vadd.f32 %v1028, %v1052
        %v1065 = vadd.f32 %v1029, %v1052
        %v1066 = vadd.f32 %v1030, %v1052
        %v1067 = vadd.f32 %v1031, %v1052
        %v1068 = vadd.f32 %v1032, %v1052
        %v1069 = vadd.f32 %v1033, %v1052
        %v1070 = vadd.f32 %v1034, %v1052
        %v1071 = vadd.f32 %v1035, %v1052
        %v1072 = vadd.f32 %v1036, %v1052
        %v1073 = vadd.f32 %v1037, %v1052
        %v1074 = vadd.f32 %v1038, %v1052
        %v1075 = vadd.f32 %v1039, %v1052
        %v1076 = vadd.f32 %v1040, %v1052
        %v1077 = vadd.f32 %v1041, %v1052
        %v1078 = vadd.f32 %v1042, %v1052
        %v1079 = vadd.f32 %v1043, %v1052
        %v1080 = vadd.f32 %v1044, %v1052
        %v1081 = vadd.f32 %v1045, %v1052
        %v1082 = vadd.f32 %v1046, %v1052
        %v1083 = vadd.f32 %v1047, %v1052
        %v1084 = vadd.f32 %v1048, %v1052
        %v1085 = vmax.f32 %v1053, 0.0
        %v1086 = vmax.f32 %v1054, 0.0
        %v1087 = vmax.f32 %v1055, 0.0
        %v1088 = vmax.f32 %v1056, 0.0
        %v1089 = vmax.f32 %v1057, 0.0
        %v1090 = vmax.f32 %v1058, 0.0
        %v1091 = vmax.f32 %v1059, 0.0
        %v1092 = vmax.f32 %v1060, 0.0
        %v1093 = vmax.f32 %v1061, 0.0
        %v1094 = vmax.f32 %v1062, 0.0
        %v1095 = vmax.f32 %v1063, 0.0
        %v1096 = vmax.f32 %v1064, 0.0
        %v1097 = vmax.f32 %v1065, 0.0
        %v1098 = vmax.f32 %v1066, 0.0
        %v1099 = vmax.f32 %v1067, 0.0
        %v1100 = vmax.f32 %v1068, 0.0
        %v1101 = vmax.f32 %v1069, 0.0
        %v1102 = vmax.f32 %v1070, 0.0
        %v1103 = vmax.f32 %v1071, 0.0
        %v1104 = vmax.f32 %v1072, 0.0
        %v1105 = vmax.f32 %v1073, 0.0
        %v1106 = vmax.f32 %v1074, 0.0
        %v1107 = vmax.f32 %v1075, 0.0
        %v1108 = vmax.f32 %v1076, 0.0
        %v1109 = vmax.f32 %v1077, 0.0
        %v1110 = vmax.f32 %v1078, 0.0
        %v1111 = vmax.f32 %v1079, 0.0
        %v1112 = vmax.f32 %v1080, 0.0
        %v1113 = vmax.f32 %v1081, 0.0
        %v1114 = vmax.f32 %v1082, 0.0
        %v1115 = vmax.f32 %v1083, 0.0
        %v1116 = vmax.f32 %v1084, 0.0
        %v1117 = vpack.c.bf16 %v1086, %v1085
        %v1118 = vpack.c.bf16 %v1088, %v1087
        %v1119 = vpack.c.bf16 %v1090, %v1089
        %v1120 = vpack.c.bf16 %v1092, %v1091
        %v1121 = vpack.c.bf16 %v1094, %v1093
        %v1122 = vpack.c.bf16 %v1096, %v1095
        %v1123 = vpack.c.bf16 %v1098, %v1097
        %v1124 = vpack.c.bf16 %v1100, %v1099
        %v1125 = vpack.c.bf16 %v1102, %v1101
        %v1126 = vpack.c.bf16 %v1104, %v1103
        %v1127 = vpack.c.bf16 %v1106, %v1105
        %v1128 = vpack.c.bf16 %v1108, %v1107
        %v1129 = vpack.c.bf16 %v1110, %v1109
        %v1130 = vpack.c.bf16 %v1112, %v1111
        %v1131 = vpack.c.bf16 %v1114, %v1113
        %v1132 = vpack.c.bf16 %v1116, %v1115
        %v1133 = vld [vmem:[#allocation7] sm:$0xf]
        %v1134 = vld [vmem:[#allocation7 + $0x4] sm:$0xf]
        %v1135 = vld [vmem:[#allocation7 + $0x8] sm:$0xf]
        %v1136 = vld [vmem:[#allocation7 + $0xc] sm:$0xf]
        %v1137 = vld [vmem:[#allocation7 + $0x10] sm:$0xf]
        %v1138 = vld [vmem:[#allocation7 + $0x14] sm:$0xf]
        %v1139 = vld [vmem:[#allocation7 + $0x18] sm:$0xf]
        %v1140 = vld [vmem:[#allocation7 + $0x1c] sm:$0xf]
        %v1141 = vld [vmem:[#allocation7 + $0x20] sm:$0xf]
        %v1142 = vld [vmem:[#allocation7 + $0x24] sm:$0xf]
        %v1143 = vld [vmem:[#allocation7 + $0x28] sm:$0xf]
        %v1144 = vld [vmem:[#allocation7 + $0x2c] sm:$0xf]
        %v1145 = vld [vmem:[#allocation7 + $0x30] sm:$0xf]
        %v1146 = vld [vmem:[#allocation7 + $0x34] sm:$0xf]
        %v1147 = vld [vmem:[#allocation7 + $0x38] sm:$0xf]
        %v1148 = vld [vmem:[#allocation7 + $0x3c] sm:$0xf]
        %v1165 = vunpack.c.l.b16 %v1133
        %v1166 = vunpack.c.l.b16 %v1134
        %v1167 = vunpack.c.l.b16 %v1135
        %v1168 = vunpack.c.l.b16 %v1136
        %v1169 = vunpack.c.l.b16 %v1137
        %v1170 = vunpack.c.l.b16 %v1138
        %v1171 = vunpack.c.l.b16 %v1139
        %v1172 = vunpack.c.l.b16 %v1140
        %v1173 = vunpack.c.l.b16 %v1141
        %v1174 = vunpack.c.l.b16 %v1142
        %v1175 = vunpack.c.l.b16 %v1143
        %v1176 = vunpack.c.l.b16 %v1144
        %v1177 = vunpack.c.l.b16 %v1145
        %v1178 = vunpack.c.l.b16 %v1146
        %v1179 = vunpack.c.l.b16 %v1147
        %v1180 = vunpack.c.l.b16 %v1148
        %v1181 = vpack.c.b16 %v1166, %v1165
        %v1182 = vpack.c.b16 %v1168, %v1167
        %v1183 = vpack.c.b16 %v1170, %v1169
        %v1184 = vpack.c.b16 %v1172, %v1171
        %v1185 = vpack.c.b16 %v1174, %v1173
        %v1186 = vpack.c.b16 %v1176, %v1175
        %v1187 = vpack.c.b16 %v1178, %v1177
        %v1188 = vpack.c.b16 %v1180, %v1179
        %1197 = vmatprep.subr.bf16.mxu0 0
        %1198 = vmatpush1.bf16.msra.mxu0 %v1188
        %1199 = vmatprep.subr.bf16.mxu0 0
        %1200 = vmatpush1.bf16.msra.mxu0 %v1187
        %1201 = vmatprep.subr.bf16.mxu0 0
        %1202 = vmatpush1.bf16.msra.mxu0 %v1186
        %1203 = vmatprep.subr.bf16.mxu0 0
        %1204 = vmatpush1.bf16.msra.mxu0 %v1185
        %1205 = vmatprep.subr.bf16.mxu0 0
        %1206 = vmatpush1.bf16.msra.mxu0 %v1184
        %1207 = vmatprep.subr.bf16.mxu0 0
        %1208 = vmatpush1.bf16.msra.mxu0 %v1183
        %1209 = vmatprep.subr.bf16.mxu0 0
        %1210 = vmatpush1.bf16.msra.mxu0 %v1182
        %1211 = vmatprep.subr.bf16.mxu0 0
        %1212 = vmatpush1.bf16.msra.mxu0 %v1181
        %1213 = vmatprep.subr.bf16.mxu0 0
        %1214 = vmatpush2.bf16.msra.mxu0 0
        %1215 = vmatprep.subr.bf16.mxu0 0
        %1216 = vmatpush2.bf16.msra.mxu0 0
        %1217 = vmatprep.subr.bf16.mxu0 0
        %1218 = vmatpush2.bf16.msra.mxu0 0
        %1219 = vmatprep.subr.bf16.mxu0 0
        %1220 = vmatpush2.bf16.msra.mxu0 0
        %1221 = vmatprep.subr.bf16.mxu0 0
        %1222 = vmatpush2.bf16.msra.mxu0 0
        %1223 = vmatprep.subr.bf16.mxu0 0
        %1224 = vmatpush2.bf16.msra.mxu0 0
        %1225 = vmatprep.subr.bf16.mxu0 0
        %1226 = vmatpush2.bf16.msra.mxu0 0
        %1227 = vmatprep.subr.bf16.mxu0 0
        %1228 = vmatpush2.bf16.msra.mxu0 0
        %1229 = vmatprep.mubr.bf16.mxu0 0
        %1230 = vmatmul.mubr.bf16.gmra.mxu0 %v1117
        %v1231 = vpop.f32.mrf.mxu0
        %v1232 = vadd.f32 0.0, %v1231
        %v1233 = vpop.f32.mrf.mxu0
        %v1234 = vpop.f32.mrf.mxu0
        %v1235 = vadd.f32 0.0, %v1234
        %v1236 = vpop.f32.mrf.mxu0
        %1237 = vmatprep.mubr.bf16.mxu0 0
        %1238 = vmatmul.mubr.bf16.gmra.mxu0 %v1118
        %v1239 = vpop.f32.mrf.mxu0
        %v1240 = vadd.f32 0.0, %v1239
        %v1241 = vpop.f32.mrf.mxu0
        %v1242 = vpop.f32.mrf.mxu0
        %v1243 = vadd.f32 0.0, %v1242
        %v1244 = vpop.f32.mrf.mxu0
        %1245 = vmatprep.mubr.bf16.mxu0 0
        %1246 = vmatmul.mubr.bf16.gmra.mxu0 %v1119
        %v1247 = vpop.f32.mrf.mxu0
        %v1248 = vadd.f32 0.0, %v1247
        %v1249 = vpop.f32.mrf.mxu0
        %v1250 = vpop.f32.mrf.mxu0
        %v1251 = vadd.f32 0.0, %v1250
        %v1252 = vpop.f32.mrf.mxu0
        %1253 = vmatprep.mubr.bf16.mxu0 0
        %1254 = vmatmul.mubr.bf16.gmra.mxu0 %v1120
        %v1255 = vpop.f32.mrf.mxu0
        %v1256 = vadd.f32 0.0, %v1255
        %v1257 = vpop.f32.mrf.mxu0
        %v1258 = vpop.f32.mrf.mxu0
        %v1259 = vadd.f32 0.0, %v1258
        %v1260 = vpop.f32.mrf.mxu0
        %1261 = vmatprep.mubr.bf16.mxu0 0
        %1262 = vmatmul.mubr.bf16.gmra.mxu0 %v1121
        %v1263 = vpop.f32.mrf.mxu0
        %v1264 = vadd.f32 0.0, %v1263
        %v1265 = vpop.f32.mrf.mxu0
        %v1266 = vpop.f32.mrf.mxu0
        %v1267 = vadd.f32 0.0, %v1266
        %v1268 = vpop.f32.mrf.mxu0
        %1269 = vmatprep.mubr.bf16.mxu0 0
        %1270 = vmatmul.mubr.bf16.gmra.mxu0 %v1122
        %v1271 = vpop.f32.mrf.mxu0
        %v1272 = vadd.f32 0.0, %v1271
        %v1273 = vpop.f32.mrf.mxu0
        %v1274 = vpop.f32.mrf.mxu0
        %v1275 = vadd.f32 0.0, %v1274
        %v1276 = vpop.f32.mrf.mxu0
        %1277 = vmatprep.mubr.bf16.mxu0 0
        %1278 = vmatmul.mubr.bf16.gmra.mxu0 %v1123
        %v1279 = vpop.f32.mrf.mxu0
        %v1280 = vadd.f32 0.0, %v1279
        %v1281 = vpop.f32.mrf.mxu0
        %v1282 = vpop.f32.mrf.mxu0
        %v1283 = vadd.f32 0.0, %v1282
        %v1284 = vpop.f32.mrf.mxu0
        %1285 = vmatprep.mubr.bf16.mxu0 0
        %1286 = vmatmul.mubr.bf16.gmra.mxu0 %v1124
        %v1287 = vpop.f32.mrf.mxu0
        %v1288 = vadd.f32 0.0, %v1287
        %v1289 = vpop.f32.mrf.mxu0
        %v1290 = vpop.f32.mrf.mxu0
        %v1291 = vadd.f32 0.0, %v1290
        %v1292 = vpop.f32.mrf.mxu0
        %1293 = vmatprep.mubr.bf16.mxu0 0
        %1294 = vmatmul.mubr.bf16.gmra.mxu0 %v1125
        %v1295 = vpop.f32.mrf.mxu0
        %v1296 = vadd.f32 0.0, %v1295
        %v1297 = vpop.f32.mrf.mxu0
        %v1298 = vpop.f32.mrf.mxu0
        %v1299 = vadd.f32 0.0, %v1298
        %v1300 = vpop.f32.mrf.mxu0
        %1301 = vmatprep.mubr.bf16.mxu0 0
        %1302 = vmatmul.mubr.bf16.gmra.mxu0 %v1126
        %v1303 = vpop.f32.mrf.mxu0
        %v1304 = vadd.f32 0.0, %v1303
        %v1305 = vpop.f32.mrf.mxu0
        %v1306 = vpop.f32.mrf.mxu0
        %v1307 = vadd.f32 0.0, %v1306
        %v1308 = vpop.f32.mrf.mxu0
        %1309 = vmatprep.mubr.bf16.mxu0 0
        %1310 = vmatmul.mubr.bf16.gmra.mxu0 %v1127
        %v1311 = vpop.f32.mrf.mxu0
        %v1312 = vadd.f32 0.0, %v1311
        %v1313 = vpop.f32.mrf.mxu0
        %v1314 = vpop.f32.mrf.mxu0
        %v1315 = vadd.f32 0.0, %v1314
        %v1316 = vpop.f32.mrf.mxu0
        %1317 = vmatprep.mubr.bf16.mxu0 0
        %1318 = vmatmul.mubr.bf16.gmra.mxu0 %v1128
        %v1319 = vpop.f32.mrf.mxu0
        %v1320 = vadd.f32 0.0, %v1319
        %v1321 = vpop.f32.mrf.mxu0
        %v1322 = vpop.f32.mrf.mxu0
        %v1323 = vadd.f32 0.0, %v1322
        %v1324 = vpop.f32.mrf.mxu0
        %1325 = vmatprep.mubr.bf16.mxu0 0
        %1326 = vmatmul.mubr.bf16.gmra.mxu0 %v1129
        %v1327 = vpop.f32.mrf.mxu0
        %v1328 = vadd.f32 0.0, %v1327
        %v1329 = vpop.f32.mrf.mxu0
        %v1330 = vpop.f32.mrf.mxu0
        %v1331 = vadd.f32 0.0, %v1330
        %v1332 = vpop.f32.mrf.mxu0
        %1333 = vmatprep.mubr.bf16.mxu0 0
        %1334 = vmatmul.mubr.bf16.gmra.mxu0 %v1130
        %v1335 = vpop.f32.mrf.mxu0
        %v1336 = vadd.f32 0.0, %v1335
        %v1337 = vpop.f32.mrf.mxu0
        %v1338 = vpop.f32.mrf.mxu0
        %v1339 = vadd.f32 0.0, %v1338
        %v1340 = vpop.f32.mrf.mxu0
        %1341 = vmatprep.mubr.bf16.mxu0 0
        %1342 = vmatmul.mubr.bf16.gmra.mxu0 %v1131
        %v1343 = vpop.f32.mrf.mxu0
        %v1344 = vadd.f32 0.0, %v1343
        %v1345 = vpop.f32.mrf.mxu0
        %v1346 = vpop.f32.mrf.mxu0
        %v1347 = vadd.f32 0.0, %v1346
        %v1348 = vpop.f32.mrf.mxu0
        %1349 = vmatprep.mubr.bf16.mxu0 0
        %1350 = vmatmul.mubr.bf16.gmra.mxu0 %v1132
        %v1351 = vpop.f32.mrf.mxu0
        %v1352 = vadd.f32 0.0, %v1351
        %v1353 = vpop.f32.mrf.mxu0
        %v1354 = vpop.f32.mrf.mxu0
        %v1355 = vadd.f32 0.0, %v1354
        %v1356 = vpop.f32.mrf.mxu0
        %1357 = vdwg.mxu0
        %v1358 = vpack.c.bf16 %v1235, %v1232
        %v1359 = vpack.c.bf16 %v1243, %v1240
        %v1360 = vpack.c.bf16 %v1251, %v1248
        %v1361 = vpack.c.bf16 %v1259, %v1256
        %v1362 = vpack.c.bf16 %v1267, %v1264
        %v1363 = vpack.c.bf16 %v1275, %v1272
        %v1364 = vpack.c.bf16 %v1283, %v1280
        %v1365 = vpack.c.bf16 %v1291, %v1288
        %v1366 = vpack.c.bf16 %v1299, %v1296
        %v1367 = vpack.c.bf16 %v1307, %v1304
        %v1368 = vpack.c.bf16 %v1315, %v1312
        %v1369 = vpack.c.bf16 %v1323, %v1320
        %v1370 = vpack.c.bf16 %v1331, %v1328
        %v1371 = vpack.c.bf16 %v1339, %v1336
        %v1372 = vpack.c.bf16 %v1347, %v1344
        %v1373 = vpack.c.bf16 %v1355, %v1352
        %v1390 = vunpack.c.l.b16 %v1358
        %v1391 = vunpack.c.h.b16 %v1358
        %v1392 = vunpack.c.l.b16 %v1359
        %v1393 = vunpack.c.h.b16 %v1359
        %v1394 = vunpack.c.l.b16 %v1360
        %v1395 = vunpack.c.h.b16 %v1360
        %v1396 = vunpack.c.l.b16 %v1361
        %v1397 = vunpack.c.h.b16 %v1361
        %v1398 = vunpack.c.l.b16 %v1362
        %v1399 = vunpack.c.h.b16 %v1362
        %v1400 = vunpack.c.l.b16 %v1363
        %v1401 = vunpack.c.h.b16 %v1363
        %v1402 = vunpack.c.l.b16 %v1364
        %v1403 = vunpack.c.h.b16 %v1364
        %v1404 = vunpack.c.l.b16 %v1365
        %v1405 = vunpack.c.h.b16 %v1365
        %v1406 = vunpack.c.l.b16 %v1366
        %v1407 = vunpack.c.h.b16 %v1366
        %v1408 = vunpack.c.l.b16 %v1367
        %v1409 = vunpack.c.h.b16 %v1367
        %v1410 = vunpack.c.l.b16 %v1368
        %v1411 = vunpack.c.h.b16 %v1368
        %v1412 = vunpack.c.l.b16 %v1369
        %v1413 = vunpack.c.h.b16 %v1369
        %v1414 = vunpack.c.l.b16 %v1370
        %v1415 = vunpack.c.h.b16 %v1370
        %v1416 = vunpack.c.l.b16 %v1371
        %v1417 = vunpack.c.h.b16 %v1371
        %v1418 = vunpack.c.l.b16 %v1372
        %v1419 = vunpack.c.h.b16 %v1372
        %v1420 = vunpack.c.l.b16 %v1373
        %v1421 = vunpack.c.h.b16 %v1373
        %v1422 = vpack.c.b16 %v1390, %v1390
        %v1423 = vpack.c.b16 %v1391, %v1391
        %v1424 = vpack.c.b16 %v1392, %v1392
        %v1425 = vpack.c.b16 %v1393, %v1393
        %v1426 = vpack.c.b16 %v1394, %v1394
        %v1427 = vpack.c.b16 %v1395, %v1395
        %v1428 = vpack.c.b16 %v1396, %v1396
        %v1429 = vpack.c.b16 %v1397, %v1397
        %v1430 = vpack.c.b16 %v1398, %v1398
        %v1431 = vpack.c.b16 %v1399, %v1399
        %v1432 = vpack.c.b16 %v1400, %v1400
        %v1433 = vpack.c.b16 %v1401, %v1401
        %v1434 = vpack.c.b16 %v1402, %v1402
        %v1435 = vpack.c.b16 %v1403, %v1403
        %v1436 = vpack.c.b16 %v1404, %v1404
        %v1437 = vpack.c.b16 %v1405, %v1405
        %v1438 = vpack.c.b16 %v1406, %v1406
        %v1439 = vpack.c.b16 %v1407, %v1407
        %v1440 = vpack.c.b16 %v1408, %v1408
        %v1441 = vpack.c.b16 %v1409, %v1409
        %v1442 = vpack.c.b16 %v1410, %v1410
        %v1443 = vpack.c.b16 %v1411, %v1411
        %v1444 = vpack.c.b16 %v1412, %v1412
        %v1445 = vpack.c.b16 %v1413, %v1413
        %v1446 = vpack.c.b16 %v1414, %v1414
        %v1447 = vpack.c.b16 %v1415, %v1415
        %v1448 = vpack.c.b16 %v1416, %v1416
        %v1449 = vpack.c.b16 %v1417, %v1417
        %v1450 = vpack.c.b16 %v1418, %v1418
        %v1451 = vpack.c.b16 %v1419, %v1419
        %v1452 = vpack.c.b16 %v1420, %v1420
        %v1453 = vpack.c.b16 %v1421, %v1421
        %1486 = vst [vmem:[%s303] sm:$0xf] %v1422
        %1487 = vst [vmem:[%s303 + $0x4] sm:$0xf] %v1423
        %1488 = vst [vmem:[%s303 + $0x8] sm:$0xf] %v1424
        %1489 = vst [vmem:[%s303 + $0xc] sm:$0xf] %v1425
        %1490 = vst [vmem:[%s303 + $0x10] sm:$0xf] %v1426
        %1491 = vst [vmem:[%s303 + $0x14] sm:$0xf] %v1427
        %1492 = vst [vmem:[%s303 + $0x18] sm:$0xf] %v1428
        %1493 = vst [vmem:[%s303 + $0x1c] sm:$0xf] %v1429
        %1494 = vst [vmem:[%s303 + $0x20] sm:$0xf] %v1430
        %1495 = vst [vmem:[%s303 + $0x24] sm:$0xf] %v1431
        %1496 = vst [vmem:[%s303 + $0x28] sm:$0xf] %v1432
        %1497 = vst [vmem:[%s303 + $0x2c] sm:$0xf] %v1433
        %1498 = vst [vmem:[%s303 + $0x30] sm:$0xf] %v1434
        %1499 = vst [vmem:[%s303 + $0x34] sm:$0xf] %v1435
        %1500 = vst [vmem:[%s303 + $0x38] sm:$0xf] %v1436
        %1501 = vst [vmem:[%s303 + $0x3c] sm:$0xf] %v1437
        %1502 = vst [vmem:[%s303 + $0x40] sm:$0xf] %v1438
        %1503 = vst [vmem:[%s303 + $0x44] sm:$0xf] %v1439
        %1504 = vst [vmem:[%s303 + $0x48] sm:$0xf] %v1440
        %1505 = vst [vmem:[%s303 + $0x4c] sm:$0xf] %v1441
        %1506 = vst [vmem:[%s303 + $0x50] sm:$0xf] %v1442
        %1507 = vst [vmem:[%s303 + $0x54] sm:$0xf] %v1443
        %1508 = vst [vmem:[%s303 + $0x58] sm:$0xf] %v1444
        %1509 = vst [vmem:[%s303 + $0x5c] sm:$0xf] %v1445
        %1510 = vst [vmem:[%s303 + $0x60] sm:$0xf] %v1446
        %1511 = vst [vmem:[%s303 + $0x64] sm:$0xf] %v1447
        %1512 = vst [vmem:[%s303 + $0x68] sm:$0xf] %v1448
        %1513 = vst [vmem:[%s303 + $0x6c] sm:$0xf] %v1449
        %1514 = vst [vmem:[%s303 + $0x70] sm:$0xf] %v1450
        %1515 = vst [vmem:[%s303 + $0x74] sm:$0xf] %v1451
        %1516 = vst [vmem:[%s303 + $0x78] sm:$0xf] %v1452
        %1517 = vst [vmem:[%s303 + $0x7c] sm:$0xf] %v1453
        %s1518 = smul.u32 32, %s21
        %p1519 = scmp.lt.s32.totalorder %s1518, 63
        %s1520 = scalar_select %p1519, %s1518, 63
        %s1521 = smul.addr %s1520, 4
        %s1522 = scalar_lea.vmem %s5, %s1521
        // Predicated region
        $region61: #{gcn_forward.3} parent=39 // pred_check
          %p1523 = pneg %p149
        $region62: #{gcn_forward.3} parent=39 // pred_check_branch
          %1525 = sbr.rel (%p1523) target = $region64
        $region63: #{gcn_forward.3} parent=39 // pred_region
          %s1526 = smul.u32 32, %s21
        $region64: #{gcn_forward.3} parent=39 // pred_fallthru
          _
      $region40: #{gcn_forward.3} parent=5 // pred_fallthru
        _
      %p1527 = scmp.le.s32.totalorder 2, %s16
      // Predicated region
      $region65: #{gcn_forward.3} parent=5 // pred_check
        %p1528 = pneg %p1527
      $region66: #{gcn_forward.3} parent=5 // pred_check_branch
        %1530 = sbr.rel (%p1528) target = $region68
      $region67: #{gcn_forward.3} parent=5 // pred_region
        %s1531 = ssub.s32 %s16, 2
        // Predicated region
        $region69: #{gcn_forward.3} parent=67 // pred_check
          %p1532 = pneg %p155
        $region70: #{gcn_forward.3} parent=67 // pred_check_branch
          %1534 = sbr.rel (%p1532) target = $region72
        $region71: #{gcn_forward.3} parent=67 // pred_region
          %s1535 = smul.u32 32, %s22
          %p1536 = scmp.lt.s32.totalorder %s1535, 63
          %s1537 = scalar_select %p1536, %s1535, 63
          %s1538 = smul.addr %s1537, 4
          %s1539 = scalar_lea.vmem %s5, %s1538
        $region72: #{gcn_forward.3} parent=67 // pred_fallthru
          _
      $region68: #{gcn_forward.3} parent=5 // pred_fallthru
        _
    $region6: #{gcn_forward.3} parent=1 // loop_footer
      %s20 = sadd.s32 1, %s16
    $region7: #{gcn_forward.3} parent=1 // loop_footer_branch
      %15 = sbr.rel target = $region3
    $region8: #{gcn_forward.3} parent=1 // loop_exit
      _
    %1540 = vsyncpa [#allocation3], 1
    %s1541 = scalar_lea.sflag [#allocation3], 1
    %1542 = vsyncpa %s1541, 1
    %1543 = vsyncpa [#allocation5], 1
    %1544 = vsyncpa [#allocation8], 1

// kernel: gcn_forward.5
$region0: #{gcn_forward.5}
  #allocation0 [shape = 'u32[]', space=smem, size = 0x4, offset = 0x4, fixed_abs, tag = 'smem constant byte address 0x4 - core index']
  #allocation1 [shape = 'u32[144,128]{1,0:T(1,128)}', space=vmem, size = 0x12000, scoped, tag = 'internal scratch']
  %s0 = inlined_call_operand.vmem [shape: bf16[512,512], index: 0, kind: input, shape index: {}]
  %s1 = inlined_call_operand.vmem [shape: bf16[512,128], index: 1, kind: input, shape index: {}]
  %s2 = inlined_call_operand.vmem [shape: bf16[128,128], index: 2, kind: input, shape index: {}]
  %s3 = inlined_call_operand.vmem [shape: f32[16,128], index: 3, kind: input, shape index: {}]
  %s4 = inlined_call_operand.vmem [shape: f32[16,128], index: 4, kind: output, shape index: {}]
  %s5 = sld [smem:[#allocation0]]
  $region49: #{gcn_forward.5} parent=0
    _
  %s7 = ssub.s32 1, %s5
  %s8 = scalar_select 0, %s7, %s5
  loop: start=0, step=1, limit=4
  $region2: #{gcn_forward.5} parent=0 // loop_pre_header
    _
  $region3: #{gcn_forward.5} parent=0 // loop_header
    %s10 = sphi 0, %s14
    %p11 = scmp.ge.s32.totalorder %s10, 4
    %s20 = sphi 0, %s22
    %s23 = sphi 0, %s20
    %s24 = sphi 0, %s23
    %s40 = sphi 0, %s24
    %s44 = sphi 0, %s44
    %s46 = sphi 0, %s44
    %s47 = sphi 0, %s46
    %s61 = sphi 0, %s47
    %s65 = sphi 0, %s65
    %s67 = sphi 0, %s65
    %s68 = sphi 0, %s67
    %s82 = sphi 0, %s68
    %s86 = sphi 0, %s86
    %s88 = sphi 0, %s86
    %s89 = sphi 0, %s88
    %s103 = sphi 0, %s89
    %s109 = sphi 0, %s111
    %s112 = sphi 0, %s109
    %s113 = sphi 0, %s112
    %s129 = sphi 0, %s113
  $region4: #{gcn_forward.5} parent=0 // loop_header_branch
    %13 = sbr.rel (%p11) target = $region8
  $region5: #{gcn_forward.5} parent=0 // loop_body
    %s15 = ssub.s32 %s10, 1
    %s16 = ssub.s32 %s10, 2
    %s17 = sadd.s32 %s10, 1
    %s18 = ssub.s32 %s10, %s17
    %p19 = scmp.eq.s32.totalorder %s18, 0
    %s21 = sadd.s32 %s20, 1
    %s22 = scalar_select %p19, %s20, %s21
    %p25 = pneg %p19
    %p26 = scmp.eq.s32.totalorder %s10, 1
    %p27 = por %p25, %p26
    %p28 = scmp.ne.s32.totalorder %s20, %s23
    %p29 = scmp.eq.s32.totalorder %s10, 0
    %p30 = por %p28, %p29
    %p31 = scmp.ne.s32.totalorder %s20, %s23
    %p32 = scmp.eq.s32.totalorder %s15, 1
    %p33 = por %p31, %p32
    %p34 = scmp.ne.s32.totalorder %s23, %s24
    %p35 = scmp.eq.s32.totalorder %s15, 0
    %p36 = por %p34, %p35
    %p37 = scmp.ne.s32.totalorder %s23, %s24
    %p38 = scmp.eq.s32.totalorder %s16, 1
    %p39 = por %p37, %p38
    %p41 = scmp.ne.s32.totalorder %s24, %s40
    %p42 = scmp.eq.s32.totalorder %s16, 0
    %p43 = por %p41, %p42
    %s45 = sadd.s32 %s44, 1
    %p48 = scmp.eq.s32.totalorder %s10, 1
    %p49 = scmp.ne.s32.totalorder %s44, %s46
    %p50 = scmp.eq.s32.totalorder %s10, 0
    %p51 = por %p49, %p50
    %p52 = scmp.ne.s32.totalorder %s44, %s46
    %p53 = scmp.eq.s32.totalorder %s15, 1
    %p54 = por %p52, %p53
    %p55 = scmp.ne.s32.totalorder %s46, %s47
    %p56 = scmp.eq.s32.totalorder %s15, 0
    %p57 = por %p55, %p56
    %p58 = scmp.ne.s32.totalorder %s46, %s47
    %p59 = scmp.eq.s32.totalorder %s16, 1
    %p60 = por %p58, %p59
    %p62 = scmp.ne.s32.totalorder %s47, %s61
    %p63 = scmp.eq.s32.totalorder %s16, 0
    %p64 = por %p62, %p63
    %s66 = sadd.s32 %s65, 1
    %p69 = scmp.eq.s32.totalorder %s10, 1
    %p70 = scmp.ne.s32.totalorder %s65, %s67
    %p71 = scmp.eq.s32.totalorder %s10, 0
    %p72 = por %p70, %p71
    %p73 = scmp.ne.s32.totalorder %s65, %s67
    %p74 = scmp.eq.s32.totalorder %s15, 1
    %p75 = por %p73, %p74
    %p76 = scmp.ne.s32.totalorder %s67, %s68
    %p77 = scmp.eq.s32.totalorder %s15, 0
    %p78 = por %p76, %p77
    %p79 = scmp.ne.s32.totalorder %s67, %s68
    %p80 = scmp.eq.s32.totalorder %s16, 1
    %p81 = por %p79, %p80
    %p83 = scmp.ne.s32.totalorder %s68, %s82
    %p84 = scmp.eq.s32.totalorder %s16, 0
    %p85 = por %p83, %p84
    %s87 = sadd.s32 %s86, 1
    %p90 = scmp.eq.s32.totalorder %s10, 1
    %p91 = scmp.ne.s32.totalorder %s86, %s88
    %p92 = scmp.eq.s32.totalorder %s10, 0
    %p93 = por %p91, %p92
    %p94 = scmp.ne.s32.totalorder %s86, %s88
    %p95 = scmp.eq.s32.totalorder %s15, 1
    %p96 = por %p94, %p95
    %p97 = scmp.ne.s32.totalorder %s88, %s89
    %p98 = scmp.eq.s32.totalorder %s15, 0
    %p99 = por %p97, %p98
    %p100 = scmp.ne.s32.totalorder %s88, %s89
    %p101 = scmp.eq.s32.totalorder %s16, 1
    %p102 = por %p100, %p101
    %p104 = scmp.ne.s32.totalorder %s89, %s103
    %p105 = scmp.eq.s32.totalorder %s16, 0
    %p106 = por %p104, %p105
    %s107 = ssub.s32 %s10, %s17
    %p108 = scmp.eq.s32.totalorder %s107, 0
    %s110 = sadd.s32 %s109, 1
    %s111 = scalar_select %p108, %s109, %s110
    %p114 = pneg %p108
    %p115 = scmp.eq.s32.totalorder %s10, 1
    %p116 = por %p114, %p115
    %p117 = scmp.ne.s32.totalorder %s109, %s112
    %p118 = scmp.eq.s32.totalorder %s10, 0
    %p119 = por %p117, %p118
    %p120 = scmp.ne.s32.totalorder %s109, %s112
    %p121 = scmp.eq.s32.totalorder %s15, 1
    %p122 = por %p120, %p121
    %p123 = scmp.ne.s32.totalorder %s112, %s113
    %p124 = scmp.eq.s32.totalorder %s15, 0
    %p125 = por %p123, %p124
    %p126 = scmp.ne.s32.totalorder %s112, %s113
    %p127 = scmp.eq.s32.totalorder %s16, 1
    %p128 = por %p126, %p127
    %p130 = scmp.ne.s32.totalorder %s113, %s129
    %p131 = scmp.eq.s32.totalorder %s16, 0
    %p132 = por %p130, %p131
    %p133 = scmp.le.s32.totalorder 1, %s10
    %p134 = scmp.lt.s32.totalorder %s10, 3
    %p135 = pnand %p133, %p134
    %p136 = pneg %p135
    // Predicated region
    $region9: #{gcn_forward.5} parent=5 // pred_check
      _
    $region10: #{gcn_forward.5} parent=5 // pred_check_branch
      %138 = sbr.rel (%p135) target = $region12
    $region11: #{gcn_forward.5} parent=5 // pred_region
      %s139 = ssub.s32 %s10, 1
      // Predicated region
      $region13: #{gcn_forward.5} parent=11 // pred_check
        %p140 = pneg %p57
      $region14: #{gcn_forward.5} parent=11 // pred_check_branch
        %142 = sbr.rel (%p140) target = $region16
      $region15: #{gcn_forward.5} parent=11 // pred_region
        _
      $region16: #{gcn_forward.5} parent=11 // pred_fallthru
        _
      // Predicated region
      $region17: #{gcn_forward.5} parent=11 // pred_check
        %p143 = pneg %p78
      $region18: #{gcn_forward.5} parent=11 // pred_check_branch
        %145 = sbr.rel (%p143) target = $region20
      $region19: #{gcn_forward.5} parent=11 // pred_region
        _
      $region20: #{gcn_forward.5} parent=11 // pred_fallthru
        _
      // Predicated region
      $region21: #{gcn_forward.5} parent=11 // pred_check
        %p146 = pneg %p99
      $region22: #{gcn_forward.5} parent=11 // pred_check_branch
        %148 = sbr.rel (%p146) target = $region24
      $region23: #{gcn_forward.5} parent=11 // pred_region
        _
      $region24: #{gcn_forward.5} parent=11 // pred_fallthru
        _
    $region12: #{gcn_forward.5} parent=5 // pred_fallthru
      _
    %p149 = scmp.lt.s32.totalorder %s10, 2
    // Predicated region
    $region25: #{gcn_forward.5} parent=5 // pred_check
      %p150 = pneg %p149
    $region26: #{gcn_forward.5} parent=5 // pred_check_branch
      %152 = sbr.rel (%p150) target = $region28
    $region27: #{gcn_forward.5} parent=5 // pred_region
      // Predicated region
      $region29: #{gcn_forward.5} parent=27 // pred_check
        %p153 = pneg %p30
      $region30: #{gcn_forward.5} parent=27 // pred_check_branch
        %155 = sbr.rel (%p153) target = $region32
      $region31: #{gcn_forward.5} parent=27 // pred_region
        %s156 = smul.u32 32, %s10
        %p157 = scmp.lt.s32.totalorder %s156, 63
        %s158 = scalar_select %p157, %s156, 63
        %s159 = smul.addr %s158, 4
        %s160 = smul.addr %s159, 4
        %s161 = scalar_lea.vmem %s0, %s160
        %s162 = smul.u32 32, %s10
      $region32: #{gcn_forward.5} parent=27 // pred_fallthru
        _
    $region28: #{gcn_forward.5} parent=5 // pred_fallthru
      _
    %p163 = scmp.le.s32.totalorder 1, %s10
    %p164 = scmp.lt.s32.totalorder %s10, 3
    %p165 = pnand %p163, %p164
    %p166 = pneg %p165
    // Predicated region
    $region33: #{gcn_forward.5} parent=5 // pred_check
      _
    $region34: #{gcn_forward.5} parent=5 // pred_check_branch
      %168 = sbr.rel (%p165) target = $region36
    $region35: #{gcn_forward.5} parent=5 // pred_region
      %s169 = ssub.s32 %s10, 1
      %s170 = smul.u32 32, %s15
      %p171 = scmp.lt.s32.totalorder %s170, 63
      %s172 = scalar_select %p171, %s170, 63
      %s173 = smul.addr %s172, 4
      %s174 = smul.addr %s173, 4
      %s175 = scalar_lea.vmem %s0, %s174
      %p176 = pneg %p36
      %p177 = pneg %p33
      %p178 = pneg %p57
      %p179 = pneg %p54
      %p180 = pneg %p78
      %p181 = pneg %p75
      %p182 = pneg %p99
      %p183 = pneg %p96
      %p184 = pneg %p125
      %p185 = pneg %p122
      %p186 = scmp.lt.s32.totalorder %s15, 1
      %s187 = scalar_select %p186, %s15, 1
      %s188 = smul.addr %s187, 8
      %s189 = scalar_lea.vmem %s4, %s188
      %s190 = smul.u32 32, %s15
      %p191 = scmp.lt.s32.totalorder %s190, 63
      %s192 = scalar_select %p191, %s190, 63
      %s193 = smul.addr %s192, 4
      %s194 = smul.addr %s193, 4
      %s195 = scalar_lea.vmem %s0, %s194
      %s196 = smul.u32 32, %s15
      %p197 = scmp.lt.s32.totalorder %s15, 1
      %s198 = scalar_select %p197, %s15, 1
      %s199 = smul.addr %s198, 8
      %s200 = scalar_lea.vmem %s4, %s199
      %v202 = vld [vmem:[%s3] sm:$0xff]
      %v203 = vld [vmem:[%s3 + $0x8] sm:$0xff]
      %v204 = vld [vmem:[%s195] sm:$0xff]
      %v205 = vld [vmem:[%s195 + $0x8] sm:$0xff]
      %v206 = vld [vmem:[%s195 + $0x10] sm:$0xff]
      %v207 = vld [vmem:[%s195 + $0x18] sm:$0xff]
      %v208 = vld [vmem:[%s195 + $0x20] sm:$0xff]
      %v209 = vld [vmem:[%s195 + $0x28] sm:$0xff]
      %v210 = vld [vmem:[%s195 + $0x30] sm:$0xff]
      %v211 = vld [vmem:[%s195 + $0x38] sm:$0xff]
      %v212 = vld [vmem:[%s195 + $0x40] sm:$0xff]
      %v213 = vld [vmem:[%s195 + $0x48] sm:$0xff]
      %v214 = vld [vmem:[%s195 + $0x50] sm:$0xff]
      %v215 = vld [vmem:[%s195 + $0x58] sm:$0xff]
      %v216 = vld [vmem:[%s195 + $0x60] sm:$0xff]
      %v217 = vld [vmem:[%s195 + $0x68] sm:$0xff]
      %v218 = vld [vmem:[%s195 + $0x70] sm:$0xff]
      %v219 = vld [vmem:[%s195 + $0x78] sm:$0xff]
      %v220 = vld [vmem:[%s195 + $0x80] sm:$0xff]
      %v221 = vld [vmem:[%s195 + $0x88] sm:$0xff]
      %v222 = vld [vmem:[%s195 + $0x90] sm:$0xff]
      %v223 = vld [vmem:[%s195 + $0x98] sm:$0xff]
      %v224 = vld [vmem:[%s195 + $0xa0] sm:$0xff]
      %v225 = vld [vmem:[%s195 + $0xa8] sm:$0xff]
      %v226 = vld [vmem:[%s195 + $0xb0] sm:$0xff]
      %v227 = vld [vmem:[%s195 + $0xb8] sm:$0xff]
      %v228 = vld [vmem:[%s195 + $0xc0] sm:$0xff]
      %v229 = vld [vmem:[%s195 + $0xc8] sm:$0xff]
      %v230 = vld [vmem:[%s195 + $0xd0] sm:$0xff]
      %v231 = vld [vmem:[%s195 + $0xd8] sm:$0xff]
      %v232 = vld [vmem:[%s195 + $0xe0] sm:$0xff]
      %v233 = vld [vmem:[%s195 + $0xe8] sm:$0xff]
      %v234 = vld [vmem:[%s195 + $0xf0] sm:$0xff]
      %v235 = vld [vmem:[%s195 + $0xf8] sm:$0xff]
      %v236 = vld [vmem:[%s195 + $0x100] sm:$0xff]
      %v237 = vld [vmem:[%s195 + $0x108] sm:$0xff]
      %v238 = vld [vmem:[%s195 + $0x110] sm:$0xff]
      %v239 = vld [vmem:[%s195 + $0x118] sm:$0xff]
      %v240 = vld [vmem:[%s195 + $0x120] sm:$0xff]
      %v241 = vld [vmem:[%s195 + $0x128] sm:$0xff]
      %v242 = vld [vmem:[%s195 + $0x130] sm:$0xff]
      %v243 = vld [vmem:[%s195 + $0x138] sm:$0xff]
      %v244 = vld [vmem:[%s195 + $0x140] sm:$0xff]
      %v245 = vld [vmem:[%s195 + $0x148] sm:$0xff]
      %v246 = vld [vmem:[%s195 + $0x150] sm:$0xff]
      %v247 = vld [vmem:[%s195 + $0x158] sm:$0xff]
      %v248 = vld [vmem:[%s195 + $0x160] sm:$0xff]
      %v249 = vld [vmem:[%s195 + $0x168] sm:$0xff]
      %v250 = vld [vmem:[%s195 + $0x170] sm:$0xff]
      %v251 = vld [vmem:[%s195 + $0x178] sm:$0xff]
      %v252 = vld [vmem:[%s195 + $0x180] sm:$0xff]
      %v253 = vld [vmem:[%s195 + $0x188] sm:$0xff]
      %v254 = vld [vmem:[%s195 + $0x190] sm:$0xff]
      %v255 = vld [vmem:[%s195 + $0x198] sm:$0xff]
      %v256 = vld [vmem:[%s195 + $0x1a0] sm:$0xff]
      %v257 = vld [vmem:[%s195 + $0x1a8] sm:$0xff]
      %v258 = vld [vmem:[%s195 + $0x1b0] sm:$0xff]
      %v259 = vld [vmem:[%s195 + $0x1b8] sm:$0xff]
      %v260 = vld [vmem:[%s195 + $0x1c0] sm:$0xff]
      %v261 = vld [vmem:[%s195 + $0x1c8] sm:$0xff]
      %v262 = vld [vmem:[%s195 + $0x1d0] sm:$0xff]
      %v263 = vld [vmem:[%s195 + $0x1d8] sm:$0xff]
      %v264 = vld [vmem:[%s195 + $0x1e0] sm:$0xff]
      %v265 = vld [vmem:[%s195 + $0x1e8] sm:$0xff]
      %v266 = vld [vmem:[%s195 + $0x1f0] sm:$0xff]
      %v267 = vld [vmem:[%s195 + $0x1f8] sm:$0xff]
      %v268 = vld [vmem:[%s1] sm:$0xf]
      %v269 = vld [vmem:[%s1 + $0x4] sm:$0xf]
      %v270 = vld [vmem:[%s1 + $0x8] sm:$0xf]
      %v271 = vld [vmem:[%s1 + $0xc] sm:$0xf]
      %v272 = vld [vmem:[%s1 + $0x10] sm:$0xf]
      %v273 = vld [vmem:[%s1 + $0x14] sm:$0xf]
      %v274 = vld [vmem:[%s1 + $0x18] sm:$0xf]
      %v275 = vld [vmem:[%s1 + $0x1c] sm:$0xf]
      %v276 = vld [vmem:[%s1 + $0x20] sm:$0xf]
      %v277 = vld [vmem:[%s1 + $0x24] sm:$0xf]
      %v278 = vld [vmem:[%s1 + $0x28] sm:$0xf]
      %v279 = vld [vmem:[%s1 + $0x2c] sm:$0xf]
      %v280 = vld [vmem:[%s1 + $0x30] sm:$0xf]
      %v281 = vld [vmem:[%s1 + $0x34] sm:$0xf]
      %v282 = vld [vmem:[%s1 + $0x38] sm:$0xf]
      %v283 = vld [vmem:[%s1 + $0x3c] sm:$0xf]
      %v284 = vld [vmem:[%s1 + $0x40] sm:$0xf]
      %v285 = vld [vmem:[%s1 + $0x44] sm:$0xf]
      %v286 = vld [vmem:[%s1 + $0x48] sm:$0xf]
      %v287 = vld [vmem:[%s1 + $0x4c] sm:$0xf]
      %v288 = vld [vmem:[%s1 + $0x50] sm:$0xf]
      %v289 = vld [vmem:[%s1 + $0x54] sm:$0xf]
      %v290 = vld [vmem:[%s1 + $0x58] sm:$0xf]
      %v291 = vld [vmem:[%s1 + $0x5c] sm:$0xf]
      %v292 = vld [vmem:[%s1 + $0x60] sm:$0xf]
      %v293 = vld [vmem:[%s1 + $0x64] sm:$0xf]
      %v294 = vld [vmem:[%s1 + $0x68] sm:$0xf]
      %v295 = vld [vmem:[%s1 + $0x6c] sm:$0xf]
      %v296 = vld [vmem:[%s1 + $0x70] sm:$0xf]
      %v297 = vld [vmem:[%s1 + $0x74] sm:$0xf]
      %v298 = vld [vmem:[%s1 + $0x78] sm:$0xf]
      %v299 = vld [vmem:[%s1 + $0x7c] sm:$0xf]
      %v300 = vld [vmem:[%s1 + $0x80] sm:$0xf]
      %v301 = vld [vmem:[%s1 + $0x84] sm:$0xf]
      %v302 = vld [vmem:[%s1 + $0x88] sm:$0xf]
      %v303 = vld [vmem:[%s1 + $0x8c] sm:$0xf]
      %v304 = vld [vmem:[%s1 + $0x90] sm:$0xf]
      %v305 = vld [vmem:[%s1 + $0x94] sm:$0xf]
      %v306 = vld [vmem:[%s1 + $0x98] sm:$0xf]
      %v307 = vld [vmem:[%s1 + $0x9c] sm:$0xf]
      %v308 = vld [vmem:[%s1 + $0xa0] sm:$0xf]
      %v309 = vld [vmem:[%s1 + $0xa4] sm:$0xf]
      %v310 = vld [vmem:[%s1 + $0xa8] sm:$0xf]
      %v311 = vld [vmem:[%s1 + $0xac] sm:$0xf]
      %v312 = vld [vmem:[%s1 + $0xb0] sm:$0xf]
      %v313 = vld [vmem:[%s1 + $0xb4] sm:$0xf]
      %v314 = vld [vmem:[%s1 + $0xb8] sm:$0xf]
      %v315 = vld [vmem:[%s1 + $0xbc] sm:$0xf]
      %v316 = vld [vmem:[%s1 + $0xc0] sm:$0xf]
      %v317 = vld [vmem:[%s1 + $0xc4] sm:$0xf]
      %v318 = vld [vmem:[%s1 + $0xc8] sm:$0xf]
      %v319 = vld [vmem:[%s1 + $0xcc] sm:$0xf]
      %v320 = vld [vmem:[%s1 + $0xd0] sm:$0xf]
      %v321 = vld [vmem:[%s1 + $0xd4] sm:$0xf]
      %v322 = vld [vmem:[%s1 + $0xd8] sm:$0xf]
      %v323 = vld [vmem:[%s1 + $0xdc] sm:$0xf]
      %v324 = vld [vmem:[%s1 + $0xe0] sm:$0xf]
      %v325 = vld [vmem:[%s1 + $0xe4] sm:$0xf]
      %v326 = vld [vmem:[%s1 + $0xe8] sm:$0xf]
      %v327 = vld [vmem:[%s1 + $0xec] sm:$0xf]
      %v328 = vld [vmem:[%s1 + $0xf0] sm:$0xf]
      %v329 = vld [vmem:[%s1 + $0xf4] sm:$0xf]
      %v330 = vld [vmem:[%s1 + $0xf8] sm:$0xf]
      %v331 = vld [vmem:[%s1 + $0xfc] sm:$0xf]
      %v332 = vlaneseq
      %v333 = vshrl.u32 %v332, 7
      %v334 = vsub.s32 7, %v333
      %v335 = vrot.slane %v202, %v334
      %v400 = vunpack.c.l.b16 %v204
      %v401 = vunpack.c.h.b16 %v204
      %v402 = vunpack.c.l.b16 %v205
      %v403 = vunpack.c.h.b16 %v205
      %v404 = vunpack.c.l.b16 %v206
      %v405 = vunpack.c.h.b16 %v206
      %v406 = vunpack.c.l.b16 %v207
      %v407 = vunpack.c.h.b16 %v207
      %v408 = vunpack.c.l.b16 %v208
      %v409 = vunpack.c.h.b16 %v208
      %v410 = vunpack.c.l.b16 %v209
      %v411 = vunpack.c.h.b16 %v209
      %v412 = vunpack.c.l.b16 %v210
      %v413 = vunpack.c.h.b16 %v210
      %v414 = vunpack.c.l.b16 %v211
      %v415 = vunpack.c.h.b16 %v211
      %v416 = vunpack.c.l.b16 %v212
      %v417 = vunpack.c.h.b16 %v212
      %v418 = vunpack.c.l.b16 %v213
      %v419 = vunpack.c.h.b16 %v213
      %v420 = vunpack.c.l.b16 %v214
      %v421 = vunpack.c.h.b16 %v214
      %v422 = vunpack.c.l.b16 %v215
      %v423 = vunpack.c.h.b16 %v215
      %v424 = vunpack.c.l.b16 %v216
      %v425 = vunpack.c.h.b16 %v216
      %v426 = vunpack.c.l.b16 %v217
      %v427 = vunpack.c.h.b16 %v217
      %v428 = vunpack.c.l.b16 %v218
      %v429 = vunpack.c.h.b16 %v218
      %v430 = vunpack.c.l.b16 %v219
      %v431 = vunpack.c.h.b16 %v219
      %v432 = vunpack.c.l.b16 %v220
      %v433 = vunpack.c.h.b16 %v220
      %v434 = vunpack.c.l.b16 %v221
      %v435 = vunpack.c.h.b16 %v221
      %v436 = vunpack.c.l.b16 %v222
      %v437 = vunpack.c.h.b16 %v222
      %v438 = vunpack.c.l.b16 %v223
      %v439 = vunpack.c.h.b16 %v223
      %v440 = vunpack.c.l.b16 %v224
      %v441 = vunpack.c.h.b16 %v224
      %v442 = vunpack.c.l.b16 %v225
      %v443 = vunpack.c.h.b16 %v225
      %v444 = vunpack.c.l.b16 %v226
      %v445 = vunpack.c.h.b16 %v226
      %v446 = vunpack.c.l.b16 %v227
      %v447 = vunpack.c.h.b16 %v227
      %v448 = vunpack.c.l.b16 %v228
      %v449 = vunpack.c.h.b16 %v228
      %v450 = vunpack.c.l.b16 %v229
      %v451 = vunpack.c.h.b16 %v229
      %v452 = vunpack.c.l.b16 %v230
      %v453 = vunpack.c.h.b16 %v230
      %v454 = vunpack.c.l.b16 %v231
      %v455 = vunpack.c.h.b16 %v231
      %v456 = vunpack.c.l.b16 %v232
      %v457 = vunpack.c.h.b16 %v232
      %v458 = vunpack.c.l.b16 %v233
      %v459 = vunpack.c.h.b16 %v233
      %v460 = vunpack.c.l.b16 %v234
      %v461 = vunpack.c.h.b16 %v234
      %v462 = vunpack.c.l.b16 %v235
      %v463 = vunpack.c.h.b16 %v235
      %v464 = vunpack.c.l.b16 %v236
      %v465 = vunpack.c.h.b16 %v236
      %v466 = vunpack.c.l.b16 %v237
      %v467 = vunpack.c.h.b16 %v237
      %v468 = vunpack.c.l.b16 %v238
      %v469 = vunpack.c.h.b16 %v238
      %v470 = vunpack.c.l.b16 %v239
      %v471 = vunpack.c.h.b16 %v239
      %v472 = vunpack.c.l.b16 %v240
      %v473 = vunpack.c.h.b16 %v240
      %v474 = vunpack.c.l.b16 %v241
      %v475 = vunpack.c.h.b16 %v241
      %v476 = vunpack.c.l.b16 %v242
      %v477 = vunpack.c.h.b16 %v242
      %v478 = vunpack.c.l.b16 %v243
      %v479 = vunpack.c.h.b16 %v243
      %v480 = vunpack.c.l.b16 %v244
      %v481 = vunpack.c.h.b16 %v244
      %v482 = vunpack.c.l.b16 %v245
      %v483 = vunpack.c.h.b16 %v245
      %v484 = vunpack.c.l.b16 %v246
      %v485 = vunpack.c.h.b16 %v246
      %v486 = vunpack.c.l.b16 %v247
      %v487 = vunpack.c.h.b16 %v247
      %v488 = vunpack.c.l.b16 %v248
      %v489 = vunpack.c.h.b16 %v248
      %v490 = vunpack.c.l.b16 %v249
      %v491 = vunpack.c.h.b16 %v249
      %v492 = vunpack.c.l.b16 %v250
      %v493 = vunpack.c.h.b16 %v250
      %v494 = vunpack.c.l.b16 %v251
      %v495 = vunpack.c.h.b16 %v251
      %v496 = vunpack.c.l.b16 %v252
      %v497 = vunpack.c.h.b16 %v252
      %v498 = vunpack.c.l.b16 %v253
      %v499 = vunpack.c.h.b16 %v253
      %v500 = vunpack.c.l.b16 %v254
      %v501 = vunpack.c.h.b16 %v254
      %v502 = vunpack.c.l.b16 %v255
      %v503 = vunpack.c.h.b16 %v255
      %v504 = vunpack.c.l.b16 %v256
      %v505 = vunpack.c.h.b16 %v256
      %v506 = vunpack.c.l.b16 %v257
      %v507 = vunpack.c.h.b16 %v257
      %v508 = vunpack.c.l.b16 %v258
      %v509 = vunpack.c.h.b16 %v258
      %v510 = vunpack.c.l.b16 %v259
      %v511 = vunpack.c.h.b16 %v259
      %v512 = vunpack.c.l.b16 %v260
      %v513 = vunpack.c.h.b16 %v260
      %v514 = vunpack.c.l.b16 %v261
      %v515 = vunpack.c.h.b16 %v261
      %v516 = vunpack.c.l.b16 %v262
      %v517 = vunpack.c.h.b16 %v262
      %v518 = vunpack.c.l.b16 %v263
      %v519 = vunpack.c.h.b16 %v263
      %v520 = vunpack.c.l.b16 %v264
      %v521 = vunpack.c.h.b16 %v264
      %v522 = vunpack.c.l.b16 %v265
      %v523 = vunpack.c.h.b16 %v265
      %v524 = vunpack.c.l.b16 %v266
      %v525 = vunpack.c.h.b16 %v266
      %v526 = vunpack.c.l.b16 %v267
      %v527 = vunpack.c.h.b16 %v267
      %v528 = vpack.c.b16 %v404, %v400
      %v529 = vpack.c.b16 %v405, %v401
      %v530 = vpack.c.b16 %v406, %v402
      %v531 = vpack.c.b16 %v407, %v403
      %v532 = vpack.c.b16 %v412, %v408
      %v533 = vpack.c.b16 %v413, %v409
      %v534 = vpack.c.b16 %v414, %v410
      %v535 = vpack.c.b16 %v415, %v411
      %v536 = vpack.c.b16 %v420, %v416
      %v537 = vpack.c.b16 %v421, %v417
      %v538 = vpack.c.b16 %v422, %v418
      %v539 = vpack.c.b16 %v423, %v419
      %v540 = vpack.c.b16 %v428, %v424
      %v541 = vpack.c.b16 %v429, %v425
      %v542 = vpack.c.b16 %v430, %v426
      %v543 = vpack.c.b16 %v431, %v427
      %v544 = vpack.c.b16 %v436, %v432
      %v545 = vpack.c.b16 %v437, %v433
      %v546 = vpack.c.b16 %v438, %v434
      %v547 = vpack.c.b16 %v439, %v435
      %v548 = vpack.c.b16 %v444, %v440
      %v549 = vpack.c.b16 %v445, %v441
      %v550 = vpack.c.b16 %v446, %v442
      %v551 = vpack.c.b16 %v447, %v443
      %v552 = vpack.c.b16 %v452, %v448
      %v553 = vpack.c.b16 %v453, %v449
      %v554 = vpack.c.b16 %v454, %v450
      %v555 = vpack.c.b16 %v455, %v451
      %v556 = vpack.c.b16 %v460, %v456
      %v557 = vpack.c.b16 %v461, %v457
      %v558 = vpack.c.b16 %v462, %v458
      %v559 = vpack.c.b16 %v463, %v459
      %v560 = vpack.c.b16 %v468, %v464
      %v561 = vpack.c.b16 %v469, %v465
      %v562 = vpack.c.b16 %v470, %v466
      %v563 = vpack.c.b16 %v471, %v467
      %v564 = vpack.c.b16 %v476, %v472
      %v565 = vpack.c.b16 %v477, %v473
      %v566 = vpack.c.b16 %v478, %v474
      %v567 = vpack.c.b16 %v479, %v475
      %v568 = vpack.c.b16 %v484, %v480
      %v569 = vpack.c.b16 %v485, %v481
      %v570 = vpack.c.b16 %v486, %v482
      %v571 = vpack.c.b16 %v487, %v483
      %v572 = vpack.c.b16 %v492, %v488
      %v573 = vpack.c.b16 %v493, %v489
      %v574 = vpack.c.b16 %v494, %v490
      %v575 = vpack.c.b16 %v495, %v491
      %v576 = vpack.c.b16 %v500, %v496
      %v577 = vpack.c.b16 %v501, %v497
      %v578 = vpack.c.b16 %v502, %v498
      %v579 = vpack.c.b16 %v503, %v499
      %v580 = vpack.c.b16 %v508, %v504
      %v581 = vpack.c.b16 %v509, %v505
      %v582 = vpack.c.b16 %v510, %v506
      %v583 = vpack.c.b16 %v511, %v507
      %v584 = vpack.c.b16 %v516, %v512
      %v585 = vpack.c.b16 %v517, %v513
      %v586 = vpack.c.b16 %v518, %v514
      %v587 = vpack.c.b16 %v519, %v515
      %v588 = vpack.c.b16 %v524, %v520
      %v589 = vpack.c.b16 %v525, %v521
      %v590 = vpack.c.b16 %v526, %v522
      %v591 = vpack.c.b16 %v527, %v523
      %v720 = vunpack.c.l.b16 %v268
      %v721 = vunpack.c.l.b16 %v269
      %v722 = vunpack.c.l.b16 %v270
      %v723 = vunpack.c.l.b16 %v271
      %v724 = vunpack.c.l.b16 %v272
      %v725 = vunpack.c.l.b16 %v273
      %v726 = vunpack.c.l.b16 %v274
      %v727 = vunpack.c.l.b16 %v275
      %v728 = vunpack.c.l.b16 %v276
      %v729 = vunpack.c.l.b16 %v277
      %v730 = vunpack.c.l.b16 %v278
      %v731 = vunpack.c.l.b16 %v279
      %v732 = vunpack.c.l.b16 %v280
      %v733 = vunpack.c.l.b16 %v281
      %v734 = vunpack.c.l.b16 %v282
      %v735 = vunpack.c.l.b16 %v283
      %v736 = vunpack.c.l.b16 %v284
      %v737 = vunpack.c.l.b16 %v285
      %v738 = vunpack.c.l.b16 %v286
      %v739 = vunpack.c.l.b16 %v287
      %v740 = vunpack.c.l.b16 %v288
      %v741 = vunpack.c.l.b16 %v289
      %v742 = vunpack.c.l.b16 %v290
      %v743 = vunpack.c.l.b16 %v291
      %v744 = vunpack.c.l.b16 %v292
      %v745 = vunpack.c.l.b16 %v293
      %v746 = vunpack.c.l.b16 %v294
      %v747 = vunpack.c.l.b16 %v295
      %v748 = vunpack.c.l.b16 %v296
      %v749 = vunpack.c.l.b16 %v297
      %v750 = vunpack.c.l.b16 %v298
      %v751 = vunpack.c.l.b16 %v299
      %v752 = vunpack.c.l.b16 %v300
      %v753 = vunpack.c.l.b16 %v301
      %v754 = vunpack.c.l.b16 %v302
      %v755 = vunpack.c.l.b16 %v303
      %v756 = vunpack.c.l.b16 %v304
      %v757 = vunpack.c.l.b16 %v305
      %v758 = vunpack.c.l.b16 %v306
      %v759 = vunpack.c.l.b16 %v307
      %v760 = vunpack.c.l.b16 %v308
      %v761 = vunpack.c.l.b16 %v309
      %v762 = vunpack.c.l.b16 %v310
      %v763 = vunpack.c.l.b16 %v311
      %v764 = vunpack.c.l.b16 %v312
      %v765 = vunpack.c.l.b16 %v313
      %v766 = vunpack.c.l.b16 %v314
      %v767 = vunpack.c.l.b16 %v315
      %v768 = vunpack.c.l.b16 %v316
      %v769 = vunpack.c.l.b16 %v317
      %v770 = vunpack.c.l.b16 %v318
      %v771 = vunpack.c.l.b16 %v319
      %v772 = vunpack.c.l.b16 %v320
      %v773 = vunpack.c.l.b16 %v321
      %v774 = vunpack.c.l.b16 %v322
      %v775 = vunpack.c.l.b16 %v323
      %v776 = vunpack.c.l.b16 %v324
      %v777 = vunpack.c.l.b16 %v325
      %v778 = vunpack.c.l.b16 %v326
      %v779 = vunpack.c.l.b16 %v327
      %v780 = vunpack.c.l.b16 %v328
      %v781 = vunpack.c.l.b16 %v329
      %v782 = vunpack.c.l.b16 %v330
      %v783 = vunpack.c.l.b16 %v331
      %v784 = vpack.c.b16 %v721, %v720
      %v785 = vpack.c.b16 %v723, %v722
      %v786 = vpack.c.b16 %v725, %v724
      %v787 = vpack.c.b16 %v727, %v726
      %v788 = vpack.c.b16 %v729, %v728
      %v789 = vpack.c.b16 %v731, %v730
      %v790 = vpack.c.b16 %v733, %v732
      %v791 = vpack.c.b16 %v735, %v734
      %v792 = vpack.c.b16 %v737, %v736
      %v793 = vpack.c.b16 %v739, %v738
      %v794 = vpack.c.b16 %v741, %v740
      %v795 = vpack.c.b16 %v743, %v742
      %v796 = vpack.c.b16 %v745, %v744
      %v797 = vpack.c.b16 %v747, %v746
      %v798 = vpack.c.b16 %v749, %v748
      %v799 = vpack.c.b16 %v751, %v750
      %v800 = vpack.c.b16 %v753, %v752
      %v801 = vpack.c.b16 %v755, %v754
      %v802 = vpack.c.b16 %v757, %v756
      %v803 = vpack.c.b16 %v759, %v758
      %v804 = vpack.c.b16 %v761, %v760
      %v805 = vpack.c.b16 %v763, %v762
      %v806 = vpack.c.b16 %v765, %v764
      %v807 = vpack.c.b16 %v767, %v766
      %v808 = vpack.c.b16 %v769, %v768
      %v809 = vpack.c.b16 %v771, %v770
      %v810 = vpack.c.b16 %v773, %v772
      %v811 = vpack.c.b16 %v775, %v774
      %v812 = vpack.c.b16 %v777, %v776
      %v813 = vpack.c.b16 %v779, %v778
      %v814 = vpack.c.b16 %v781, %v780
      %v815 = vpack.c.b16 %v783, %v782
      %848 = vmatprep.subr.bf16.mxu0 0
      %849 = vmatpush1.bf16.msra.mxu0 %v791
      %850 = vmatprep.subr.bf16.mxu0 0
      %851 = vmatpush1.bf16.msra.mxu0 %v790
      %852 = vmatprep.subr.bf16.mxu0 0
      %853 = vmatpush1.bf16.msra.mxu0 %v789
      %854 = vmatprep.subr.bf16.mxu0 0
      %855 = vmatpush1.bf16.msra.mxu0 %v788
      %856 = vmatprep.subr.bf16.mxu0 0
      %857 = vmatpush1.bf16.msra.mxu0 %v787
      %858 = vmatprep.subr.bf16.mxu0 0
      %859 = vmatpush1.bf16.msra.mxu0 %v786
      %860 = vmatprep.subr.bf16.mxu0 0
      %861 = vmatpush1.bf16.msra.mxu0 %v785
      %862 = vmatprep.subr.bf16.mxu0 0
      %863 = vmatpush1.bf16.msra.mxu0 %v784
      %864 = vmatprep.subr.bf16.mxu0 0
      %865 = vmatpush2.bf16.msra.mxu0 %v799
      %866 = vmatprep.subr.bf16.mxu0 0
      %867 = vmatpush2.bf16.msra.mxu0 %v798
      %868 = vmatprep.subr.bf16.mxu0 0
      %869 = vmatpush2.bf16.msra.mxu0 %v797
      %870 = vmatprep.subr.bf16.mxu0 0
      %871 = vmatpush2.bf16.msra.mxu0 %v796
      %872 = vmatprep.subr.bf16.mxu0 0
      %873 = vmatpush2.bf16.msra.mxu0 %v795
      %874 = vmatprep.subr.bf16.mxu0 0
      %875 = vmatpush2.bf16.msra.mxu0 %v794
      %876 = vmatprep.subr.bf16.mxu0 0
      %877 = vmatpush2.bf16.msra.mxu0 %v793
      %878 = vmatprep.subr.bf16.mxu0 0
      %879 = vmatpush2.bf16.msra.mxu0 %v792
      %880 = vmatprep.mubr.bf16.mxu0 %v529
      %881 = vmatmul.mubr.bf16.gmra.mxu0 %v528
      %v882 = vpop.f32.mrf.mxu0
      %v883 = vadd.f32 %v335, %v882
      %v884 = vpop.f32.mrf.mxu0
      %v885 = vpop.f32.mrf.mxu0
      %v886 = vadd.f32 %v335, %v885
      %v887 = vpop.f32.mrf.mxu0
      %888 = vmatprep.mubr.bf16.mxu0 %v533
      %889 = vmatmul.mubr.bf16.gmra.mxu0 %v532
      %v890 = vpop.f32.mrf.mxu0
      %v891 = vadd.f32 %v335, %v890
      %v892 = vpop.f32.mrf.mxu0
      %v893 = vpop.f32.mrf.mxu0
      %v894 = vadd.f32 %v335, %v893
      %v895 = vpop.f32.mrf.mxu0
      %896 = vmatprep.mubr.bf16.mxu0 %v537
      %897 = vmatmul.mubr.bf16.gmra.mxu0 %v536
      %v898 = vpop.f32.mrf.mxu0
      %v899 = vadd.f32 %v335, %v898
      %v900 = vpop.f32.mrf.mxu0
      %v901 = vpop.f32.mrf.mxu0
      %v902 = vadd.f32 %v335, %v901
      %v903 = vpop.f32.mrf.mxu0
      %904 = vmatprep.mubr.bf16.mxu0 %v541
      %905 = vmatmul.mubr.bf16.gmra.mxu0 %v540
      %v906 = vpop.f32.mrf.mxu0
      %v907 = vadd.f32 %v335, %v906
      %v908 = vpop.f32.mrf.mxu0
      %v909 = vpop.f32.mrf.mxu0
      %v910 = vadd.f32 %v335, %v909
      %v911 = vpop.f32.mrf.mxu0
      %912 = vmatprep.mubr.bf16.mxu0 %v545
      %913 = vmatmul.mubr.bf16.gmra.mxu0 %v544
      %v914 = vpop.f32.mrf.mxu0
      %v915 = vadd.f32 %v335, %v914
      %v916 = vpop.f32.mrf.mxu0
      %v917 = vpop.f32.mrf.mxu0
      %v918 = vadd.f32 %v335, %v917
      %v919 = vpop.f32.mrf.mxu0
      %920 = vmatprep.mubr.bf16.mxu0 %v549
      %921 = vmatmul.mubr.bf16.gmra.mxu0 %v548
      %v922 = vpop.f32.mrf.mxu0
      %v923 = vadd.f32 %v335, %v922
      %v924 = vpop.f32.mrf.mxu0
      %v925 = vpop.f32.mrf.mxu0
      %v926 = vadd.f32 %v335, %v925
      %v927 = vpop.f32.mrf.mxu0
      %928 = vmatprep.mubr.bf16.mxu0 %v553
      %929 = vmatmul.mubr.bf16.gmra.mxu0 %v552
      %v930 = vpop.f32.mrf.mxu0
      %v931 = vadd.f32 %v335, %v930
      %v932 = vpop.f32.mrf.mxu0
      %v933 = vpop.f32.mrf.mxu0
      %v934 = vadd.f32 %v335, %v933
      %v935 = vpop.f32.mrf.mxu0
      %936 = vmatprep.mubr.bf16.mxu0 %v557
      %937 = vmatmul.mubr.bf16.gmra.mxu0 %v556
      %v938 = vpop.f32.mrf.mxu0
      %v939 = vadd.f32 %v335, %v938
      %v940 = vpop.f32.mrf.mxu0
      %v941 = vpop.f32.mrf.mxu0
      %v942 = vadd.f32 %v335, %v941
      %v943 = vpop.f32.mrf.mxu0
      %944 = vmatprep.mubr.bf16.mxu0 %v561
      %945 = vmatmul.mubr.bf16.gmra.mxu0 %v560
      %v946 = vpop.f32.mrf.mxu0
      %v947 = vadd.f32 %v335, %v946
      %v948 = vpop.f32.mrf.mxu0
      %v949 = vpop.f32.mrf.mxu0
      %v950 = vadd.f32 %v335, %v949
      %v951 = vpop.f32.mrf.mxu0
      %952 = vmatprep.mubr.bf16.mxu0 %v565
      %953 = vmatmul.mubr.bf16.gmra.mxu0 %v564
      %v954 = vpop.f32.mrf.mxu0
      %v955 = vadd.f32 %v335, %v954
      %v956 = vpop.f32.mrf.mxu0
      %v957 = vpop.f32.mrf.mxu0
      %v958 = vadd.f32 %v335, %v957
      %v959 = vpop.f32.mrf.mxu0
      %960 = vmatprep.mubr.bf16.mxu0 %v569
      %961 = vmatmul.mubr.bf16.gmra.mxu0 %v568
      %v962 = vpop.f32.mrf.mxu0
      %v963 = vadd.f32 %v335, %v962
      %v964 = vpop.f32.mrf.mxu0
      %v965 = vpop.f32.mrf.mxu0
      %v966 = vadd.f32 %v335, %v965
      %v967 = vpop.f32.mrf.mxu0
      %968 = vmatprep.mubr.bf16.mxu0 %v573
      %969 = vmatmul.mubr.bf16.gmra.mxu0 %v572
      %v970 = vpop.f32.mrf.mxu0
      %v971 = vadd.f32 %v335, %v970
      %v972 = vpop.f32.mrf.mxu0
      %v973 = vpop.f32.mrf.mxu0
      %v974 = vadd.f32 %v335, %v973
      %v975 = vpop.f32.mrf.mxu0
      %976 = vmatprep.mubr.bf16.mxu0 %v577
      %977 = vmatmul.mubr.bf16.gmra.mxu0 %v576
      %v978 = vpop.f32.mrf.mxu0
      %v979 = vadd.f32 %v335, %v978
      %v980 = vpop.f32.mrf.mxu0
      %v981 = vpop.f32.mrf.mxu0
      %v982 = vadd.f32 %v335, %v981
      %v983 = vpop.f32.mrf.mxu0
      %984 = vmatprep.mubr.bf16.mxu0 %v581
      %985 = vmatmul.mubr.bf16.gmra.mxu0 %v580
      %v986 = vpop.f32.mrf.mxu0
      %v987 = vadd.f32 %v335, %v986
      %v988 = vpop.f32.mrf.mxu0
      %v989 = vpop.f32.mrf.mxu0
      %v990 = vadd.f32 %v335, %v989
      %v991 = vpop.f32.mrf.mxu0
      %992 = vmatprep.mubr.bf16.mxu0 %v585
      %993 = vmatmul.mubr.bf16.gmra.mxu0 %v584
      %v994 = vpop.f32.mrf.mxu0
      %v995 = vadd.f32 %v335, %v994
      %v996 = vpop.f32.mrf.mxu0
      %v997 = vpop.f32.mrf.mxu0
      %v998 = vadd.f32 %v335, %v997
      %v999 = vpop.f32.mrf.mxu0
      %1000 = vmatprep.mubr.bf16.mxu0 %v589
      %1001 = vmatmul.mubr.bf16.gmra.mxu0 %v588
      %v1002 = vpop.f32.mrf.mxu0
      %v1003 = vadd.f32 %v335, %v1002
      %v1004 = vpop.f32.mrf.mxu0
      %v1005 = vpop.f32.mrf.mxu0
      %v1006 = vadd.f32 %v335, %v1005
      %v1007 = vpop.f32.mrf.mxu0
      %1008 = vdwg.mxu0
      %1009 = vmatprep.subr.bf16.mxu0 0
      %1010 = vmatpush1.bf16.msra.mxu0 %v807
      %1011 = vmatprep.subr.bf16.mxu0 0
      %1012 = vmatpush1.bf16.msra.mxu0 %v806
      %1013 = vmatprep.subr.bf16.mxu0 0
      %1014 = vmatpush1.bf16.msra.mxu0 %v805
      %1015 = vmatprep.subr.bf16.mxu0 0
      %1016 = vmatpush1.bf16.msra.mxu0 %v804
      %1017 = vmatprep.subr.bf16.mxu0 0
      %1018 = vmatpush1.bf16.msra.mxu0 %v803
      %1019 = vmatprep.subr.bf16.mxu0 0
      %1020 = vmatpush1.bf16.msra.mxu0 %v802
      %1021 = vmatprep.subr.bf16.mxu0 0
      %1022 = vmatpush1.bf16.msra.mxu0 %v801
      %1023 = vmatprep.subr.bf16.mxu0 0
      %1024 = vmatpush1.bf16.msra.mxu0 %v800
      %1025 = vmatprep.subr.bf16.mxu0 0
      %1026 = vmatpush2.bf16.msra.mxu0 %v815
      %1027 = vmatprep.subr.bf16.mxu0 0
      %1028 = vmatpush2.bf16.msra.mxu0 %v814
      %1029 = vmatprep.subr.bf16.mxu0 0
      %1030 = vmatpush2.bf16.msra.mxu0 %v813
      %1031 = vmatprep.subr.bf16.mxu0 0
      %1032 = vmatpush2.bf16.msra.mxu0 %v812
      %1033 = vmatprep.subr.bf16.mxu0 0
      %1034 = vmatpush2.bf16.msra.mxu0 %v811
      %1035 = vmatprep.subr.bf16.mxu0 0
      %1036 = vmatpush2.bf16.msra.mxu0 %v810
      %1037 = vmatprep.subr.bf16.mxu0 0
      %1038 = vmatpush2.bf16.msra.mxu0 %v809
      %1039 = vmatprep.subr.bf16.mxu0 0
      %1040 = vmatpush2.bf16.msra.mxu0 %v808
      %1041 = vmatprep.mubr.bf16.mxu0 %v531
      %1042 = vmatmul.mubr.bf16.gmra.mxu0 %v530
      %v1043 = vpop.f32.mrf.mxu0
      %v1044 = vadd.f32 %v883, %v1043
      %v1045 = vpop.f32.mrf.mxu0
      %v1046 = vpop.f32.mrf.mxu0
      %v1047 = vadd.f32 %v886, %v1046
      %v1048 = vpop.f32.mrf.mxu0
      %1049 = vmatprep.mubr.bf16.mxu0 %v535
      %1050 = vmatmul.mubr.bf16.gmra.mxu0 %v534
      %v1051 = vpop.f32.mrf.mxu0
      %v1052 = vadd.f32 %v891, %v1051
      %v1053 = vpop.f32.mrf.mxu0
      %v1054 = vpop.f32.mrf.mxu0
      %v1055 = vadd.f32 %v894, %v1054
      %v1056 = vpop.f32.mrf.mxu0
      %1057 = vmatprep.mubr.bf16.mxu0 %v539
      %1058 = vmatmul.mubr.bf16.gmra.mxu0 %v538
      %v1059 = vpop.f32.mrf.mxu0
      %v1060 = vadd.f32 %v899, %v1059
      %v1061 = vpop.f32.mrf.mxu0
      %v1062 = vpop.f32.mrf.mxu0
      %v1063 = vadd.f32 %v902, %v1062
      %v1064 = vpop.f32.mrf.mxu0
      %1065 = vmatprep.mubr.bf16.mxu0 %v543
      %1066 = vmatmul.mubr.bf16.gmra.mxu0 %v542
      %v1067 = vpop.f32.mrf.mxu0
      %v1068 = vadd.f32 %v907, %v1067
      %v1069 = vpop.f32.mrf.mxu0
      %v1070 = vpop.f32.mrf.mxu0
      %v1071 = vadd.f32 %v910, %v1070
      %v1072 = vpop.f32.mrf.mxu0
      %1073 = vmatprep.mubr.bf16.mxu0 %v547
      %1074 = vmatmul.mubr.bf16.gmra.mxu0 %v546
      %v1075 = vpop.f32.mrf.mxu0
      %v1076 = vadd.f32 %v915, %v1075
      %v1077 = vpop.f32.mrf.mxu0
      %v1078 = vpop.f32.mrf.mxu0
      %v1079 = vadd.f32 %v918, %v1078
      %v1080 = vpop.f32.mrf.mxu0
      %1081 = vmatprep.mubr.bf16.mxu0 %v551
      %1082 = vmatmul.mubr.bf16.gmra.mxu0 %v550
      %v1083 = vpop.f32.mrf.mxu0
      %v1084 = vadd.f32 %v923, %v1083
      %v1085 = vpop.f32.mrf.mxu0
      %v1086 = vpop.f32.mrf.mxu0
      %v1087 = vadd.f32 %v926, %v1086
      %v1088 = vpop.f32.mrf.mxu0
      %1089 = vmatprep.mubr.bf16.mxu0 %v555
      %1090 = vmatmul.mubr.bf16.gmra.mxu0 %v554
      %v1091 = vpop.f32.mrf.mxu0
      %v1092 = vadd.f32 %v931, %v1091
      %v1093 = vpop.f32.mrf.mxu0
      %v1094 = vpop.f32.mrf.mxu0
      %v1095 = vadd.f32 %v934, %v1094
      %v1096 = vpop.f32.mrf.mxu0
      %1097 = vmatprep.mubr.bf16.mxu0 %v559
      %1098 = vmatmul.mubr.bf16.gmra.mxu0 %v558
      %v1099 = vpop.f32.mrf.mxu0
      %v1100 = vadd.f32 %v939, %v1099
      %v1101 = vpop.f32.mrf.mxu0
      %v1102 = vpop.f32.mrf.mxu0
      %v1103 = vadd.f32 %v942, %v1102
      %v1104 = vpop.f32.mrf.mxu0
      %1105 = vmatprep.mubr.bf16.mxu0 %v563
      %1106 = vmatmul.mubr.bf16.gmra.mxu0 %v562
      %v1107 = vpop.f32.mrf.mxu0
      %v1108 = vadd.f32 %v947, %v1107
      %v1109 = vpop.f32.mrf.mxu0
      %v1110 = vpop.f32.mrf.mxu0
      %v1111 = vadd.f32 %v950, %v1110
      %v1112 = vpop.f32.mrf.mxu0
      %1113 = vmatprep.mubr.bf16.mxu0 %v567
      %1114 = vmatmul.mubr.bf16.gmra.mxu0 %v566
      %v1115 = vpop.f32.mrf.mxu0
      %v1116 = vadd.f32 %v955, %v1115
      %v1117 = vpop.f32.mrf.mxu0
      %v1118 = vpop.f32.mrf.mxu0
      %v1119 = vadd.f32 %v958, %v1118
      %v1120 = vpop.f32.mrf.mxu0
      %1121 = vmatprep.mubr.bf16.mxu0 %v571
      %1122 = vmatmul.mubr.bf16.gmra.mxu0 %v570
      %v1123 = vpop.f32.mrf.mxu0
      %v1124 = vadd.f32 %v963, %v1123
      %v1125 = vpop.f32.mrf.mxu0
      %v1126 = vpop.f32.mrf.mxu0
      %v1127 = vadd.f32 %v966, %v1126
      %v1128 = vpop.f32.mrf.mxu0
      %1129 = vmatprep.mubr.bf16.mxu0 %v575
      %1130 = vmatmul.mubr.bf16.gmra.mxu0 %v574
      %v1131 = vpop.f32.mrf.mxu0
      %v1132 = vadd.f32 %v971, %v1131
      %v1133 = vpop.f32.mrf.mxu0
      %v1134 = vpop.f32.mrf.mxu0
      %v1135 = vadd.f32 %v974, %v1134
      %v1136 = vpop.f32.mrf.mxu0
      %1137 = vmatprep.mubr.bf16.mxu0 %v579
      %1138 = vmatmul.mubr.bf16.gmra.mxu0 %v578
      %v1139 = vpop.f32.mrf.mxu0
      %v1140 = vadd.f32 %v979, %v1139
      %v1141 = vpop.f32.mrf.mxu0
      %v1142 = vpop.f32.mrf.mxu0
      %v1143 = vadd.f32 %v982, %v1142
      %v1144 = vpop.f32.mrf.mxu0
      %1145 = vmatprep.mubr.bf16.mxu0 %v583
      %1146 = vmatmul.mubr.bf16.gmra.mxu0 %v582
      %v1147 = vpop.f32.mrf.mxu0
      %v1148 = vadd.f32 %v987, %v1147
      %v1149 = vpop.f32.mrf.mxu0
      %v1150 = vpop.f32.mrf.mxu0
      %v1151 = vadd.f32 %v990, %v1150
      %v1152 = vpop.f32.mrf.mxu0
      %1153 = vmatprep.mubr.bf16.mxu0 %v587
      %1154 = vmatmul.mubr.bf16.gmra.mxu0 %v586
      %v1155 = vpop.f32.mrf.mxu0
      %v1156 = vadd.f32 %v995, %v1155
      %v1157 = vpop.f32.mrf.mxu0
      %v1158 = vpop.f32.mrf.mxu0
      %v1159 = vadd.f32 %v998, %v1158
      %v1160 = vpop.f32.mrf.mxu0
      %1161 = vmatprep.mubr.bf16.mxu0 %v591
      %1162 = vmatmul.mubr.bf16.gmra.mxu0 %v590
      %v1163 = vpop.f32.mrf.mxu0
      %v1164 = vadd.f32 %v1003, %v1163
      %v1165 = vpop.f32.mrf.mxu0
      %v1166 = vpop.f32.mrf.mxu0
      %v1167 = vadd.f32 %v1006, %v1166
      %v1168 = vpop.f32.mrf.mxu0
      %1169 = vdwg.mxu0
      %v1170 = vmax.f32 %v1044, 0.0
      %v1171 = vmax.f32 %v1047, 0.0
      %v1172 = vmax.f32 %v1052, 0.0
      %v1173 = vmax.f32 %v1055, 0.0
      %v1174 = vmax.f32 %v1060, 0.0
      %v1175 = vmax.f32 %v1063, 0.0
      %v1176 = vmax.f32 %v1068, 0.0
      %v1177 = vmax.f32 %v1071, 0.0
      %v1178 = vmax.f32 %v1076, 0.0
      %v1179 = vmax.f32 %v1079, 0.0
      %v1180 = vmax.f32 %v1084, 0.0
      %v1181 = vmax.f32 %v1087, 0.0
      %v1182 = vmax.f32 %v1092, 0.0
      %v1183 = vmax.f32 %v1095, 0.0
      %v1184 = vmax.f32 %v1100, 0.0
      %v1185 = vmax.f32 %v1103, 0.0
      %v1186 = vmax.f32 %v1108, 0.0
      %v1187 = vmax.f32 %v1111, 0.0
      %v1188 = vmax.f32 %v1116, 0.0
      %v1189 = vmax.f32 %v1119, 0.0
      %v1190 = vmax.f32 %v1124, 0.0
      %v1191 = vmax.f32 %v1127, 0.0
      %v1192 = vmax.f32 %v1132, 0.0
      %v1193 = vmax.f32 %v1135, 0.0
      %v1194 = vmax.f32 %v1140, 0.0
      %v1195 = vmax.f32 %v1143, 0.0
      %v1196 = vmax.f32 %v1148, 0.0
      %v1197 = vmax.f32 %v1151, 0.0
      %v1198 = vmax.f32 %v1156, 0.0
      %v1199 = vmax.f32 %v1159, 0.0
      %v1200 = vmax.f32 %v1164, 0.0
      %v1201 = vmax.f32 %v1167, 0.0
      %v1202 = vmax.f32 %v1170, %v1171
      %v1203 = vmax.f32 %v1202, %v1172
      %v1204 = vmax.f32 %v1203, %v1173
      %v1205 = vrot.slane %v1204, 4
      %v1206 = vmax.f32 %v1204, %v1205
      %v1207 = vrot.slane %v1206, 2
      %v1208 = vmax.f32 %v1206, %v1207
      %v1209 = vrot.slane %v1208, 1
      %v1210 = vmax.f32 %v1208, %v1209
      %v1211 = vmax.f32 %v1174, %v1175
      %v1212 = vmax.f32 %v1211, %v1176
      %v1213 = vmax.f32 %v1212, %v1177
      %v1214 = vrot.slane %v1213, 4
      %v1215 = vmax.f32 %v1213, %v1214
      %v1216 = vrot.slane %v1215, 2
      %v1217 = vmax.f32 %v1215, %v1216
      %v1218 = vrot.slane %v1217, 1
      %v1219 = vmax.f32 %v1217, %v1218
      %v1220 = vmax.f32 %v1178, %v1179
      %v1221 = vmax.f32 %v1220, %v1180
      %v1222 = vmax.f32 %v1221, %v1181
      %v1223 = vrot.slane %v1222, 4
      %v1224 = vmax.f32 %v1222, %v1223
      %v1225 = vrot.slane %v1224, 2
      %v1226 = vmax.f32 %v1224, %v1225
      %v1227 = vrot.slane %v1226, 1
      %v1228 = vmax.f32 %v1226, %v1227
      %v1229 = vmax.f32 %v1182, %v1183
      %v1230 = vmax.f32 %v1229, %v1184
      %v1231 = vmax.f32 %v1230, %v1185
      %v1232 = vrot.slane %v1231, 4
      %v1233 = vmax.f32 %v1231, %v1232
      %v1234 = vrot.slane %v1233, 2
      %v1235 = vmax.f32 %v1233, %v1234
      %v1236 = vrot.slane %v1235, 1
      %v1237 = vmax.f32 %v1235, %v1236
      %v1238 = vmax.f32 %v1186, %v1187
      %v1239 = vmax.f32 %v1238, %v1188
      %v1240 = vmax.f32 %v1239, %v1189
      %v1241 = vrot.slane %v1240, 4
      %v1242 = vmax.f32 %v1240, %v1241
      %v1243 = vrot.slane %v1242, 2
      %v1244 = vmax.f32 %v1242, %v1243
      %v1245 = vrot.slane %v1244, 1
      %v1246 = vmax.f32 %v1244, %v1245
      %v1247 = vmax.f32 %v1190, %v1191
      %v1248 = vmax.f32 %v1247, %v1192
      %v1249 = vmax.f32 %v1248, %v1193
      %v1250 = vrot.slane %v1249, 4
      %v1251 = vmax.f32 %v1249, %v1250
      %v1252 = vrot.slane %v1251, 2
      %v1253 = vmax.f32 %v1251, %v1252
      %v1254 = vrot.slane %v1253, 1
      %v1255 = vmax.f32 %v1253, %v1254
      %v1256 = vmax.f32 %v1194, %v1195
      %v1257 = vmax.f32 %v1256, %v1196
      %v1258 = vmax.f32 %v1257, %v1197
      %v1259 = vrot.slane %v1258, 4
      %v1260 = vmax.f32 %v1258, %v1259
      %v1261 = vrot.slane %v1260, 2
      %v1262 = vmax.f32 %v1260, %v1261
      %v1263 = vrot.slane %v1262, 1
      %v1264 = vmax.f32 %v1262, %v1263
      %v1265 = vmax.f32 %v1198, %v1199
      %v1266 = vmax.f32 %v1265, %v1200
      %v1267 = vmax.f32 %v1266, %v1201
      %v1268 = vrot.slane %v1267, 4
      %v1269 = vmax.f32 %v1267, %v1268
      %v1270 = vrot.slane %v1269, 2
      %v1271 = vmax.f32 %v1269, %v1270
      %v1272 = vrot.slane %v1271, 1
      %v1273 = vmax.f32 %v1271, %v1272
      %v1274 = vpack.c.bf16 %v1210, %v1210
      %v1275 = vpack.c.bf16 %v1219, %v1219
      %v1276 = vpack.c.bf16 %v1228, %v1228
      %v1277 = vpack.c.bf16 %v1237, %v1237
      %v1278 = vpack.c.bf16 %v1246, %v1246
      %v1279 = vpack.c.bf16 %v1255, %v1255
      %v1280 = vpack.c.bf16 %v1264, %v1264
      %v1281 = vpack.c.bf16 %v1273, %v1273
      %v1282 = vld [vmem:[%s2] sm:$0xf]
      %v1283 = vld [vmem:[%s2 + $0x4] sm:$0xf]
      %v1284 = vld [vmem:[%s2 + $0x8] sm:$0xf]
      %v1285 = vld [vmem:[%s2 + $0xc] sm:$0xf]
      %v1286 = vld [vmem:[%s2 + $0x10] sm:$0xf]
      %v1287 = vld [vmem:[%s2 + $0x14] sm:$0xf]
      %v1288 = vld [vmem:[%s2 + $0x18] sm:$0xf]
      %v1289 = vld [vmem:[%s2 + $0x1c] sm:$0xf]
      %v1290 = vld [vmem:[%s2 + $0x20] sm:$0xf]
      %v1291 = vld [vmem:[%s2 + $0x24] sm:$0xf]
      %v1292 = vld [vmem:[%s2 + $0x28] sm:$0xf]
      %v1293 = vld [vmem:[%s2 + $0x2c] sm:$0xf]
      %v1294 = vld [vmem:[%s2 + $0x30] sm:$0xf]
      %v1295 = vld [vmem:[%s2 + $0x34] sm:$0xf]
      %v1296 = vld [vmem:[%s2 + $0x38] sm:$0xf]
      %v1297 = vld [vmem:[%s2 + $0x3c] sm:$0xf]
      %v1298 = vlaneseq
      %v1299 = vshrl.u32 %v1298, 7
      %v1300 = vsub.s32 0, %v1299
      %v1301 = vrot.slane %v203, %v1300
      %v1310 = vunpack.c.l.b16 %v1274
      %v1311 = vunpack.c.l.b16 %v1275
      %v1312 = vunpack.c.l.b16 %v1276
      %v1313 = vunpack.c.l.b16 %v1277
      %v1314 = vunpack.c.l.b16 %v1278
      %v1315 = vunpack.c.l.b16 %v1279
      %v1316 = vunpack.c.l.b16 %v1280
      %v1317 = vunpack.c.l.b16 %v1281
      %vm1318 = vcmask 1041409
      %v1319 = vsel %vm1318, %v1311, %v1310
      %vm1320 = vcmask 1042434
      %v1321 = vsel %vm1320, %v1312, %v1319
      %vm1322 = vcmask 1043459
      %v1323 = vsel %vm1322, %v1313, %v1321
      %vm1324 = vcmask 1044484
      %v1325 = vsel %vm1324, %v1314, %v1323
      %vm1326 = vcmask 1045509
      %v1327 = vsel %vm1326, %v1315, %v1325
      %vm1328 = vcmask 1046534
      %v1329 = vsel %vm1328, %v1316, %v1327
      %vm1330 = vcmask 1047559
      %v1331 = vsel %vm1330, %v1317, %v1329
      %v1332 = vpack.c.b16 %v1331, %v1331
      %v1350 = vunpack.c.l.b16 %v1282
      %v1351 = vunpack.c.l.b16 %v1283
      %v1352 = vunpack.c.l.b16 %v1284
      %v1353 = vunpack.c.l.b16 %v1285
      %v1354 = vunpack.c.l.b16 %v1286
      %v1355 = vunpack.c.l.b16 %v1287
      %v1356 = vunpack.c.l.b16 %v1288
      %v1357 = vunpack.c.l.b16 %v1289
      %v1358 = vunpack.c.l.b16 %v1290
      %v1359 = vunpack.c.l.b16 %v1291
      %v1360 = vunpack.c.l.b16 %v1292
      %v1361 = vunpack.c.l.b16 %v1293
      %v1362 = vunpack.c.l.b16 %v1294
      %v1363 = vunpack.c.l.b16 %v1295
      %v1364 = vunpack.c.l.b16 %v1296
      %v1365 = vunpack.c.l.b16 %v1297
      %v1366 = vpack.c.b16 %v1351, %v1350
      %v1367 = vpack.c.b16 %v1353, %v1352
      %v1368 = vpack.c.b16 %v1355, %v1354
      %v1369 = vpack.c.b16 %v1357, %v1356
      %v1370 = vpack.c.b16 %v1359, %v1358
      %v1371 = vpack.c.b16 %v1361, %v1360
      %v1372 = vpack.c.b16 %v1363, %v1362
      %v1373 = vpack.c.b16 %v1365, %v1364
      %1382 = vmatprep.subr.bf16.mxu0 0
      %1383 = vmatpush1.bf16.msra.mxu0 %v1373
      %1384 = vmatprep.subr.bf16.mxu0 0
      %1385 = vmatpush1.bf16.msra.mxu0 %v1372
      %1386 = vmatprep.subr.bf16.mxu0 0
      %1387 = vmatpush1.bf16.msra.mxu0 %v1371
      %1388 = vmatprep.subr.bf16.mxu0 0
      %1389 = vmatpush1.bf16.msra.mxu0 %v1370
      %1390 = vmatprep.subr.bf16.mxu0 0
      %1391 = vmatpush1.bf16.msra.mxu0 %v1369
      %1392 = vmatprep.subr.bf16.mxu0 0
      %1393 = vmatpush1.bf16.msra.mxu0 %v1368
      %1394 = vmatprep.subr.bf16.mxu0 0
      %1395 = vmatpush1.bf16.msra.mxu0 %v1367
      %1396 = vmatprep.subr.bf16.mxu0 0
      %1397 = vmatpush1.bf16.msra.mxu0 %v1366
      %1398 = vmatprep.subr.bf16.mxu0 0
      %1399 = vmatpush2.bf16.msra.mxu0 0
      %1400 = vmatprep.subr.bf16.mxu0 0
      %1401 = vmatpush2.bf16.msra.mxu0 0
      %1402 = vmatprep.subr.bf16.mxu0 0
      %1403 = vmatpush2.bf16.msra.mxu0 0
      %1404 = vmatprep.subr.bf16.mxu0 0
      %1405 = vmatpush2.bf16.msra.mxu0 0
      %1406 = vmatprep.subr.bf16.mxu0 0
      %1407 = vmatpush2.bf16.msra.mxu0 0
      %1408 = vmatprep.subr.bf16.mxu0 0
      %1409 = vmatpush2.bf16.msra.mxu0 0
      %1410 = vmatprep.subr.bf16.mxu0 0
      %1411 = vmatpush2.bf16.msra.mxu0 0
      %1412 = vmatprep.subr.bf16.mxu0 0
      %1413 = vmatpush2.bf16.msra.mxu0 0
      %1414 = vmatprep.mubr.bf16.mxu0 0
      %1415 = vmatmul.mubr.bf16.gmra.mxu0 %v1332
      %v1416 = vpop.f32.mrf.mxu0
      %v1417 = vadd.f32 %v1301, %v1416
      %v1418 = vpop.f32.mrf.mxu0
      %v1419 = vpop.f32.mrf.mxu0
      %v1420 = vpop.f32.mrf.mxu0
      %1421 = vdwg.mxu0
      %v1422 = vlaneseq
      %v1423 = vshrl.u32 %v1422, 7
      %v1424 = vsub.s32 1, %v1423
      %v1425 = vrot.slane %v203, %v1424
      %v1426 = vmul.f32 %v1417, %v1425
      %v1427 = vlaneseq
      %v1428 = vshrl.u32 %v1427, 7
      %v1429 = vsub.s32 2, %v1428
      %v1430 = vrot.slane %v203, %v1429
      %v1431 = vadd.f32 %v1426, %v1430
      %v1432 = vmax.f32 %v1431, 0.0
      %v1433 = vlaneseq
      %v1434 = vshrl.u32 %v1433, 7
      %v1435 = vsub.s32 3, %v1434
      %v1436 = vrot.slane %v203, %v1435
      %v1437 = vmul.f32 %v1432, %v1436
      %1438 = vadd.xlane.f32.xlu0 %v1437
      %v1439 = vpop.xlane.xlu0 %1438
      %v1440 = vlaneseq
      %v1441 = vshrl.u32 %v1440, 7
      %v1442 = vsub.s32 4, %v1441
      %v1443 = vrot.slane %v203, %v1442
      %v1444 = vadd.f32 %v1439, %v1443
      %1445 = vst [vmem:[%s200] sm:$0xff] %v1444
      %p1446 = scmp.lt.s32.totalorder %s15, 1
      %s1447 = scalar_select %p1446, %s15, 1
      %s1448 = smul.addr %s1447, 8
      %s1449 = scalar_lea.vmem %s4, %s1448
      // Predicated region
      $region37: #{gcn_forward.5} parent=35 // pred_check
        %p1450 = pneg %p122
      $region38: #{gcn_forward.5} parent=35 // pred_check_branch
        %1452 = sbr.rel (%p1450) target = $region40
      $region39: #{gcn_forward.5} parent=35 // pred_region
        _
      $region40: #{gcn_forward.5} parent=35 // pred_fallthru
        _
    $region36: #{gcn_forward.5} parent=5 // pred_fallthru
      _
    %p1453 = scmp.le.s32.totalorder 2, %s10
    // Predicated region
    $region41: #{gcn_forward.5} parent=5 // pred_check
      %p1454 = pneg %p1453
    $region42: #{gcn_forward.5} parent=5 // pred_check_branch
      %1456 = sbr.rel (%p1454) target = $region44
    $region43: #{gcn_forward.5} parent=5 // pred_region
      %s1457 = ssub.s32 %s10, 2
      // Predicated region
      $region45: #{gcn_forward.5} parent=43 // pred_check
        %p1458 = pneg %p128
      $region46: #{gcn_forward.5} parent=43 // pred_check_branch
        %1460 = sbr.rel (%p1458) target = $region48
      $region47: #{gcn_forward.5} parent=43 // pred_region
        %p1461 = scmp.lt.s32.totalorder %s16, 1
        %s1462 = scalar_select %p1461, %s16, 1
        %s1463 = smul.addr %s1462, 8
        %s1464 = scalar_lea.vmem %s4, %s1463
      $region48: #{gcn_forward.5} parent=43 // pred_fallthru
        _
    $region44: #{gcn_forward.5} parent=5 // pred_fallthru
      _
  $region6: #{gcn_forward.5} parent=0 // loop_footer
    %s14 = sadd.s32 1, %s10
  $region7: #{gcn_forward.5} parent=0 // loop_footer_branch
    %9 = sbr.rel target = $region3
  $region8: #{gcn_forward.5} parent=0 // loop_exit
    _

// kernel: gcn_forward.4
$region0: #{gcn_forward.4}
  #allocation0 [shape = 'u32[]', space=smem, size = 0x4, offset = 0x4, fixed_abs, tag = 'smem constant byte address 0x4 - core index']
  #allocation1 [shape = 'u32[144,128]{1,0:T(1,128)}', space=vmem, size = 0x12000, scoped, tag = 'internal scratch']
  %s0 = inlined_call_operand.hbm [shape: bf16[512,512], index: 0, kind: input, shape index: {}]
  %s1 = inlined_call_operand.vmem [shape: bf16[512,128], index: 1, kind: input, shape index: {}]
  %s2 = inlined_call_operand.vmem [shape: bf16[128,128], index: 2, kind: input, shape index: {}]
  %s3 = inlined_call_operand.vmem [shape: f32[16,128], index: 3, kind: input, shape index: {}]
  %s4 = inlined_call_operand.vmem [shape: bf16[512,128], index: 4, kind: output, shape index: {}]
  %s5 = sld [smem:[#allocation0]]
  $region53: #{gcn_forward.4} parent=0
    _
  %s7 = ssub.s32 1, %s5
  %s8 = scalar_select 0, %s7, %s5
  $region1: #{gcn_forward.4} parent=0
    #allocation2 [shape = 'u8[524288]{0}', space=vmem, size = 0x80000, scoped, tag = 'input window, operand 0']
    #allocation3 [shape = 's32[2]{0}', space=sflag, size = 0x8, scoped, tag = 'scoped memory for gcn_forward.4']
    %9 = vsyncpa [#allocation3], 0
    %s10 = scalar_lea.sflag [#allocation3], 1
    %11 = vsyncpa %s10, 0
    loop: start=0, step=1, limit=4
    $region2: #{gcn_forward.4} parent=1 // loop_pre_header
      _
    $region3: #{gcn_forward.4} parent=1 // loop_header
      %s13 = sphi 0, %s17
      %p14 = scmp.ge.s32.totalorder %s13, 4
      %s23 = sphi 0, %s25
      %s26 = sphi 0, %s23
      %s27 = sphi 0, %s26
      %s43 = sphi 0, %s27
      %s47 = sphi 0, %s47
      %s49 = sphi 0, %s47
      %s50 = sphi 0, %s49
      %s64 = sphi 0, %s50
      %s68 = sphi 0, %s68
      %s70 = sphi 0, %s68
      %s71 = sphi 0, %s70
      %s85 = sphi 0, %s71
      %s89 = sphi 0, %s89
      %s91 = sphi 0, %s89
      %s92 = sphi 0, %s91
      %s106 = sphi 0, %s92
      %s112 = sphi 0, %s114
      %s115 = sphi 0, %s112
      %s116 = sphi 0, %s115
      %s132 = sphi 0, %s116
    $region4: #{gcn_forward.4} parent=1 // loop_header_branch
      %16 = sbr.rel (%p14) target = $region8
    $region5: #{gcn_forward.4} parent=1 // loop_body
      %s18 = ssub.s32 %s13, 1
      %s19 = ssub.s32 %s13, 2
      %s20 = sadd.s32 %s13, 1
      %s21 = ssub.s32 %s13, %s20
      %p22 = scmp.eq.s32.totalorder %s21, 0
      %s24 = sadd.s32 %s23, 1
      %s25 = scalar_select %p22, %s23, %s24
      %p28 = pneg %p22
      %p29 = scmp.eq.s32.totalorder %s13, 1
      %p30 = por %p28, %p29
      %p31 = scmp.ne.s32.totalorder %s23, %s26
      %p32 = scmp.eq.s32.totalorder %s13, 0
      %p33 = por %p31, %p32
      %p34 = scmp.ne.s32.totalorder %s23, %s26
      %p35 = scmp.eq.s32.totalorder %s18, 1
      %p36 = por %p34, %p35
      %p37 = scmp.ne.s32.totalorder %s26, %s27
      %p38 = scmp.eq.s32.totalorder %s18, 0
      %p39 = por %p37, %p38
      %p40 = scmp.ne.s32.totalorder %s26, %s27
      %p41 = scmp.eq.s32.totalorder %s19, 1
      %p42 = por %p40, %p41
      %p44 = scmp.ne.s32.totalorder %s27, %s43
      %p45 = scmp.eq.s32.totalorder %s19, 0
      %p46 = por %p44, %p45
      %s48 = sadd.s32 %s47, 1
      %p51 = scmp.eq.s32.totalorder %s13, 1
      %p52 = scmp.ne.s32.totalorder %s47, %s49
      %p53 = scmp.eq.s32.totalorder %s13, 0
      %p54 = por %p52, %p53
      %p55 = scmp.ne.s32.totalorder %s47, %s49
      %p56 = scmp.eq.s32.totalorder %s18, 1
      %p57 = por %p55, %p56
      %p58 = scmp.ne.s32.totalorder %s49, %s50
      %p59 = scmp.eq.s32.totalorder %s18, 0
      %p60 = por %p58, %p59
      %p61 = scmp.ne.s32.totalorder %s49, %s50
      %p62 = scmp.eq.s32.totalorder %s19, 1
      %p63 = por %p61, %p62
      %p65 = scmp.ne.s32.totalorder %s50, %s64
      %p66 = scmp.eq.s32.totalorder %s19, 0
      %p67 = por %p65, %p66
      %s69 = sadd.s32 %s68, 1
      %p72 = scmp.eq.s32.totalorder %s13, 1
      %p73 = scmp.ne.s32.totalorder %s68, %s70
      %p74 = scmp.eq.s32.totalorder %s13, 0
      %p75 = por %p73, %p74
      %p76 = scmp.ne.s32.totalorder %s68, %s70
      %p77 = scmp.eq.s32.totalorder %s18, 1
      %p78 = por %p76, %p77
      %p79 = scmp.ne.s32.totalorder %s70, %s71
      %p80 = scmp.eq.s32.totalorder %s18, 0
      %p81 = por %p79, %p80
      %p82 = scmp.ne.s32.totalorder %s70, %s71
      %p83 = scmp.eq.s32.totalorder %s19, 1
      %p84 = por %p82, %p83
      %p86 = scmp.ne.s32.totalorder %s71, %s85
      %p87 = scmp.eq.s32.totalorder %s19, 0
      %p88 = por %p86, %p87
      %s90 = sadd.s32 %s89, 1
      %p93 = scmp.eq.s32.totalorder %s13, 1
      %p94 = scmp.ne.s32.totalorder %s89, %s91
      %p95 = scmp.eq.s32.totalorder %s13, 0
      %p96 = por %p94, %p95
      %p97 = scmp.ne.s32.totalorder %s89, %s91
      %p98 = scmp.eq.s32.totalorder %s18, 1
      %p99 = por %p97, %p98
      %p100 = scmp.ne.s32.totalorder %s91, %s92
      %p101 = scmp.eq.s32.totalorder %s18, 0
      %p102 = por %p100, %p101
      %p103 = scmp.ne.s32.totalorder %s91, %s92
      %p104 = scmp.eq.s32.totalorder %s19, 1
      %p105 = por %p103, %p104
      %p107 = scmp.ne.s32.totalorder %s92, %s106
      %p108 = scmp.eq.s32.totalorder %s19, 0
      %p109 = por %p107, %p108
      %s110 = ssub.s32 %s13, %s20
      %p111 = scmp.eq.s32.totalorder %s110, 0
      %s113 = sadd.s32 %s112, 1
      %s114 = scalar_select %p111, %s112, %s113
      %p117 = pneg %p111
      %p118 = scmp.eq.s32.totalorder %s13, 1
      %p119 = por %p117, %p118
      %p120 = scmp.ne.s32.totalorder %s112, %s115
      %p121 = scmp.eq.s32.totalorder %s13, 0
      %p122 = por %p120, %p121
      %p123 = scmp.ne.s32.totalorder %s112, %s115
      %p124 = scmp.eq.s32.totalorder %s18, 1
      %p125 = por %p123, %p124
      %p126 = scmp.ne.s32.totalorder %s115, %s116
      %p127 = scmp.eq.s32.totalorder %s18, 0
      %p128 = por %p126, %p127
      %p129 = scmp.ne.s32.totalorder %s115, %s116
      %p130 = scmp.eq.s32.totalorder %s19, 1
      %p131 = por %p129, %p130
      %p133 = scmp.ne.s32.totalorder %s116, %s132
      %p134 = scmp.eq.s32.totalorder %s19, 0
      %p135 = por %p133, %p134
      %p136 = scmp.le.s32.totalorder 1, %s13
      %p137 = scmp.lt.s32.totalorder %s13, 3
      %p138 = pnand %p136, %p137
      %p139 = pneg %p138
      // Predicated region
      $region9: #{gcn_forward.4} parent=5 // pred_check
        _
      $region10: #{gcn_forward.4} parent=5 // pred_check_branch
        %141 = sbr.rel (%p138) target = $region12
      $region11: #{gcn_forward.4} parent=5 // pred_region
        %s142 = ssub.s32 %s13, 1
        // Predicated region
        $region13: #{gcn_forward.4} parent=11 // pred_check
          %p143 = pneg %p60
        $region14: #{gcn_forward.4} parent=11 // pred_check_branch
          %145 = sbr.rel (%p143) target = $region16
        $region15: #{gcn_forward.4} parent=11 // pred_region
          _
        $region16: #{gcn_forward.4} parent=11 // pred_fallthru
          _
        // Predicated region
        $region17: #{gcn_forward.4} parent=11 // pred_check
          %p146 = pneg %p81
        $region18: #{gcn_forward.4} parent=11 // pred_check_branch
          %148 = sbr.rel (%p146) target = $region20
        $region19: #{gcn_forward.4} parent=11 // pred_region
          _
        $region20: #{gcn_forward.4} parent=11 // pred_fallthru
          _
        // Predicated region
        $region21: #{gcn_forward.4} parent=11 // pred_check
          %p149 = pneg %p102
        $region22: #{gcn_forward.4} parent=11 // pred_check_branch
          %151 = sbr.rel (%p149) target = $region24
        $region23: #{gcn_forward.4} parent=11 // pred_region
          _
        $region24: #{gcn_forward.4} parent=11 // pred_fallthru
          _
      $region12: #{gcn_forward.4} parent=5 // pred_fallthru
        _
      %p152 = scmp.lt.s32.totalorder %s13, 2
      // Predicated region
      $region25: #{gcn_forward.4} parent=5 // pred_check
        %p153 = pneg %p152
      $region26: #{gcn_forward.4} parent=5 // pred_check_branch
        %155 = sbr.rel (%p153) target = $region28
      $region27: #{gcn_forward.4} parent=5 // pred_region
        // Predicated region
        $region29: #{gcn_forward.4} parent=27 // pred_check
          %p156 = pneg %p33
        $region30: #{gcn_forward.4} parent=27 // pred_check_branch
          %158 = sbr.rel (%p156) target = $region32
        $region31: #{gcn_forward.4} parent=27 // pred_region
          %s159 = sand.u32 %s23, 1
          %s160 = scalar_lea.sflag [#allocation3], %s159
          %s161 = sand.u32 %s23, 1
          %s162 = smul.addr %s161, 512
          %s163 = scalar_lea.vmem [#allocation2], %s162
          %s164 = smul.u32 32, %s13
          %s166 = ssub.s32 8192, 8192
          %167 = vsyncadd %s160, %s166
          %s168 = smul.addr %s164, 4
          %s169 = smul.addr %s168, 64
          %s170 = scalar_lea.hbm %s0, %s169
          %s171 = sshll.u32 %s163, 4
          %s172 = int_to_ptr.vmem [resolvable:$true] %s171
          %177 = dma.hbm_to_vmem [thread:$0]  %s170, 8192, %s172, %s160, 256, 256, 16
        $region32: #{gcn_forward.4} parent=27 // pred_fallthru
          _
      $region28: #{gcn_forward.4} parent=5 // pred_fallthru
        _
      %p178 = scmp.le.s32.totalorder 1, %s13
      %p179 = scmp.lt.s32.totalorder %s13, 3
      %p180 = pnand %p178, %p179
      %p181 = pneg %p180
      // Predicated region
      $region33: #{gcn_forward.4} parent=5 // pred_check
        _
      $region34: #{gcn_forward.4} parent=5 // pred_check_branch
        %183 = sbr.rel (%p180) target = $region36
      $region35: #{gcn_forward.4} parent=5 // pred_region
        %s184 = ssub.s32 %s13, 1
        %s185 = sand.u32 %s26, 1
        %s186 = scalar_lea.sflag [#allocation3], %s185
        %s187 = sand.u32 %s26, 1
        %s188 = smul.addr %s187, 512
        %s189 = scalar_lea.vmem [#allocation2], %s188
        // Predicated region
        $region37: #{gcn_forward.4} parent=35 // pred_check
          %p190 = pneg %p39
        $region38: #{gcn_forward.4} parent=35 // pred_check_branch
          %192 = sbr.rel (%p190) target = $region40
        $region39: #{gcn_forward.4} parent=35 // pred_region
          %193 = dma.done %s186, 8192
        $region40: #{gcn_forward.4} parent=35 // pred_fallthru
          _
        %s194 = sand.u32 %s26, 1
        %s195 = scalar_lea.sflag [#allocation3], %s194
        %s196 = sand.u32 %s26, 1
        %s197 = smul.addr %s196, 512
        %s198 = scalar_lea.vmem [#allocation2], %s197
        %p199 = pneg %p39
        %p200 = pneg %p36
        %p201 = pneg %p60
        %p202 = pneg %p57
        %p203 = pneg %p81
        %p204 = pneg %p78
        %p205 = pneg %p102
        %p206 = pneg %p99
        %p207 = pneg %p128
        %p208 = pneg %p125
        %s209 = smul.u32 32, %s18
        %p210 = scmp.lt.s32.totalorder %s209, 63
        %s211 = scalar_select %p210, %s209, 63
        %s212 = smul.addr %s211, 4
        %s213 = scalar_lea.vmem %s4, %s212
        %s214 = smul.u32 32, %s18
        %s215 = smul.u32 32, %s18
        %p216 = scmp.lt.s32.totalorder %s215, 63
        %s217 = scalar_select %p216, %s215, 63
        %s218 = smul.addr %s217, 4
        %s219 = scalar_lea.vmem %s4, %s218
        %s220 = smul.u32 32, %s18
        %v222 = vld [vmem:[%s3] sm:$0xff]
        %v223 = vld [vmem:[%s189] sm:$0xff]
        %v224 = vld [vmem:[%s189 + $0x8] sm:$0xff]
        %v225 = vld [vmem:[%s189 + $0x10] sm:$0xff]
        %v226 = vld [vmem:[%s189 + $0x18] sm:$0xff]
        %v227 = vld [vmem:[%s189 + $0x20] sm:$0xff]
        %v228 = vld [vmem:[%s189 + $0x28] sm:$0xff]
        %v229 = vld [vmem:[%s189 + $0x30] sm:$0xff]
        %v230 = vld [vmem:[%s189 + $0x38] sm:$0xff]
        %v231 = vld [vmem:[%s189 + $0x40] sm:$0xff]
        %v232 = vld [vmem:[%s189 + $0x48] sm:$0xff]
        %v233 = vld [vmem:[%s189 + $0x50] sm:$0xff]
        %v234 = vld [vmem:[%s189 + $0x58] sm:$0xff]
        %v235 = vld [vmem:[%s189 + $0x60] sm:$0xff]
        %v236 = vld [vmem:[%s189 + $0x68] sm:$0xff]
        %v237 = vld [vmem:[%s189 + $0x70] sm:$0xff]
        %v238 = vld [vmem:[%s189 + $0x78] sm:$0xff]
        %v239 = vld [vmem:[%s189 + $0x80] sm:$0xff]
        %v240 = vld [vmem:[%s189 + $0x88] sm:$0xff]
        %v241 = vld [vmem:[%s189 + $0x90] sm:$0xff]
        %v242 = vld [vmem:[%s189 + $0x98] sm:$0xff]
        %v243 = vld [vmem:[%s189 + $0xa0] sm:$0xff]
        %v244 = vld [vmem:[%s189 + $0xa8] sm:$0xff]
        %v245 = vld [vmem:[%s189 + $0xb0] sm:$0xff]
        %v246 = vld [vmem:[%s189 + $0xb8] sm:$0xff]
        %v247 = vld [vmem:[%s189 + $0xc0] sm:$0xff]
        %v248 = vld [vmem:[%s189 + $0xc8] sm:$0xff]
        %v249 = vld [vmem:[%s189 + $0xd0] sm:$0xff]
        %v250 = vld [vmem:[%s189 + $0xd8] sm:$0xff]
        %v251 = vld [vmem:[%s189 + $0xe0] sm:$0xff]
        %v252 = vld [vmem:[%s189 + $0xe8] sm:$0xff]
        %v253 = vld [vmem:[%s189 + $0xf0] sm:$0xff]
        %v254 = vld [vmem:[%s189 + $0xf8] sm:$0xff]
        %v255 = vld [vmem:[%s189 + $0x100] sm:$0xff]
        %v256 = vld [vmem:[%s189 + $0x108] sm:$0xff]
        %v257 = vld [vmem:[%s189 + $0x110] sm:$0xff]
        %v258 = vld [vmem:[%s189 + $0x118] sm:$0xff]
        %v259 = vld [vmem:[%s189 + $0x120] sm:$0xff]
        %v260 = vld [vmem:[%s189 + $0x128] sm:$0xff]
        %v261 = vld [vmem:[%s189 + $0x130] sm:$0xff]
        %v262 = vld [vmem:[%s189 + $0x138] sm:$0xff]
        %v263 = vld [vmem:[%s189 + $0x140] sm:$0xff]
        %v264 = vld [vmem:[%s189 + $0x148] sm:$0xff]
        %v265 = vld [vmem:[%s189 + $0x150] sm:$0xff]
        %v266 = vld [vmem:[%s189 + $0x158] sm:$0xff]
        %v267 = vld [vmem:[%s189 + $0x160] sm:$0xff]
        %v268 = vld [vmem:[%s189 + $0x168] sm:$0xff]
        %v269 = vld [vmem:[%s189 + $0x170] sm:$0xff]
        %v270 = vld [vmem:[%s189 + $0x178] sm:$0xff]
        %v271 = vld [vmem:[%s189 + $0x180] sm:$0xff]
        %v272 = vld [vmem:[%s189 + $0x188] sm:$0xff]
        %v273 = vld [vmem:[%s189 + $0x190] sm:$0xff]
        %v274 = vld [vmem:[%s189 + $0x198] sm:$0xff]
        %v275 = vld [vmem:[%s189 + $0x1a0] sm:$0xff]
        %v276 = vld [vmem:[%s189 + $0x1a8] sm:$0xff]
        %v277 = vld [vmem:[%s189 + $0x1b0] sm:$0xff]
        %v278 = vld [vmem:[%s189 + $0x1b8] sm:$0xff]
        %v279 = vld [vmem:[%s189 + $0x1c0] sm:$0xff]
        %v280 = vld [vmem:[%s189 + $0x1c8] sm:$0xff]
        %v281 = vld [vmem:[%s189 + $0x1d0] sm:$0xff]
        %v282 = vld [vmem:[%s189 + $0x1d8] sm:$0xff]
        %v283 = vld [vmem:[%s189 + $0x1e0] sm:$0xff]
        %v284 = vld [vmem:[%s189 + $0x1e8] sm:$0xff]
        %v285 = vld [vmem:[%s189 + $0x1f0] sm:$0xff]
        %v286 = vld [vmem:[%s189 + $0x1f8] sm:$0xff]
        %v287 = vld [vmem:[%s1] sm:$0xf]
        %v288 = vld [vmem:[%s1 + $0x4] sm:$0xf]
        %v289 = vld [vmem:[%s1 + $0x8] sm:$0xf]
        %v290 = vld [vmem:[%s1 + $0xc] sm:$0xf]
        %v291 = vld [vmem:[%s1 + $0x10] sm:$0xf]
        %v292 = vld [vmem:[%s1 + $0x14] sm:$0xf]
        %v293 = vld [vmem:[%s1 + $0x18] sm:$0xf]
        %v294 = vld [vmem:[%s1 + $0x1c] sm:$0xf]
        %v295 = vld [vmem:[%s1 + $0x20] sm:$0xf]
        %v296 = vld [vmem:[%s1 + $0x24] sm:$0xf]
        %v297 = vld [vmem:[%s1 + $0x28] sm:$0xf]
        %v298 = vld [vmem:[%s1 + $0x2c] sm:$0xf]
        %v299 = vld [vmem:[%s1 + $0x30] sm:$0xf]
        %v300 = vld [vmem:[%s1 + $0x34] sm:$0xf]
        %v301 = vld [vmem:[%s1 + $0x38] sm:$0xf]
        %v302 = vld [vmem:[%s1 + $0x3c] sm:$0xf]
        %v303 = vld [vmem:[%s1 + $0x40] sm:$0xf]
        %v304 = vld [vmem:[%s1 + $0x44] sm:$0xf]
        %v305 = vld [vmem:[%s1 + $0x48] sm:$0xf]
        %v306 = vld [vmem:[%s1 + $0x4c] sm:$0xf]
        %v307 = vld [vmem:[%s1 + $0x50] sm:$0xf]
        %v308 = vld [vmem:[%s1 + $0x54] sm:$0xf]
        %v309 = vld [vmem:[%s1 + $0x58] sm:$0xf]
        %v310 = vld [vmem:[%s1 + $0x5c] sm:$0xf]
        %v311 = vld [vmem:[%s1 + $0x60] sm:$0xf]
        %v312 = vld [vmem:[%s1 + $0x64] sm:$0xf]
        %v313 = vld [vmem:[%s1 + $0x68] sm:$0xf]
        %v314 = vld [vmem:[%s1 + $0x6c] sm:$0xf]
        %v315 = vld [vmem:[%s1 + $0x70] sm:$0xf]
        %v316 = vld [vmem:[%s1 + $0x74] sm:$0xf]
        %v317 = vld [vmem:[%s1 + $0x78] sm:$0xf]
        %v318 = vld [vmem:[%s1 + $0x7c] sm:$0xf]
        %v319 = vld [vmem:[%s1 + $0x80] sm:$0xf]
        %v320 = vld [vmem:[%s1 + $0x84] sm:$0xf]
        %v321 = vld [vmem:[%s1 + $0x88] sm:$0xf]
        %v322 = vld [vmem:[%s1 + $0x8c] sm:$0xf]
        %v323 = vld [vmem:[%s1 + $0x90] sm:$0xf]
        %v324 = vld [vmem:[%s1 + $0x94] sm:$0xf]
        %v325 = vld [vmem:[%s1 + $0x98] sm:$0xf]
        %v326 = vld [vmem:[%s1 + $0x9c] sm:$0xf]
        %v327 = vld [vmem:[%s1 + $0xa0] sm:$0xf]
        %v328 = vld [vmem:[%s1 + $0xa4] sm:$0xf]
        %v329 = vld [vmem:[%s1 + $0xa8] sm:$0xf]
        %v330 = vld [vmem:[%s1 + $0xac] sm:$0xf]
        %v331 = vld [vmem:[%s1 + $0xb0] sm:$0xf]
        %v332 = vld [vmem:[%s1 + $0xb4] sm:$0xf]
        %v333 = vld [vmem:[%s1 + $0xb8] sm:$0xf]
        %v334 = vld [vmem:[%s1 + $0xbc] sm:$0xf]
        %v335 = vld [vmem:[%s1 + $0xc0] sm:$0xf]
        %v336 = vld [vmem:[%s1 + $0xc4] sm:$0xf]
        %v337 = vld [vmem:[%s1 + $0xc8] sm:$0xf]
        %v338 = vld [vmem:[%s1 + $0xcc] sm:$0xf]
        %v339 = vld [vmem:[%s1 + $0xd0] sm:$0xf]
        %v340 = vld [vmem:[%s1 + $0xd4] sm:$0xf]
        %v341 = vld [vmem:[%s1 + $0xd8] sm:$0xf]
        %v342 = vld [vmem:[%s1 + $0xdc] sm:$0xf]
        %v343 = vld [vmem:[%s1 + $0xe0] sm:$0xf]
        %v344 = vld [vmem:[%s1 + $0xe4] sm:$0xf]
        %v345 = vld [vmem:[%s1 + $0xe8] sm:$0xf]
        %v346 = vld [vmem:[%s1 + $0xec] sm:$0xf]
        %v347 = vld [vmem:[%s1 + $0xf0] sm:$0xf]
        %v348 = vld [vmem:[%s1 + $0xf4] sm:$0xf]
        %v349 = vld [vmem:[%s1 + $0xf8] sm:$0xf]
        %v350 = vld [vmem:[%s1 + $0xfc] sm:$0xf]
        %v351 = vlaneseq
        %v352 = vshrl.u32 %v351, 7
        %v353 = vsub.s32 6, %v352
        %v354 = vrot.slane %v222, %v353
        %v419 = vunpack.c.l.b16 %v223
        %v420 = vunpack.c.h.b16 %v223
        %v421 = vunpack.c.l.b16 %v224
        %v422 = vunpack.c.h.b16 %v224
        %v423 = vunpack.c.l.b16 %v225
        %v424 = vunpack.c.h.b16 %v225
        %v425 = vunpack.c.l.b16 %v226
        %v426 = vunpack.c.h.b16 %v226
        %v427 = vunpack.c.l.b16 %v227
        %v428 = vunpack.c.h.b16 %v227
        %v429 = vunpack.c.l.b16 %v228
        %v430 = vunpack.c.h.b16 %v228
        %v431 = vunpack.c.l.b16 %v229
        %v432 = vunpack.c.h.b16 %v229
        %v433 = vunpack.c.l.b16 %v230
        %v434 = vunpack.c.h.b16 %v230
        %v435 = vunpack.c.l.b16 %v231
        %v436 = vunpack.c.h.b16 %v231
        %v437 = vunpack.c.l.b16 %v232
        %v438 = vunpack.c.h.b16 %v232
        %v439 = vunpack.c.l.b16 %v233
        %v440 = vunpack.c.h.b16 %v233
        %v441 = vunpack.c.l.b16 %v234
        %v442 = vunpack.c.h.b16 %v234
        %v443 = vunpack.c.l.b16 %v235
        %v444 = vunpack.c.h.b16 %v235
        %v445 = vunpack.c.l.b16 %v236
        %v446 = vunpack.c.h.b16 %v236
        %v447 = vunpack.c.l.b16 %v237
        %v448 = vunpack.c.h.b16 %v237
        %v449 = vunpack.c.l.b16 %v238
        %v450 = vunpack.c.h.b16 %v238
        %v451 = vunpack.c.l.b16 %v239
        %v452 = vunpack.c.h.b16 %v239
        %v453 = vunpack.c.l.b16 %v240
        %v454 = vunpack.c.h.b16 %v240
        %v455 = vunpack.c.l.b16 %v241
        %v456 = vunpack.c.h.b16 %v241
        %v457 = vunpack.c.l.b16 %v242
        %v458 = vunpack.c.h.b16 %v242
        %v459 = vunpack.c.l.b16 %v243
        %v460 = vunpack.c.h.b16 %v243
        %v461 = vunpack.c.l.b16 %v244
        %v462 = vunpack.c.h.b16 %v244
        %v463 = vunpack.c.l.b16 %v245
        %v464 = vunpack.c.h.b16 %v245
        %v465 = vunpack.c.l.b16 %v246
        %v466 = vunpack.c.h.b16 %v246
        %v467 = vunpack.c.l.b16 %v247
        %v468 = vunpack.c.h.b16 %v247
        %v469 = vunpack.c.l.b16 %v248
        %v470 = vunpack.c.h.b16 %v248
        %v471 = vunpack.c.l.b16 %v249
        %v472 = vunpack.c.h.b16 %v249
        %v473 = vunpack.c.l.b16 %v250
        %v474 = vunpack.c.h.b16 %v250
        %v475 = vunpack.c.l.b16 %v251
        %v476 = vunpack.c.h.b16 %v251
        %v477 = vunpack.c.l.b16 %v252
        %v478 = vunpack.c.h.b16 %v252
        %v479 = vunpack.c.l.b16 %v253
        %v480 = vunpack.c.h.b16 %v253
        %v481 = vunpack.c.l.b16 %v254
        %v482 = vunpack.c.h.b16 %v254
        %v483 = vunpack.c.l.b16 %v255
        %v484 = vunpack.c.h.b16 %v255
        %v485 = vunpack.c.l.b16 %v256
        %v486 = vunpack.c.h.b16 %v256
        %v487 = vunpack.c.l.b16 %v257
        %v488 = vunpack.c.h.b16 %v257
        %v489 = vunpack.c.l.b16 %v258
        %v490 = vunpack.c.h.b16 %v258
        %v491 = vunpack.c.l.b16 %v259
        %v492 = vunpack.c.h.b16 %v259
        %v493 = vunpack.c.l.b16 %v260
        %v494 = vunpack.c.h.b16 %v260
        %v495 = vunpack.c.l.b16 %v261
        %v496 = vunpack.c.h.b16 %v261
        %v497 = vunpack.c.l.b16 %v262
        %v498 = vunpack.c.h.b16 %v262
        %v499 = vunpack.c.l.b16 %v263
        %v500 = vunpack.c.h.b16 %v263
        %v501 = vunpack.c.l.b16 %v264
        %v502 = vunpack.c.h.b16 %v264
        %v503 = vunpack.c.l.b16 %v265
        %v504 = vunpack.c.h.b16 %v265
        %v505 = vunpack.c.l.b16 %v266
        %v506 = vunpack.c.h.b16 %v266
        %v507 = vunpack.c.l.b16 %v267
        %v508 = vunpack.c.h.b16 %v267
        %v509 = vunpack.c.l.b16 %v268
        %v510 = vunpack.c.h.b16 %v268
        %v511 = vunpack.c.l.b16 %v269
        %v512 = vunpack.c.h.b16 %v269
        %v513 = vunpack.c.l.b16 %v270
        %v514 = vunpack.c.h.b16 %v270
        %v515 = vunpack.c.l.b16 %v271
        %v516 = vunpack.c.h.b16 %v271
        %v517 = vunpack.c.l.b16 %v272
        %v518 = vunpack.c.h.b16 %v272
        %v519 = vunpack.c.l.b16 %v273
        %v520 = vunpack.c.h.b16 %v273
        %v521 = vunpack.c.l.b16 %v274
        %v522 = vunpack.c.h.b16 %v274
        %v523 = vunpack.c.l.b16 %v275
        %v524 = vunpack.c.h.b16 %v275
        %v525 = vunpack.c.l.b16 %v276
        %v526 = vunpack.c.h.b16 %v276
        %v527 = vunpack.c.l.b16 %v277
        %v528 = vunpack.c.h.b16 %v277
        %v529 = vunpack.c.l.b16 %v278
        %v530 = vunpack.c.h.b16 %v278
        %v531 = vunpack.c.l.b16 %v279
        %v532 = vunpack.c.h.b16 %v279
        %v533 = vunpack.c.l.b16 %v280
        %v534 = vunpack.c.h.b16 %v280
        %v535 = vunpack.c.l.b16 %v281
        %v536 = vunpack.c.h.b16 %v281
        %v537 = vunpack.c.l.b16 %v282
        %v538 = vunpack.c.h.b16 %v282
        %v539 = vunpack.c.l.b16 %v283
        %v540 = vunpack.c.h.b16 %v283
        %v541 = vunpack.c.l.b16 %v284
        %v542 = vunpack.c.h.b16 %v284
        %v543 = vunpack.c.l.b16 %v285
        %v544 = vunpack.c.h.b16 %v285
        %v545 = vunpack.c.l.b16 %v286
        %v546 = vunpack.c.h.b16 %v286
        %v547 = vpack.c.b16 %v423, %v419
        %v548 = vpack.c.b16 %v424, %v420
        %v549 = vpack.c.b16 %v425, %v421
        %v550 = vpack.c.b16 %v426, %v422
        %v551 = vpack.c.b16 %v431, %v427
        %v552 = vpack.c.b16 %v432, %v428
        %v553 = vpack.c.b16 %v433, %v429
        %v554 = vpack.c.b16 %v434, %v430
        %v555 = vpack.c.b16 %v439, %v435
        %v556 = vpack.c.b16 %v440, %v436
        %v557 = vpack.c.b16 %v441, %v437
        %v558 = vpack.c.b16 %v442, %v438
        %v559 = vpack.c.b16 %v447, %v443
        %v560 = vpack.c.b16 %v448, %v444
        %v561 = vpack.c.b16 %v449, %v445
        %v562 = vpack.c.b16 %v450, %v446
        %v563 = vpack.c.b16 %v455, %v451
        %v564 = vpack.c.b16 %v456, %v452
        %v565 = vpack.c.b16 %v457, %v453
        %v566 = vpack.c.b16 %v458, %v454
        %v567 = vpack.c.b16 %v463, %v459
        %v568 = vpack.c.b16 %v464, %v460
        %v569 = vpack.c.b16 %v465, %v461
        %v570 = vpack.c.b16 %v466, %v462
        %v571 = vpack.c.b16 %v471, %v467
        %v572 = vpack.c.b16 %v472, %v468
        %v573 = vpack.c.b16 %v473, %v469
        %v574 = vpack.c.b16 %v474, %v470
        %v575 = vpack.c.b16 %v479, %v475
        %v576 = vpack.c.b16 %v480, %v476
        %v577 = vpack.c.b16 %v481, %v477
        %v578 = vpack.c.b16 %v482, %v478
        %v579 = vpack.c.b16 %v487, %v483
        %v580 = vpack.c.b16 %v488, %v484
        %v581 = vpack.c.b16 %v489, %v485
        %v582 = vpack.c.b16 %v490, %v486
        %v583 = vpack.c.b16 %v495, %v491
        %v584 = vpack.c.b16 %v496, %v492
        %v585 = vpack.c.b16 %v497, %v493
        %v586 = vpack.c.b16 %v498, %v494
        %v587 = vpack.c.b16 %v503, %v499
        %v588 = vpack.c.b16 %v504, %v500
        %v589 = vpack.c.b16 %v505, %v501
        %v590 = vpack.c.b16 %v506, %v502
        %v591 = vpack.c.b16 %v511, %v507
        %v592 = vpack.c.b16 %v512, %v508
        %v593 = vpack.c.b16 %v513, %v509
        %v594 = vpack.c.b16 %v514, %v510
        %v595 = vpack.c.b16 %v519, %v515
        %v596 = vpack.c.b16 %v520, %v516
        %v597 = vpack.c.b16 %v521, %v517
        %v598 = vpack.c.b16 %v522, %v518
        %v599 = vpack.c.b16 %v527, %v523
        %v600 = vpack.c.b16 %v528, %v524
        %v601 = vpack.c.b16 %v529, %v525
        %v602 = vpack.c.b16 %v530, %v526
        %v603 = vpack.c.b16 %v535, %v531
        %v604 = vpack.c.b16 %v536, %v532
        %v605 = vpack.c.b16 %v537, %v533
        %v606 = vpack.c.b16 %v538, %v534
        %v607 = vpack.c.b16 %v543, %v539
        %v608 = vpack.c.b16 %v544, %v540
        %v609 = vpack.c.b16 %v545, %v541
        %v610 = vpack.c.b16 %v546, %v542
        %v739 = vunpack.c.l.b16 %v287
        %v740 = vunpack.c.l.b16 %v288
        %v741 = vunpack.c.l.b16 %v289
        %v742 = vunpack.c.l.b16 %v290
        %v743 = vunpack.c.l.b16 %v291
        %v744 = vunpack.c.l.b16 %v292
        %v745 = vunpack.c.l.b16 %v293
        %v746 = vunpack.c.l.b16 %v294
        %v747 = vunpack.c.l.b16 %v295
        %v748 = vunpack.c.l.b16 %v296
        %v749 = vunpack.c.l.b16 %v297
        %v750 = vunpack.c.l.b16 %v298
        %v751 = vunpack.c.l.b16 %v299
        %v752 = vunpack.c.l.b16 %v300
        %v753 = vunpack.c.l.b16 %v301
        %v754 = vunpack.c.l.b16 %v302
        %v755 = vunpack.c.l.b16 %v303
        %v756 = vunpack.c.l.b16 %v304
        %v757 = vunpack.c.l.b16 %v305
        %v758 = vunpack.c.l.b16 %v306
        %v759 = vunpack.c.l.b16 %v307
        %v760 = vunpack.c.l.b16 %v308
        %v761 = vunpack.c.l.b16 %v309
        %v762 = vunpack.c.l.b16 %v310
        %v763 = vunpack.c.l.b16 %v311
        %v764 = vunpack.c.l.b16 %v312
        %v765 = vunpack.c.l.b16 %v313
        %v766 = vunpack.c.l.b16 %v314
        %v767 = vunpack.c.l.b16 %v315
        %v768 = vunpack.c.l.b16 %v316
        %v769 = vunpack.c.l.b16 %v317
        %v770 = vunpack.c.l.b16 %v318
        %v771 = vunpack.c.l.b16 %v319
        %v772 = vunpack.c.l.b16 %v320
        %v773 = vunpack.c.l.b16 %v321
        %v774 = vunpack.c.l.b16 %v322
        %v775 = vunpack.c.l.b16 %v323
        %v776 = vunpack.c.l.b16 %v324
        %v777 = vunpack.c.l.b16 %v325
        %v778 = vunpack.c.l.b16 %v326
        %v779 = vunpack.c.l.b16 %v327
        %v780 = vunpack.c.l.b16 %v328
        %v781 = vunpack.c.l.b16 %v329
        %v782 = vunpack.c.l.b16 %v330
        %v783 = vunpack.c.l.b16 %v331
        %v784 = vunpack.c.l.b16 %v332
        %v785 = vunpack.c.l.b16 %v333
        %v786 = vunpack.c.l.b16 %v334
        %v787 = vunpack.c.l.b16 %v335
        %v788 = vunpack.c.l.b16 %v336
        %v789 = vunpack.c.l.b16 %v337
        %v790 = vunpack.c.l.b16 %v338
        %v791 = vunpack.c.l.b16 %v339
        %v792 = vunpack.c.l.b16 %v340
        %v793 = vunpack.c.l.b16 %v341
        %v794 = vunpack.c.l.b16 %v342
        %v795 = vunpack.c.l.b16 %v343
        %v796 = vunpack.c.l.b16 %v344
        %v797 = vunpack.c.l.b16 %v345
        %v798 = vunpack.c.l.b16 %v346
        %v799 = vunpack.c.l.b16 %v347
        %v800 = vunpack.c.l.b16 %v348
        %v801 = vunpack.c.l.b16 %v349
        %v802 = vunpack.c.l.b16 %v350
        %v803 = vpack.c.b16 %v740, %v739
        %v804 = vpack.c.b16 %v742, %v741
        %v805 = vpack.c.b16 %v744, %v743
        %v806 = vpack.c.b16 %v746, %v745
        %v807 = vpack.c.b16 %v748, %v747
        %v808 = vpack.c.b16 %v750, %v749
        %v809 = vpack.c.b16 %v752, %v751
        %v810 = vpack.c.b16 %v754, %v753
        %v811 = vpack.c.b16 %v756, %v755
        %v812 = vpack.c.b16 %v758, %v757
        %v813 = vpack.c.b16 %v760, %v759
        %v814 = vpack.c.b16 %v762, %v761
        %v815 = vpack.c.b16 %v764, %v763
        %v816 = vpack.c.b16 %v766, %v765
        %v817 = vpack.c.b16 %v768, %v767
        %v818 = vpack.c.b16 %v770, %v769
        %v819 = vpack.c.b16 %v772, %v771
        %v820 = vpack.c.b16 %v774, %v773
        %v821 = vpack.c.b16 %v776, %v775
        %v822 = vpack.c.b16 %v778, %v777
        %v823 = vpack.c.b16 %v780, %v779
        %v824 = vpack.c.b16 %v782, %v781
        %v825 = vpack.c.b16 %v784, %v783
        %v826 = vpack.c.b16 %v786, %v785
        %v827 = vpack.c.b16 %v788, %v787
        %v828 = vpack.c.b16 %v790, %v789
        %v829 = vpack.c.b16 %v792, %v791
        %v830 = vpack.c.b16 %v794, %v793
        %v831 = vpack.c.b16 %v796, %v795
        %v832 = vpack.c.b16 %v798, %v797
        %v833 = vpack.c.b16 %v800, %v799
        %v834 = vpack.c.b16 %v802, %v801
        %867 = vmatprep.subr.bf16.mxu0 0
        %868 = vmatpush1.bf16.msra.mxu0 %v810
        %869 = vmatprep.subr.bf16.mxu0 0
        %870 = vmatpush1.bf16.msra.mxu0 %v809
        %871 = vmatprep.subr.bf16.mxu0 0
        %872 = vmatpush1.bf16.msra.mxu0 %v808
        %873 = vmatprep.subr.bf16.mxu0 0
        %874 = vmatpush1.bf16.msra.mxu0 %v807
        %875 = vmatprep.subr.bf16.mxu0 0
        %876 = vmatpush1.bf16.msra.mxu0 %v806
        %877 = vmatprep.subr.bf16.mxu0 0
        %878 = vmatpush1.bf16.msra.mxu0 %v805
        %879 = vmatprep.subr.bf16.mxu0 0
        %880 = vmatpush1.bf16.msra.mxu0 %v804
        %881 = vmatprep.subr.bf16.mxu0 0
        %882 = vmatpush1.bf16.msra.mxu0 %v803
        %883 = vmatprep.subr.bf16.mxu0 0
        %884 = vmatpush2.bf16.msra.mxu0 %v818
        %885 = vmatprep.subr.bf16.mxu0 0
        %886 = vmatpush2.bf16.msra.mxu0 %v817
        %887 = vmatprep.subr.bf16.mxu0 0
        %888 = vmatpush2.bf16.msra.mxu0 %v816
        %889 = vmatprep.subr.bf16.mxu0 0
        %890 = vmatpush2.bf16.msra.mxu0 %v815
        %891 = vmatprep.subr.bf16.mxu0 0
        %892 = vmatpush2.bf16.msra.mxu0 %v814
        %893 = vmatprep.subr.bf16.mxu0 0
        %894 = vmatpush2.bf16.msra.mxu0 %v813
        %895 = vmatprep.subr.bf16.mxu0 0
        %896 = vmatpush2.bf16.msra.mxu0 %v812
        %897 = vmatprep.subr.bf16.mxu0 0
        %898 = vmatpush2.bf16.msra.mxu0 %v811
        %899 = vmatprep.mubr.bf16.mxu0 %v548
        %900 = vmatmul.mubr.bf16.gmra.mxu0 %v547
        %v901 = vpop.f32.mrf.mxu0
        %v902 = vadd.f32 %v354, %v901
        %v903 = vpop.f32.mrf.mxu0
        %v904 = vpop.f32.mrf.mxu0
        %v905 = vadd.f32 %v354, %v904
        %v906 = vpop.f32.mrf.mxu0
        %907 = vmatprep.mubr.bf16.mxu0 %v552
        %908 = vmatmul.mubr.bf16.gmra.mxu0 %v551
        %v909 = vpop.f32.mrf.mxu0
        %v910 = vadd.f32 %v354, %v909
        %v911 = vpop.f32.mrf.mxu0
        %v912 = vpop.f32.mrf.mxu0
        %v913 = vadd.f32 %v354, %v912
        %v914 = vpop.f32.mrf.mxu0
        %915 = vmatprep.mubr.bf16.mxu0 %v556
        %916 = vmatmul.mubr.bf16.gmra.mxu0 %v555
        %v917 = vpop.f32.mrf.mxu0
        %v918 = vadd.f32 %v354, %v917
        %v919 = vpop.f32.mrf.mxu0
        %v920 = vpop.f32.mrf.mxu0
        %v921 = vadd.f32 %v354, %v920
        %v922 = vpop.f32.mrf.mxu0
        %923 = vmatprep.mubr.bf16.mxu0 %v560
        %924 = vmatmul.mubr.bf16.gmra.mxu0 %v559
        %v925 = vpop.f32.mrf.mxu0
        %v926 = vadd.f32 %v354, %v925
        %v927 = vpop.f32.mrf.mxu0
        %v928 = vpop.f32.mrf.mxu0
        %v929 = vadd.f32 %v354, %v928
        %v930 = vpop.f32.mrf.mxu0
        %931 = vmatprep.mubr.bf16.mxu0 %v564
        %932 = vmatmul.mubr.bf16.gmra.mxu0 %v563
        %v933 = vpop.f32.mrf.mxu0
        %v934 = vadd.f32 %v354, %v933
        %v935 = vpop.f32.mrf.mxu0
        %v936 = vpop.f32.mrf.mxu0
        %v937 = vadd.f32 %v354, %v936
        %v938 = vpop.f32.mrf.mxu0
        %939 = vmatprep.mubr.bf16.mxu0 %v568
        %940 = vmatmul.mubr.bf16.gmra.mxu0 %v567
        %v941 = vpop.f32.mrf.mxu0
        %v942 = vadd.f32 %v354, %v941
        %v943 = vpop.f32.mrf.mxu0
        %v944 = vpop.f32.mrf.mxu0
        %v945 = vadd.f32 %v354, %v944
        %v946 = vpop.f32.mrf.mxu0
        %947 = vmatprep.mubr.bf16.mxu0 %v572
        %948 = vmatmul.mubr.bf16.gmra.mxu0 %v571
        %v949 = vpop.f32.mrf.mxu0
        %v950 = vadd.f32 %v354, %v949
        %v951 = vpop.f32.mrf.mxu0
        %v952 = vpop.f32.mrf.mxu0
        %v953 = vadd.f32 %v354, %v952
        %v954 = vpop.f32.mrf.mxu0
        %955 = vmatprep.mubr.bf16.mxu0 %v576
        %956 = vmatmul.mubr.bf16.gmra.mxu0 %v575
        %v957 = vpop.f32.mrf.mxu0
        %v958 = vadd.f32 %v354, %v957
        %v959 = vpop.f32.mrf.mxu0
        %v960 = vpop.f32.mrf.mxu0
        %v961 = vadd.f32 %v354, %v960
        %v962 = vpop.f32.mrf.mxu0
        %963 = vmatprep.mubr.bf16.mxu0 %v580
        %964 = vmatmul.mubr.bf16.gmra.mxu0 %v579
        %v965 = vpop.f32.mrf.mxu0
        %v966 = vadd.f32 %v354, %v965
        %v967 = vpop.f32.mrf.mxu0
        %v968 = vpop.f32.mrf.mxu0
        %v969 = vadd.f32 %v354, %v968
        %v970 = vpop.f32.mrf.mxu0
        %971 = vmatprep.mubr.bf16.mxu0 %v584
        %972 = vmatmul.mubr.bf16.gmra.mxu0 %v583
        %v973 = vpop.f32.mrf.mxu0
        %v974 = vadd.f32 %v354, %v973
        %v975 = vpop.f32.mrf.mxu0
        %v976 = vpop.f32.mrf.mxu0
        %v977 = vadd.f32 %v354, %v976
        %v978 = vpop.f32.mrf.mxu0
        %979 = vmatprep.mubr.bf16.mxu0 %v588
        %980 = vmatmul.mubr.bf16.gmra.mxu0 %v587
        %v981 = vpop.f32.mrf.mxu0
        %v982 = vadd.f32 %v354, %v981
        %v983 = vpop.f32.mrf.mxu0
        %v984 = vpop.f32.mrf.mxu0
        %v985 = vadd.f32 %v354, %v984
        %v986 = vpop.f32.mrf.mxu0
        %987 = vmatprep.mubr.bf16.mxu0 %v592
        %988 = vmatmul.mubr.bf16.gmra.mxu0 %v591
        %v989 = vpop.f32.mrf.mxu0
        %v990 = vadd.f32 %v354, %v989
        %v991 = vpop.f32.mrf.mxu0
        %v992 = vpop.f32.mrf.mxu0
        %v993 = vadd.f32 %v354, %v992
        %v994 = vpop.f32.mrf.mxu0
        %995 = vmatprep.mubr.bf16.mxu0 %v596
        %996 = vmatmul.mubr.bf16.gmra.mxu0 %v595
        %v997 = vpop.f32.mrf.mxu0
        %v998 = vadd.f32 %v354, %v997
        %v999 = vpop.f32.mrf.mxu0
        %v1000 = vpop.f32.mrf.mxu0
        %v1001 = vadd.f32 %v354, %v1000
        %v1002 = vpop.f32.mrf.mxu0
        %1003 = vmatprep.mubr.bf16.mxu0 %v600
        %1004 = vmatmul.mubr.bf16.gmra.mxu0 %v599
        %v1005 = vpop.f32.mrf.mxu0
        %v1006 = vadd.f32 %v354, %v1005
        %v1007 = vpop.f32.mrf.mxu0
        %v1008 = vpop.f32.mrf.mxu0
        %v1009 = vadd.f32 %v354, %v1008
        %v1010 = vpop.f32.mrf.mxu0
        %1011 = vmatprep.mubr.bf16.mxu0 %v604
        %1012 = vmatmul.mubr.bf16.gmra.mxu0 %v603
        %v1013 = vpop.f32.mrf.mxu0
        %v1014 = vadd.f32 %v354, %v1013
        %v1015 = vpop.f32.mrf.mxu0
        %v1016 = vpop.f32.mrf.mxu0
        %v1017 = vadd.f32 %v354, %v1016
        %v1018 = vpop.f32.mrf.mxu0
        %1019 = vmatprep.mubr.bf16.mxu0 %v608
        %1020 = vmatmul.mubr.bf16.gmra.mxu0 %v607
        %v1021 = vpop.f32.mrf.mxu0
        %v1022 = vadd.f32 %v354, %v1021
        %v1023 = vpop.f32.mrf.mxu0
        %v1024 = vpop.f32.mrf.mxu0
        %v1025 = vadd.f32 %v354, %v1024
        %v1026 = vpop.f32.mrf.mxu0
        %1027 = vdwg.mxu0
        %1028 = vmatprep.subr.bf16.mxu0 0
        %1029 = vmatpush1.bf16.msra.mxu0 %v826
        %1030 = vmatprep.subr.bf16.mxu0 0
        %1031 = vmatpush1.bf16.msra.mxu0 %v825
        %1032 = vmatprep.subr.bf16.mxu0 0
        %1033 = vmatpush1.bf16.msra.mxu0 %v824
        %1034 = vmatprep.subr.bf16.mxu0 0
        %1035 = vmatpush1.bf16.msra.mxu0 %v823
        %1036 = vmatprep.subr.bf16.mxu0 0
        %1037 = vmatpush1.bf16.msra.mxu0 %v822
        %1038 = vmatprep.subr.bf16.mxu0 0
        %1039 = vmatpush1.bf16.msra.mxu0 %v821
        %1040 = vmatprep.subr.bf16.mxu0 0
        %1041 = vmatpush1.bf16.msra.mxu0 %v820
        %1042 = vmatprep.subr.bf16.mxu0 0
        %1043 = vmatpush1.bf16.msra.mxu0 %v819
        %1044 = vmatprep.subr.bf16.mxu0 0
        %1045 = vmatpush2.bf16.msra.mxu0 %v834
        %1046 = vmatprep.subr.bf16.mxu0 0
        %1047 = vmatpush2.bf16.msra.mxu0 %v833
        %1048 = vmatprep.subr.bf16.mxu0 0
        %1049 = vmatpush2.bf16.msra.mxu0 %v832
        %1050 = vmatprep.subr.bf16.mxu0 0
        %1051 = vmatpush2.bf16.msra.mxu0 %v831
        %1052 = vmatprep.subr.bf16.mxu0 0
        %1053 = vmatpush2.bf16.msra.mxu0 %v830
        %1054 = vmatprep.subr.bf16.mxu0 0
        %1055 = vmatpush2.bf16.msra.mxu0 %v829
        %1056 = vmatprep.subr.bf16.mxu0 0
        %1057 = vmatpush2.bf16.msra.mxu0 %v828
        %1058 = vmatprep.subr.bf16.mxu0 0
        %1059 = vmatpush2.bf16.msra.mxu0 %v827
        %1060 = vmatprep.mubr.bf16.mxu0 %v550
        %1061 = vmatmul.mubr.bf16.gmra.mxu0 %v549
        %v1062 = vpop.f32.mrf.mxu0
        %v1063 = vadd.f32 %v902, %v1062
        %v1064 = vpop.f32.mrf.mxu0
        %v1065 = vpop.f32.mrf.mxu0
        %v1066 = vadd.f32 %v905, %v1065
        %v1067 = vpop.f32.mrf.mxu0
        %1068 = vmatprep.mubr.bf16.mxu0 %v554
        %1069 = vmatmul.mubr.bf16.gmra.mxu0 %v553
        %v1070 = vpop.f32.mrf.mxu0
        %v1071 = vadd.f32 %v910, %v1070
        %v1072 = vpop.f32.mrf.mxu0
        %v1073 = vpop.f32.mrf.mxu0
        %v1074 = vadd.f32 %v913, %v1073
        %v1075 = vpop.f32.mrf.mxu0
        %1076 = vmatprep.mubr.bf16.mxu0 %v558
        %1077 = vmatmul.mubr.bf16.gmra.mxu0 %v557
        %v1078 = vpop.f32.mrf.mxu0
        %v1079 = vadd.f32 %v918, %v1078
        %v1080 = vpop.f32.mrf.mxu0
        %v1081 = vpop.f32.mrf.mxu0
        %v1082 = vadd.f32 %v921, %v1081
        %v1083 = vpop.f32.mrf.mxu0
        %1084 = vmatprep.mubr.bf16.mxu0 %v562
        %1085 = vmatmul.mubr.bf16.gmra.mxu0 %v561
        %v1086 = vpop.f32.mrf.mxu0
        %v1087 = vadd.f32 %v926, %v1086
        %v1088 = vpop.f32.mrf.mxu0
        %v1089 = vpop.f32.mrf.mxu0
        %v1090 = vadd.f32 %v929, %v1089
        %v1091 = vpop.f32.mrf.mxu0
        %1092 = vmatprep.mubr.bf16.mxu0 %v566
        %1093 = vmatmul.mubr.bf16.gmra.mxu0 %v565
        %v1094 = vpop.f32.mrf.mxu0
        %v1095 = vadd.f32 %v934, %v1094
        %v1096 = vpop.f32.mrf.mxu0
        %v1097 = vpop.f32.mrf.mxu0
        %v1098 = vadd.f32 %v937, %v1097
        %v1099 = vpop.f32.mrf.mxu0
        %1100 = vmatprep.mubr.bf16.mxu0 %v570
        %1101 = vmatmul.mubr.bf16.gmra.mxu0 %v569
        %v1102 = vpop.f32.mrf.mxu0
        %v1103 = vadd.f32 %v942, %v1102
        %v1104 = vpop.f32.mrf.mxu0
        %v1105 = vpop.f32.mrf.mxu0
        %v1106 = vadd.f32 %v945, %v1105
        %v1107 = vpop.f32.mrf.mxu0
        %1108 = vmatprep.mubr.bf16.mxu0 %v574
        %1109 = vmatmul.mubr.bf16.gmra.mxu0 %v573
        %v1110 = vpop.f32.mrf.mxu0
        %v1111 = vadd.f32 %v950, %v1110
        %v1112 = vpop.f32.mrf.mxu0
        %v1113 = vpop.f32.mrf.mxu0
        %v1114 = vadd.f32 %v953, %v1113
        %v1115 = vpop.f32.mrf.mxu0
        %1116 = vmatprep.mubr.bf16.mxu0 %v578
        %1117 = vmatmul.mubr.bf16.gmra.mxu0 %v577
        %v1118 = vpop.f32.mrf.mxu0
        %v1119 = vadd.f32 %v958, %v1118
        %v1120 = vpop.f32.mrf.mxu0
        %v1121 = vpop.f32.mrf.mxu0
        %v1122 = vadd.f32 %v961, %v1121
        %v1123 = vpop.f32.mrf.mxu0
        %1124 = vmatprep.mubr.bf16.mxu0 %v582
        %1125 = vmatmul.mubr.bf16.gmra.mxu0 %v581
        %v1126 = vpop.f32.mrf.mxu0
        %v1127 = vadd.f32 %v966, %v1126
        %v1128 = vpop.f32.mrf.mxu0
        %v1129 = vpop.f32.mrf.mxu0
        %v1130 = vadd.f32 %v969, %v1129
        %v1131 = vpop.f32.mrf.mxu0
        %1132 = vmatprep.mubr.bf16.mxu0 %v586
        %1133 = vmatmul.mubr.bf16.gmra.mxu0 %v585
        %v1134 = vpop.f32.mrf.mxu0
        %v1135 = vadd.f32 %v974, %v1134
        %v1136 = vpop.f32.mrf.mxu0
        %v1137 = vpop.f32.mrf.mxu0
        %v1138 = vadd.f32 %v977, %v1137
        %v1139 = vpop.f32.mrf.mxu0
        %1140 = vmatprep.mubr.bf16.mxu0 %v590
        %1141 = vmatmul.mubr.bf16.gmra.mxu0 %v589
        %v1142 = vpop.f32.mrf.mxu0
        %v1143 = vadd.f32 %v982, %v1142
        %v1144 = vpop.f32.mrf.mxu0
        %v1145 = vpop.f32.mrf.mxu0
        %v1146 = vadd.f32 %v985, %v1145
        %v1147 = vpop.f32.mrf.mxu0
        %1148 = vmatprep.mubr.bf16.mxu0 %v594
        %1149 = vmatmul.mubr.bf16.gmra.mxu0 %v593
        %v1150 = vpop.f32.mrf.mxu0
        %v1151 = vadd.f32 %v990, %v1150
        %v1152 = vpop.f32.mrf.mxu0
        %v1153 = vpop.f32.mrf.mxu0
        %v1154 = vadd.f32 %v993, %v1153
        %v1155 = vpop.f32.mrf.mxu0
        %1156 = vmatprep.mubr.bf16.mxu0 %v598
        %1157 = vmatmul.mubr.bf16.gmra.mxu0 %v597
        %v1158 = vpop.f32.mrf.mxu0
        %v1159 = vadd.f32 %v998, %v1158
        %v1160 = vpop.f32.mrf.mxu0
        %v1161 = vpop.f32.mrf.mxu0
        %v1162 = vadd.f32 %v1001, %v1161
        %v1163 = vpop.f32.mrf.mxu0
        %1164 = vmatprep.mubr.bf16.mxu0 %v602
        %1165 = vmatmul.mubr.bf16.gmra.mxu0 %v601
        %v1166 = vpop.f32.mrf.mxu0
        %v1167 = vadd.f32 %v1006, %v1166
        %v1168 = vpop.f32.mrf.mxu0
        %v1169 = vpop.f32.mrf.mxu0
        %v1170 = vadd.f32 %v1009, %v1169
        %v1171 = vpop.f32.mrf.mxu0
        %1172 = vmatprep.mubr.bf16.mxu0 %v606
        %1173 = vmatmul.mubr.bf16.gmra.mxu0 %v605
        %v1174 = vpop.f32.mrf.mxu0
        %v1175 = vadd.f32 %v1014, %v1174
        %v1176 = vpop.f32.mrf.mxu0
        %v1177 = vpop.f32.mrf.mxu0
        %v1178 = vadd.f32 %v1017, %v1177
        %v1179 = vpop.f32.mrf.mxu0
        %1180 = vmatprep.mubr.bf16.mxu0 %v610
        %1181 = vmatmul.mubr.bf16.gmra.mxu0 %v609
        %v1182 = vpop.f32.mrf.mxu0
        %v1183 = vadd.f32 %v1022, %v1182
        %v1184 = vpop.f32.mrf.mxu0
        %v1185 = vpop.f32.mrf.mxu0
        %v1186 = vadd.f32 %v1025, %v1185
        %v1187 = vpop.f32.mrf.mxu0
        %1188 = vdwg.mxu0
        %v1189 = vmax.f32 %v1063, 0.0
        %v1190 = vmax.f32 %v1066, 0.0
        %v1191 = vmax.f32 %v1071, 0.0
        %v1192 = vmax.f32 %v1074, 0.0
        %v1193 = vmax.f32 %v1079, 0.0
        %v1194 = vmax.f32 %v1082, 0.0
        %v1195 = vmax.f32 %v1087, 0.0
        %v1196 = vmax.f32 %v1090, 0.0
        %v1197 = vmax.f32 %v1095, 0.0
        %v1198 = vmax.f32 %v1098, 0.0
        %v1199 = vmax.f32 %v1103, 0.0
        %v1200 = vmax.f32 %v1106, 0.0
        %v1201 = vmax.f32 %v1111, 0.0
        %v1202 = vmax.f32 %v1114, 0.0
        %v1203 = vmax.f32 %v1119, 0.0
        %v1204 = vmax.f32 %v1122, 0.0
        %v1205 = vmax.f32 %v1127, 0.0
        %v1206 = vmax.f32 %v1130, 0.0
        %v1207 = vmax.f32 %v1135, 0.0
        %v1208 = vmax.f32 %v1138, 0.0
        %v1209 = vmax.f32 %v1143, 0.0
        %v1210 = vmax.f32 %v1146, 0.0
        %v1211 = vmax.f32 %v1151, 0.0
        %v1212 = vmax.f32 %v1154, 0.0
        %v1213 = vmax.f32 %v1159, 0.0
        %v1214 = vmax.f32 %v1162, 0.0
        %v1215 = vmax.f32 %v1167, 0.0
        %v1216 = vmax.f32 %v1170, 0.0
        %v1217 = vmax.f32 %v1175, 0.0
        %v1218 = vmax.f32 %v1178, 0.0
        %v1219 = vmax.f32 %v1183, 0.0
        %v1220 = vmax.f32 %v1186, 0.0
        %v1221 = vpack.c.bf16 %v1190, %v1189
        %v1222 = vpack.c.bf16 %v1192, %v1191
        %v1223 = vpack.c.bf16 %v1194, %v1193
        %v1224 = vpack.c.bf16 %v1196, %v1195
        %v1225 = vpack.c.bf16 %v1198, %v1197
        %v1226 = vpack.c.bf16 %v1200, %v1199
        %v1227 = vpack.c.bf16 %v1202, %v1201
        %v1228 = vpack.c.bf16 %v1204, %v1203
        %v1229 = vpack.c.bf16 %v1206, %v1205
        %v1230 = vpack.c.bf16 %v1208, %v1207
        %v1231 = vpack.c.bf16 %v1210, %v1209
        %v1232 = vpack.c.bf16 %v1212, %v1211
        %v1233 = vpack.c.bf16 %v1214, %v1213
        %v1234 = vpack.c.bf16 %v1216, %v1215
        %v1235 = vpack.c.bf16 %v1218, %v1217
        %v1236 = vpack.c.bf16 %v1220, %v1219
        %v1237 = vld [vmem:[%s2] sm:$0xf]
        %v1238 = vld [vmem:[%s2 + $0x4] sm:$0xf]
        %v1239 = vld [vmem:[%s2 + $0x8] sm:$0xf]
        %v1240 = vld [vmem:[%s2 + $0xc] sm:$0xf]
        %v1241 = vld [vmem:[%s2 + $0x10] sm:$0xf]
        %v1242 = vld [vmem:[%s2 + $0x14] sm:$0xf]
        %v1243 = vld [vmem:[%s2 + $0x18] sm:$0xf]
        %v1244 = vld [vmem:[%s2 + $0x1c] sm:$0xf]
        %v1245 = vld [vmem:[%s2 + $0x20] sm:$0xf]
        %v1246 = vld [vmem:[%s2 + $0x24] sm:$0xf]
        %v1247 = vld [vmem:[%s2 + $0x28] sm:$0xf]
        %v1248 = vld [vmem:[%s2 + $0x2c] sm:$0xf]
        %v1249 = vld [vmem:[%s2 + $0x30] sm:$0xf]
        %v1250 = vld [vmem:[%s2 + $0x34] sm:$0xf]
        %v1251 = vld [vmem:[%s2 + $0x38] sm:$0xf]
        %v1252 = vld [vmem:[%s2 + $0x3c] sm:$0xf]
        %v1269 = vunpack.c.l.b16 %v1237
        %v1270 = vunpack.c.l.b16 %v1238
        %v1271 = vunpack.c.l.b16 %v1239
        %v1272 = vunpack.c.l.b16 %v1240
        %v1273 = vunpack.c.l.b16 %v1241
        %v1274 = vunpack.c.l.b16 %v1242
        %v1275 = vunpack.c.l.b16 %v1243
        %v1276 = vunpack.c.l.b16 %v1244
        %v1277 = vunpack.c.l.b16 %v1245
        %v1278 = vunpack.c.l.b16 %v1246
        %v1279 = vunpack.c.l.b16 %v1247
        %v1280 = vunpack.c.l.b16 %v1248
        %v1281 = vunpack.c.l.b16 %v1249
        %v1282 = vunpack.c.l.b16 %v1250
        %v1283 = vunpack.c.l.b16 %v1251
        %v1284 = vunpack.c.l.b16 %v1252
        %v1285 = vpack.c.b16 %v1270, %v1269
        %v1286 = vpack.c.b16 %v1272, %v1271
        %v1287 = vpack.c.b16 %v1274, %v1273
        %v1288 = vpack.c.b16 %v1276, %v1275
        %v1289 = vpack.c.b16 %v1278, %v1277
        %v1290 = vpack.c.b16 %v1280, %v1279
        %v1291 = vpack.c.b16 %v1282, %v1281
        %v1292 = vpack.c.b16 %v1284, %v1283
        %1301 = vmatprep.subr.bf16.mxu0 0
        %1302 = vmatpush1.bf16.msra.mxu0 %v1292
        %1303 = vmatprep.subr.bf16.mxu0 0
        %1304 = vmatpush1.bf16.msra.mxu0 %v1291
        %1305 = vmatprep.subr.bf16.mxu0 0
        %1306 = vmatpush1.bf16.msra.mxu0 %v1290
        %1307 = vmatprep.subr.bf16.mxu0 0
        %1308 = vmatpush1.bf16.msra.mxu0 %v1289
        %1309 = vmatprep.subr.bf16.mxu0 0
        %1310 = vmatpush1.bf16.msra.mxu0 %v1288
        %1311 = vmatprep.subr.bf16.mxu0 0
        %1312 = vmatpush1.bf16.msra.mxu0 %v1287
        %1313 = vmatprep.subr.bf16.mxu0 0
        %1314 = vmatpush1.bf16.msra.mxu0 %v1286
        %1315 = vmatprep.subr.bf16.mxu0 0
        %1316 = vmatpush1.bf16.msra.mxu0 %v1285
        %1317 = vmatprep.subr.bf16.mxu0 0
        %1318 = vmatpush2.bf16.msra.mxu0 0
        %1319 = vmatprep.subr.bf16.mxu0 0
        %1320 = vmatpush2.bf16.msra.mxu0 0
        %1321 = vmatprep.subr.bf16.mxu0 0
        %1322 = vmatpush2.bf16.msra.mxu0 0
        %1323 = vmatprep.subr.bf16.mxu0 0
        %1324 = vmatpush2.bf16.msra.mxu0 0
        %1325 = vmatprep.subr.bf16.mxu0 0
        %1326 = vmatpush2.bf16.msra.mxu0 0
        %1327 = vmatprep.subr.bf16.mxu0 0
        %1328 = vmatpush2.bf16.msra.mxu0 0
        %1329 = vmatprep.subr.bf16.mxu0 0
        %1330 = vmatpush2.bf16.msra.mxu0 0
        %1331 = vmatprep.subr.bf16.mxu0 0
        %1332 = vmatpush2.bf16.msra.mxu0 0
        %1333 = vmatprep.mubr.bf16.mxu0 0
        %1334 = vmatmul.mubr.bf16.gmra.mxu0 %v1221
        %v1335 = vpop.f32.mrf.mxu0
        %v1336 = vadd.f32 0.0, %v1335
        %v1337 = vpop.f32.mrf.mxu0
        %v1338 = vpop.f32.mrf.mxu0
        %v1339 = vadd.f32 0.0, %v1338
        %v1340 = vpop.f32.mrf.mxu0
        %1341 = vmatprep.mubr.bf16.mxu0 0
        %1342 = vmatmul.mubr.bf16.gmra.mxu0 %v1222
        %v1343 = vpop.f32.mrf.mxu0
        %v1344 = vadd.f32 0.0, %v1343
        %v1345 = vpop.f32.mrf.mxu0
        %v1346 = vpop.f32.mrf.mxu0
        %v1347 = vadd.f32 0.0, %v1346
        %v1348 = vpop.f32.mrf.mxu0
        %1349 = vmatprep.mubr.bf16.mxu0 0
        %1350 = vmatmul.mubr.bf16.gmra.mxu0 %v1223
        %v1351 = vpop.f32.mrf.mxu0
        %v1352 = vadd.f32 0.0, %v1351
        %v1353 = vpop.f32.mrf.mxu0
        %v1354 = vpop.f32.mrf.mxu0
        %v1355 = vadd.f32 0.0, %v1354
        %v1356 = vpop.f32.mrf.mxu0
        %1357 = vmatprep.mubr.bf16.mxu0 0
        %1358 = vmatmul.mubr.bf16.gmra.mxu0 %v1224
        %v1359 = vpop.f32.mrf.mxu0
        %v1360 = vadd.f32 0.0, %v1359
        %v1361 = vpop.f32.mrf.mxu0
        %v1362 = vpop.f32.mrf.mxu0
        %v1363 = vadd.f32 0.0, %v1362
        %v1364 = vpop.f32.mrf.mxu0
        %1365 = vmatprep.mubr.bf16.mxu0 0
        %1366 = vmatmul.mubr.bf16.gmra.mxu0 %v1225
        %v1367 = vpop.f32.mrf.mxu0
        %v1368 = vadd.f32 0.0, %v1367
        %v1369 = vpop.f32.mrf.mxu0
        %v1370 = vpop.f32.mrf.mxu0
        %v1371 = vadd.f32 0.0, %v1370
        %v1372 = vpop.f32.mrf.mxu0
        %1373 = vmatprep.mubr.bf16.mxu0 0
        %1374 = vmatmul.mubr.bf16.gmra.mxu0 %v1226
        %v1375 = vpop.f32.mrf.mxu0
        %v1376 = vadd.f32 0.0, %v1375
        %v1377 = vpop.f32.mrf.mxu0
        %v1378 = vpop.f32.mrf.mxu0
        %v1379 = vadd.f32 0.0, %v1378
        %v1380 = vpop.f32.mrf.mxu0
        %1381 = vmatprep.mubr.bf16.mxu0 0
        %1382 = vmatmul.mubr.bf16.gmra.mxu0 %v1227
        %v1383 = vpop.f32.mrf.mxu0
        %v1384 = vadd.f32 0.0, %v1383
        %v1385 = vpop.f32.mrf.mxu0
        %v1386 = vpop.f32.mrf.mxu0
        %v1387 = vadd.f32 0.0, %v1386
        %v1388 = vpop.f32.mrf.mxu0
        %1389 = vmatprep.mubr.bf16.mxu0 0
        %1390 = vmatmul.mubr.bf16.gmra.mxu0 %v1228
        %v1391 = vpop.f32.mrf.mxu0
        %v1392 = vadd.f32 0.0, %v1391
        %v1393 = vpop.f32.mrf.mxu0
        %v1394 = vpop.f32.mrf.mxu0
        %v1395 = vadd.f32 0.0, %v1394
        %v1396 = vpop.f32.mrf.mxu0
        %1397 = vmatprep.mubr.bf16.mxu0 0
        %1398 = vmatmul.mubr.bf16.gmra.mxu0 %v1229
        %v1399 = vpop.f32.mrf.mxu0
        %v1400 = vadd.f32 0.0, %v1399
        %v1401 = vpop.f32.mrf.mxu0
        %v1402 = vpop.f32.mrf.mxu0
        %v1403 = vadd.f32 0.0, %v1402
        %v1404 = vpop.f32.mrf.mxu0
        %1405 = vmatprep.mubr.bf16.mxu0 0
        %1406 = vmatmul.mubr.bf16.gmra.mxu0 %v1230
        %v1407 = vpop.f32.mrf.mxu0
        %v1408 = vadd.f32 0.0, %v1407
        %v1409 = vpop.f32.mrf.mxu0
        %v1410 = vpop.f32.mrf.mxu0
        %v1411 = vadd.f32 0.0, %v1410
        %v1412 = vpop.f32.mrf.mxu0
        %1413 = vmatprep.mubr.bf16.mxu0 0
        %1414 = vmatmul.mubr.bf16.gmra.mxu0 %v1231
        %v1415 = vpop.f32.mrf.mxu0
        %v1416 = vadd.f32 0.0, %v1415
        %v1417 = vpop.f32.mrf.mxu0
        %v1418 = vpop.f32.mrf.mxu0
        %v1419 = vadd.f32 0.0, %v1418
        %v1420 = vpop.f32.mrf.mxu0
        %1421 = vmatprep.mubr.bf16.mxu0 0
        %1422 = vmatmul.mubr.bf16.gmra.mxu0 %v1232
        %v1423 = vpop.f32.mrf.mxu0
        %v1424 = vadd.f32 0.0, %v1423
        %v1425 = vpop.f32.mrf.mxu0
        %v1426 = vpop.f32.mrf.mxu0
        %v1427 = vadd.f32 0.0, %v1426
        %v1428 = vpop.f32.mrf.mxu0
        %1429 = vmatprep.mubr.bf16.mxu0 0
        %1430 = vmatmul.mubr.bf16.gmra.mxu0 %v1233
        %v1431 = vpop.f32.mrf.mxu0
        %v1432 = vadd.f32 0.0, %v1431
        %v1433 = vpop.f32.mrf.mxu0
        %v1434 = vpop.f32.mrf.mxu0
        %v1435 = vadd.f32 0.0, %v1434
        %v1436 = vpop.f32.mrf.mxu0
        %1437 = vmatprep.mubr.bf16.mxu0 0
        %1438 = vmatmul.mubr.bf16.gmra.mxu0 %v1234
        %v1439 = vpop.f32.mrf.mxu0
        %v1440 = vadd.f32 0.0, %v1439
        %v1441 = vpop.f32.mrf.mxu0
        %v1442 = vpop.f32.mrf.mxu0
        %v1443 = vadd.f32 0.0, %v1442
        %v1444 = vpop.f32.mrf.mxu0
        %1445 = vmatprep.mubr.bf16.mxu0 0
        %1446 = vmatmul.mubr.bf16.gmra.mxu0 %v1235
        %v1447 = vpop.f32.mrf.mxu0
        %v1448 = vadd.f32 0.0, %v1447
        %v1449 = vpop.f32.mrf.mxu0
        %v1450 = vpop.f32.mrf.mxu0
        %v1451 = vadd.f32 0.0, %v1450
        %v1452 = vpop.f32.mrf.mxu0
        %1453 = vmatprep.mubr.bf16.mxu0 0
        %1454 = vmatmul.mubr.bf16.gmra.mxu0 %v1236
        %v1455 = vpop.f32.mrf.mxu0
        %v1456 = vadd.f32 0.0, %v1455
        %v1457 = vpop.f32.mrf.mxu0
        %v1458 = vpop.f32.mrf.mxu0
        %v1459 = vadd.f32 0.0, %v1458
        %v1460 = vpop.f32.mrf.mxu0
        %1461 = vdwg.mxu0
        %v1462 = vpack.c.bf16 %v1339, %v1336
        %v1463 = vpack.c.bf16 %v1347, %v1344
        %v1464 = vpack.c.bf16 %v1355, %v1352
        %v1465 = vpack.c.bf16 %v1363, %v1360
        %v1466 = vpack.c.bf16 %v1371, %v1368
        %v1467 = vpack.c.bf16 %v1379, %v1376
        %v1468 = vpack.c.bf16 %v1387, %v1384
        %v1469 = vpack.c.bf16 %v1395, %v1392
        %v1470 = vpack.c.bf16 %v1403, %v1400
        %v1471 = vpack.c.bf16 %v1411, %v1408
        %v1472 = vpack.c.bf16 %v1419, %v1416
        %v1473 = vpack.c.bf16 %v1427, %v1424
        %v1474 = vpack.c.bf16 %v1435, %v1432
        %v1475 = vpack.c.bf16 %v1443, %v1440
        %v1476 = vpack.c.bf16 %v1451, %v1448
        %v1477 = vpack.c.bf16 %v1459, %v1456
        %v1494 = vunpack.c.l.b16 %v1462
        %v1495 = vunpack.c.h.b16 %v1462
        %v1496 = vunpack.c.l.b16 %v1463
        %v1497 = vunpack.c.h.b16 %v1463
        %v1498 = vunpack.c.l.b16 %v1464
        %v1499 = vunpack.c.h.b16 %v1464
        %v1500 = vunpack.c.l.b16 %v1465
        %v1501 = vunpack.c.h.b16 %v1465
        %v1502 = vunpack.c.l.b16 %v1466
        %v1503 = vunpack.c.h.b16 %v1466
        %v1504 = vunpack.c.l.b16 %v1467
        %v1505 = vunpack.c.h.b16 %v1467
        %v1506 = vunpack.c.l.b16 %v1468
        %v1507 = vunpack.c.h.b16 %v1468
        %v1508 = vunpack.c.l.b16 %v1469
        %v1509 = vunpack.c.h.b16 %v1469
        %v1510 = vunpack.c.l.b16 %v1470
        %v1511 = vunpack.c.h.b16 %v1470
        %v1512 = vunpack.c.l.b16 %v1471
        %v1513 = vunpack.c.h.b16 %v1471
        %v1514 = vunpack.c.l.b16 %v1472
        %v1515 = vunpack.c.h.b16 %v1472
        %v1516 = vunpack.c.l.b16 %v1473
        %v1517 = vunpack.c.h.b16 %v1473
        %v1518 = vunpack.c.l.b16 %v1474
        %v1519 = vunpack.c.h.b16 %v1474
        %v1520 = vunpack.c.l.b16 %v1475
        %v1521 = vunpack.c.h.b16 %v1475
        %v1522 = vunpack.c.l.b16 %v1476
        %v1523 = vunpack.c.h.b16 %v1476
        %v1524 = vunpack.c.l.b16 %v1477
        %v1525 = vunpack.c.h.b16 %v1477
        %v1526 = vpack.c.b16 %v1494, %v1494
        %v1527 = vpack.c.b16 %v1495, %v1495
        %v1528 = vpack.c.b16 %v1496, %v1496
        %v1529 = vpack.c.b16 %v1497, %v1497
        %v1530 = vpack.c.b16 %v1498, %v1498
        %v1531 = vpack.c.b16 %v1499, %v1499
        %v1532 = vpack.c.b16 %v1500, %v1500
        %v1533 = vpack.c.b16 %v1501, %v1501
        %v1534 = vpack.c.b16 %v1502, %v1502
        %v1535 = vpack.c.b16 %v1503, %v1503
        %v1536 = vpack.c.b16 %v1504, %v1504
        %v1537 = vpack.c.b16 %v1505, %v1505
        %v1538 = vpack.c.b16 %v1506, %v1506
        %v1539 = vpack.c.b16 %v1507, %v1507
        %v1540 = vpack.c.b16 %v1508, %v1508
        %v1541 = vpack.c.b16 %v1509, %v1509
        %v1542 = vpack.c.b16 %v1510, %v1510
        %v1543 = vpack.c.b16 %v1511, %v1511
        %v1544 = vpack.c.b16 %v1512, %v1512
        %v1545 = vpack.c.b16 %v1513, %v1513
        %v1546 = vpack.c.b16 %v1514, %v1514
        %v1547 = vpack.c.b16 %v1515, %v1515
        %v1548 = vpack.c.b16 %v1516, %v1516
        %v1549 = vpack.c.b16 %v1517, %v1517
        %v1550 = vpack.c.b16 %v1518, %v1518
        %v1551 = vpack.c.b16 %v1519, %v1519
        %v1552 = vpack.c.b16 %v1520, %v1520
        %v1553 = vpack.c.b16 %v1521, %v1521
        %v1554 = vpack.c.b16 %v1522, %v1522
        %v1555 = vpack.c.b16 %v1523, %v1523
        %v1556 = vpack.c.b16 %v1524, %v1524
        %v1557 = vpack.c.b16 %v1525, %v1525
        %1590 = vst [vmem:[%s219] sm:$0xf] %v1526
        %1591 = vst [vmem:[%s219 + $0x4] sm:$0xf] %v1527
        %1592 = vst [vmem:[%s219 + $0x8] sm:$0xf] %v1528
        %1593 = vst [vmem:[%s219 + $0xc] sm:$0xf] %v1529
        %1594 = vst [vmem:[%s219 + $0x10] sm:$0xf] %v1530
        %1595 = vst [vmem:[%s219 + $0x14] sm:$0xf] %v1531
        %1596 = vst [vmem:[%s219 + $0x18] sm:$0xf] %v1532
        %1597 = vst [vmem:[%s219 + $0x1c] sm:$0xf] %v1533
        %1598 = vst [vmem:[%s219 + $0x20] sm:$0xf] %v1534
        %1599 = vst [vmem:[%s219 + $0x24] sm:$0xf] %v1535
        %1600 = vst [vmem:[%s219 + $0x28] sm:$0xf] %v1536
        %1601 = vst [vmem:[%s219 + $0x2c] sm:$0xf] %v1537
        %1602 = vst [vmem:[%s219 + $0x30] sm:$0xf] %v1538
        %1603 = vst [vmem:[%s219 + $0x34] sm:$0xf] %v1539
        %1604 = vst [vmem:[%s219 + $0x38] sm:$0xf] %v1540
        %1605 = vst [vmem:[%s219 + $0x3c] sm:$0xf] %v1541
        %1606 = vst [vmem:[%s219 + $0x40] sm:$0xf] %v1542
        %1607 = vst [vmem:[%s219 + $0x44] sm:$0xf] %v1543
        %1608 = vst [vmem:[%s219 + $0x48] sm:$0xf] %v1544
        %1609 = vst [vmem:[%s219 + $0x4c] sm:$0xf] %v1545
        %1610 = vst [vmem:[%s219 + $0x50] sm:$0xf] %v1546
        %1611 = vst [vmem:[%s219 + $0x54] sm:$0xf] %v1547
        %1612 = vst [vmem:[%s219 + $0x58] sm:$0xf] %v1548
        %1613 = vst [vmem:[%s219 + $0x5c] sm:$0xf] %v1549
        %1614 = vst [vmem:[%s219 + $0x60] sm:$0xf] %v1550
        %1615 = vst [vmem:[%s219 + $0x64] sm:$0xf] %v1551
        %1616 = vst [vmem:[%s219 + $0x68] sm:$0xf] %v1552
        %1617 = vst [vmem:[%s219 + $0x6c] sm:$0xf] %v1553
        %1618 = vst [vmem:[%s219 + $0x70] sm:$0xf] %v1554
        %1619 = vst [vmem:[%s219 + $0x74] sm:$0xf] %v1555
        %1620 = vst [vmem:[%s219 + $0x78] sm:$0xf] %v1556
        %1621 = vst [vmem:[%s219 + $0x7c] sm:$0xf] %v1557
        %s1622 = smul.u32 32, %s18
        %p1623 = scmp.lt.s32.totalorder %s1622, 63
        %s1624 = scalar_select %p1623, %s1622, 63
        %s1625 = smul.addr %s1624, 4
        %s1626 = scalar_lea.vmem %s4, %s1625
        // Predicated region
        $region41: #{gcn_forward.4} parent=35 // pred_check
          %p1627 = pneg %p125
        $region42: #{gcn_forward.4} parent=35 // pred_check_branch
          %1629 = sbr.rel (%p1627) target = $region44
        $region43: #{gcn_forward.4} parent=35 // pred_region
          %s1630 = smul.u32 32, %s18
        $region44: #{gcn_forward.4} parent=35 // pred_fallthru
          _
      $region36: #{gcn_forward.4} parent=5 // pred_fallthru
        _
      %p1631 = scmp.le.s32.totalorder 2, %s13
      // Predicated region
      $region45: #{gcn_forward.4} parent=5 // pred_check
        %p1632 = pneg %p1631
      $region46: #{gcn_forward.4} parent=5 // pred_check_branch
        %1634 = sbr.rel (%p1632) target = $region48
      $region47: #{gcn_forward.4} parent=5 // pred_region
        %s1635 = ssub.s32 %s13, 2
        // Predicated region
        $region49: #{gcn_forward.4} parent=47 // pred_check
          %p1636 = pneg %p131
        $region50: #{gcn_forward.4} parent=47 // pred_check_branch
          %1638 = sbr.rel (%p1636) target = $region52
        $region51: #{gcn_forward.4} parent=47 // pred_region
          %s1639 = smul.u32 32, %s19
          %p1640 = scmp.lt.s32.totalorder %s1639, 63
          %s1641 = scalar_select %p1640, %s1639, 63
          %s1642 = smul.addr %s1641, 4
          %s1643 = scalar_lea.vmem %s4, %s1642
        $region52: #{gcn_forward.4} parent=47 // pred_fallthru
          _
      $region48: #{gcn_forward.4} parent=5 // pred_fallthru
        _
    $region6: #{gcn_forward.4} parent=1 // loop_footer
      %s17 = sadd.s32 1, %s13
    $region7: #{gcn_forward.4} parent=1 // loop_footer_branch
      %12 = sbr.rel target = $region3
    $region8: #{gcn_forward.4} parent=1 // loop_exit
      _
    %1644 = vsyncpa [#allocation3], 1
    %s1645 = scalar_lea.sflag [#allocation3], 1
    %1646 = vsyncpa %s1645, 1

</llo_original>
